<compile_context>
chip_gen: v5e
topology: v5e:2x2
jax: 0.10.0
libtpu: 0.0.40
codegen_flags: <defaults>
</compile_context>

<pallas_src>
import functools

import numpy as np

import jax
import jax.numpy as jnp
from jax.experimental import pallas as pl
from jax.experimental.pallas import tpu as pltpu


def _sigmoid(z):
    # Exact logistic via tanh: one EUP op, numerically stable.
    return 0.5 * (jnp.tanh(0.5 * z) + 1.0)


# ----------------------------------------------------------------------------
# In-kernel helper: one bidirectional RNN "level" with all regions and both
# directions fused into a single recurrent chain.
#   x   : (T*B, I)   packed level input, forward-time row blocks
#   wih : (I, 2D)    packed input weights  (cols: [fwd all regions | bwd all])
#   whh : (2D, 2D)   block-diagonal recurrent weights (2R blocks of (H,H))
# Returns (T*B, 2D): row block t = [fwd outputs at t | bwd outputs at t].
# ----------------------------------------------------------------------------
def _bi_rnn_level(x, wih, whh, T, B):
    D = whh.shape[0] // 2
    # Hoisted input projection: one matmul for all timesteps, regions, dirs.
    xp = jnp.dot(x, wih, preferred_element_type=jnp.float32)          # (T*B, 2D)
    # Combined per-step input: fwd half forward-time, bwd half reverse-time.
    zb = jnp.concatenate([xp[(T - 1 - s) * B:(T - s) * B, D:] for s in range(T)],
                         axis=0)
    zc = jnp.concatenate([xp[:, :D], zb], axis=-1)                    # (T*B, 2D)

    hs = [jnp.tanh(zc[0:B, :])]                                       # h0 = 0
    for s in range(1, T):
        hs.append(jnp.tanh(zc[s * B:(s + 1) * B, :]
                           + jnp.dot(hs[-1], whh,
                                     preferred_element_type=jnp.float32)))

    # Re-align bwd outputs to forward time: output row t = [fwd_t | bwd_t].
    fpart = jnp.concatenate([hs[t][:, :D] for t in range(T)], axis=0)
    bpart = jnp.concatenate([hs[T - 1 - t][:, D:] for t in range(T)], axis=0)
    return jnp.concatenate([fpart, bpart], axis=-1)


# ----------------------------------------------------------------------------
# Fully fused PHRNN forward kernel.
# ----------------------------------------------------------------------------
def _phrnn_kernel(x_ref,
                  wih1_ref, whh1_ref, wih2_ref, whh2_ref, wih3_ref, whh3_ref,
                  wih4_ref, whh4_ref, wih5_ref, whh5_ref, wihl_ref, whhl_ref,
                  fc1w_hbm, fc1b_ref, fc2w_hbm, fc2b_ref, fc3w_ref, fc3b_ref,
                  out_ref,
                  fc1w_vmem, fc2w_vmem, dma_sem,
                  *, batch):
    B = batch
    T = x_ref.shape[0] // B

    # Prefetch the only large weights (fc1/fc2) HBM->VMEM; overlap with the
    # serial recurrences below.
    cp1 = pltpu.make_async_copy(fc1w_hbm, fc1w_vmem, dma_sem.at[0])
    cp2 = pltpu.make_async_copy(fc2w_hbm, fc2w_vmem, dma_sem.at[1])
    cp1.start()
    cp2.start()

    # ---- five bi-RNN levels (regions + directions fused per level) ----
    y = x_ref[...]
    for wih_ref, whh_ref in ((wih1_ref, whh1_ref), (wih2_ref, whh2_ref),
                             (wih3_ref, whh3_ref), (wih4_ref, whh4_ref),
                             (wih5_ref, whh5_ref)):
        y = _bi_rnn_level(y, wih_ref[...], whh_ref[...], T, B)

    # ---- bidirectional LSTM (fwd+bwd fused into one recurrent matmul) ----
    H = whhl_ref.shape[0] // 2
    wih = wihl_ref[...]                                                # (I, 8H)
    whh = whhl_ref[...]                                                # (2H, 8H)
    xp = jnp.dot(y, wih, preferred_element_type=jnp.float32)           # (T*B, 8H)
    zb = jnp.concatenate([xp[(T - 1 - s) * B:(T - s) * B, 4 * H:] for s in range(T)],
                         axis=0)
    zc = jnp.concatenate([xp[:, :4 * H], zb], axis=-1)                 # (T*B, 8H)

    h = jnp.zeros((B, 2 * H), jnp.float32)
    c_f = jnp.zeros((B, H), jnp.float32)
    c_b = jnp.zeros((B, H), jnp.float32)
    hs = []
    for s in range(T):
        z = zc[s * B:(s + 1) * B, :] + jnp.dot(h, whh,
                                               preferred_element_type=jnp.float32)
        # forward cell, PyTorch gate order i|f|g|o in cols [0, 4H)
        i_f = _sigmoid(z[:, 0 * H:1 * H])
        f_f = _sigmoid(z[:, 1 * H:2 * H])
        g_f = jnp.tanh(z[:, 2 * H:3 * H])
        o_f = _sigmoid(z[:, 3 * H:4 * H])
        c_f = f_f * c_f + i_f * g_f
        h_f = o_f * jnp.tanh(c_f)
        # backward cell, cols [4H, 8H)
        i_b = _sigmoid(z[:, 4 * H:5 * H])
        f_b = _sigmoid(z[:, 5 * H:6 * H])
        g_b = jnp.tanh(z[:, 6 * H:7 * H])
        o_b = _sigmoid(z[:, 7 * H:8 * H])
        c_b = f_b * c_b + i_b * g_b
        h_b = o_b * jnp.tanh(c_b)
        h = jnp.concatenate([h_f, h_b], axis=-1)
        hs.append(h)

    # Flatten LSTM output directly into the fc1 input layout (B, T*2H):
    # per timestep t (PyTorch order): [fwd_t | bwd_t].
    chunks = []
    for t in range(T):
        chunks.append(hs[t][:, :H])               # fwd hidden at time t
        chunks.append(hs[T - 1 - t][:, H:])       # bwd hidden at time t
    fc_in = jnp.concatenate(chunks, axis=-1)      # (B, T*2H)

    # ---- fused MLP head; weights arrive via the overlapped DMAs ----
    cp1.wait()
    a = jnp.dot(fc_in, fc1w_vmem[...], preferred_element_type=jnp.float32) + fc1b_ref[...]
    cp2.wait()
    a = jnp.dot(a, fc2w_vmem[...], preferred_element_type=jnp.float32) + fc2b_ref[...]
    out_ref[...] = (jnp.dot(a, fc3w_ref[...], preferred_element_type=jnp.float32)
                    + fc3b_ref[...])


def phrnn_forward(params, x_eyebrow, x_eye, x_nose, x_mouth):
    """Full PHRNN forward: exactly one pallas_call."""
    B, T = x_eye.shape[0], x_eye.shape[1]
    # Only external glue: pack the four raw inputs time-major once.
    x_all = jnp.concatenate([x_eye, x_eyebrow, x_nose, x_mouth],
                            axis=-1).astype(jnp.float32)               # (B, T, F)
    x_all = jnp.transpose(x_all, (1, 0, 2)).reshape(T * B, -1)         # (T*B, F)

    num_classes = params["fc3_w"].shape[1]
    vmem = pl.BlockSpec(memory_space=pltpu.MemorySpace.VMEM)
    hbm = pl.BlockSpec(memory_space=pl.ANY)   # stays in HBM; prefetched in-kernel

    return pl.pallas_call(
        functools.partial(_phrnn_kernel, batch=B),
        out_shape=jax.ShapeDtypeStruct((B, num_classes), jnp.float32),
        in_specs=[vmem] * 13 + [hbm, vmem, hbm, vmem, vmem, vmem],
        out_specs=vmem,
        scratch_shapes=[
            pltpu.VMEM(tuple(params["fc1_w"].shape), jnp.float32),
            pltpu.VMEM(tuple(params["fc2_w"].shape), jnp.float32),
            pltpu.SemaphoreType.DMA((2,)),
        ],
    )(x_all,
      params["wih1"], params["whh1"], params["wih2"], params["whh2"],
      params["wih3"], params["whh3"], params["wih4"], params["whh4"],
      params["wih5"], params["whh5"], params["wihl"], params["whhl"],
      params["fc1_w"], params["fc1_b"], params["fc2_w"], params["fc2_b"],
      params["fc3_w"], params["fc3_b"])


# ----------------------------------------------------------------------------
# Parameter construction + one-time host-side packing.
#
# Packed level layout (per level, H = hidden, R regions, D = R*H):
#   activations / hidden columns = [fwd region 1..R | bwd region 1..R]
#   wih (in_width, 2D): region-r weights scattered to the rows of the previous
#     level's output columns they consume (absorbing all torch.cat orderings);
#   whh (2D, 2D): block diagonal of [whh_f_1..whh_f_R, whh_b_1..whh_b_R].
# ----------------------------------------------------------------------------
def _uniform_np(key, shape, scale):
    return np.asarray(jax.random.uniform(key, shape, jnp.float32, -scale, scale))


def _rnn_raw(key, in_size, h):
    k = jax.random.split(key, 4)
    s = 1.0 / float(h) ** 0.5
    return {"wif": _uniform_np(k[0], (in_size, h), s),
            "whf": _uniform_np(k[1], (h, h), s),
            "wib": _uniform_np(k[2], (in_size, h), s),
            "whb": _uniform_np(k[3], (h, h), s)}


def _lstm_raw(key, in_size, h):
    # PyTorch gate order i|f|g|o along the output axis, bias=False.
    k = jax.random.split(key, 4)
    s = 1.0 / float(h) ** 0.5
    return {"wih_f": _uniform_np(k[0], (in_size, 4 * h), s),
            "wih_b": _uniform_np(k[1], (in_size, 4 * h), s),
            "whh_f": _uniform_np(k[2], (h, 4 * h), s),
            "whh_b": _uniform_np(k[3], (h, 4 * h), s)}


def _linear(key, in_size, out_size):
    k = jax.random.split(key, 2)
    s = 1.0 / float(in_size) ** 0.5
    return {"w": jax.random.uniform(k[0], (in_size, out_size), jnp.float32, -s, s),
            "b": jax.random.uniform(k[1], (1, out_size), jnp.float32, -s, s)}


def _pack_bi_rnn_level(region_params, region_ranges, in_width, h):
    R = len(region_params)
    D = R * h
    wih = np.zeros((in_width, 2 * D), np.float32)
    whh = np.zeros((2 * D, 2 * D), np.float32)
    for r, (p, ranges) in enumerate(zip(region_params, region_ranges)):
        row = 0
        for start, length in ranges:
            wih[start:start + length, r * h:(r + 1) * h] = p["wif"][row:row + length]
            wih[start:start + length, D + r * h:D + (r + 1) * h] = p["wib"][row:row + length]
            row += length
        whh[r * h:(r + 1) * h, r * h:(r + 1) * h] = p["whf"]
        whh[D + r * h:D + (r + 1) * h, D + r * h:D + (r + 1) * h] = p["whb"]
    return jnp.asarray(wih), jnp.asarray(whh)


def _pack_bi_lstm(p, ranges, in_width, h):
    wih = np.zeros((in_width, 8 * h), np.float32)
    row = 0
    for start, length in ranges:
        wih[start:start + length, 0:4 * h] = p["wih_f"][row:row + length]
        wih[start:start + length, 4 * h:8 * h] = p["wih_b"][row:row + length]
        row += length
    whh = np.zeros((2 * h, 8 * h), np.float32)
    whh[0:h, 0:4 * h] = p["whh_f"]
    whh[h:2 * h, 4 * h:8 * h] = p["whh_b"]
    return jnp.asarray(wih), jnp.asarray(whh)


def init_phrnn(key, eye_size, eyebrow_size, nose_size, mouth_size,
               h1, h2, h3, h4, h5, h6, total_length, num_classes):
    keys = jax.random.split(key, 18)

    # Raw (PyTorch-equivalent, bias=False) per-RNN weights.
    l1 = [_rnn_raw(keys[0], eye_size, h1), _rnn_raw(keys[1], eyebrow_size, h1),
          _rnn_raw(keys[2], nose_size, h1), _rnn_raw(keys[3], mouth_size, h1)]
    l2 = [_rnn_raw(keys[4], 4 * h1, h2), _rnn_raw(keys[5], 2 * h1, h2),
          _rnn_raw(keys[6], 2 * h1, h2)]
    l3 = [_rnn_raw(keys[7], 2 * h2, h3), _rnn_raw(keys[8], 2 * h2, h3),
          _rnn_raw(keys[9], 2 * h2, h3)]
    l4 = [_rnn_raw(keys[10], 4 * h3, h4), _rnn_raw(keys[11], 4 * h3, h4)]
    l5 = [_rnn_raw(keys[12], 2 * h4, h5), _rnn_raw(keys[13], 2 * h4, h5)]
    lstm = _lstm_raw(keys[14], 4 * h5, h6)

    # Input-column ranges (in the previous level's packed output layout) for
    # each region, listed in the PyTorch feature order that region consumes.
    in1 = [eye_size, eyebrow_size, nose_size, mouth_size]
    off = np.cumsum([0] + in1)
    ranges1 = [[(int(off[r]), in1[r])] for r in range(4)]
    width1 = int(off[4])

    D1 = 4 * h1
    ranges2 = [
        [(0, h1), (D1, h1), (h1, h1), (D1 + h1, h1)],            # cat(out_eye, out_eyebrow)
        [(2 * h1, h1), (D1 + 2 * h1, h1)],                       # out_nose
        [(3 * h1, h1), (D1 + 3 * h1, h1)],                       # out_mouth
    ]
    D2 = 3 * h2
    ranges3 = [
        [(0, h2), (D2, h2)],                                     # out_eye_brow
        [(h2, h2), (D2 + h2, h2)],                               # out_nose
        [(2 * h2, h2), (D2 + 2 * h2, h2)],                       # out_mouth
    ]
    D3 = 3 * h3
    ranges4 = [
        [(0, h3), (D3, h3), (h3, h3), (D3 + h3, h3)],            # cat(out_eye_brow, out_nose)
        [(h3, h3), (D3 + h3, h3), (2 * h3, h3), (D3 + 2 * h3, h3)],  # cat(out_nose, out_mouth)
    ]
    D4 = 2 * h4
    ranges5 = [
        [(0, h4), (D4, h4)],                                     # out_ebn
        [(h4, h4), (D4 + h4, h4)],                               # out_nm
    ]
    D5 = 2 * h5
    ranges_l = [(0, h5), (D5, h5), (h5, h5), (D5 + h5, h5)]      # cat(out_ebn, out_nm)

    wih1, whh1 = _pack_bi_rnn_level(l1, ranges1, width1, h1)
    wih2, whh2 = _pack_bi_rnn_level(l2, ranges2, 2 * D1, h2)
    wih3, whh3 = _pack_bi_rnn_level(l3, ranges3, 2 * D2, h3)
    wih4, whh4 = _pack_bi_rnn_level(l4, ranges4, 2 * D3, h4)
    wih5, whh5 = _pack_bi_rnn_level(l5, ranges5, 2 * D4, h5)
    wihl, whhl = _pack_bi_lstm(lstm, ranges_l, 2 * D5, h6)

    fc1 = _linear(keys[15], 2 * h6 * total_length, 1024)
    fc2 = _linear(keys[16], 1024, 256)
    fc3 = _linear(keys[17], 256, num_classes)

    return {
        "wih1": wih1, "whh1": whh1, "wih2": wih2, "whh2": whh2,
        "wih3": wih3, "whh3": whh3, "wih4": wih4, "whh4": whh4,
        "wih5": wih5, "whh5": whh5, "wihl": wihl, "whhl": whhl,
        "fc1_w": fc1["w"], "fc1_b": fc1["b"],
        "fc2_w": fc2["w"], "fc2_b": fc2["b"],
        "fc3_w": fc3["w"], "fc3_b": fc3["b"],
    }


if __name__ == "__main__":
    # Small, module-consistent shapes.
    B = 2
    T = 8          # total_length
    eye_size, eyebrow_size, nose_size, mouth_size = 8, 8, 8, 16
    h1 = h2 = h3 = h4 = h5 = h6 = 16
    num_classes = 6

    key = jax.random.PRNGKey(0)
    k_param, k_eb, k_eye, k_nose, k_mouth = jax.random.split(key, 5)

    params = init_phrnn(
        k_param, eye_size, eyebrow_size, nose_size, mouth_size,
        h1, h2, h3, h4, h5, h6, T, num_classes,
    )

    x_eyebrow = jax.random.normal(k_eb, (B, T, eyebrow_size), jnp.float32)
    x_eye = jax.random.normal(k_eye, (B, T, eye_size), jnp.float32)
    x_nose = jax.random.normal(k_nose, (B, T, nose_size), jnp.float32)
    x_mouth = jax.random.normal(k_mouth, (B, T, mouth_size), jnp.float32)

    fwd = jax.jit(phrnn_forward)
    out = jax.block_until_ready(fwd(params, x_eyebrow, x_eye, x_nose, x_mouth))
    assert out.shape == (B, num_classes), out.shape
    assert bool(jnp.all(jnp.isfinite(out)))
    print("KERNEL_OK")
</pallas_src>

<mosaic_0001>
module attributes {stable_mosaic.version = 11 : i64} {
  func.func @_phrnn_kernel(%arg0: memref<16x40xf32, #tpu.memory_space<vmem>>, %arg1: memref<40x128xf32, #tpu.memory_space<vmem>>, %arg2: memref<128x128xf32, #tpu.memory_space<vmem>>, %arg3: memref<128x96xf32, #tpu.memory_space<vmem>>, %arg4: memref<96x96xf32, #tpu.memory_space<vmem>>, %arg5: memref<96x96xf32, #tpu.memory_space<vmem>>, %arg6: memref<96x96xf32, #tpu.memory_space<vmem>>, %arg7: memref<96x64xf32, #tpu.memory_space<vmem>>, %arg8: memref<64x64xf32, #tpu.memory_space<vmem>>, %arg9: memref<64x64xf32, #tpu.memory_space<vmem>>, %arg10: memref<64x64xf32, #tpu.memory_space<vmem>>, %arg11: memref<64x128xf32, #tpu.memory_space<vmem>>, %arg12: memref<32x128xf32, #tpu.memory_space<vmem>>, %arg13: memref<256x1024xf32, #tpu.memory_space<any>>, %arg14: memref<1x1024xf32, #tpu.memory_space<vmem>>, %arg15: memref<1024x256xf32, #tpu.memory_space<any>>, %arg16: memref<1x256xf32, #tpu.memory_space<vmem>>, %arg17: memref<256x6xf32, #tpu.memory_space<vmem>>, %arg18: memref<1x6xf32, #tpu.memory_space<vmem>>, %arg19: memref<2x6xf32, #tpu.memory_space<vmem>>, %arg20: memref<256x1024xf32, #tpu.memory_space<vmem>>, %arg21: memref<1024x256xf32, #tpu.memory_space<vmem>>, %arg22: memref<2x!tpu.dma_semaphore, #tpu.memory_space<semaphore_mem>>) attributes {dimension_semantics = [], scalar_prefetch = 0 : i64, scratch_operands = 3 : i64, tpu.core_type = #tpu.core_type<tc>} {
    %c0_i32 = arith.constant 0 : i32
    %0 = tpu.memref_slice %arg22[%c0_i32] : memref<2x!tpu.dma_semaphore, #tpu.memory_space<semaphore_mem>> -> memref<1x!tpu.dma_semaphore, #tpu.memory_space<semaphore_mem>>
    %1 = tpu.memref_squeeze %0 : memref<1x!tpu.dma_semaphore, #tpu.memory_space<semaphore_mem>> -> memref<!tpu.dma_semaphore, #tpu.memory_space<semaphore_mem>>
    tpu.enqueue_dma source(%arg13 : memref<256x1024xf32, #tpu.memory_space<any>>) target(%arg20 : memref<256x1024xf32, #tpu.memory_space<vmem>>) target_semaphore(%1 : memref<!tpu.dma_semaphore, #tpu.memory_space<semaphore_mem>>)
    %c1_i32 = arith.constant 1 : i32
    %2 = tpu.memref_slice %arg22[%c1_i32] : memref<2x!tpu.dma_semaphore, #tpu.memory_space<semaphore_mem>> -> memref<1x!tpu.dma_semaphore, #tpu.memory_space<semaphore_mem>>
    %3 = tpu.memref_squeeze %2 : memref<1x!tpu.dma_semaphore, #tpu.memory_space<semaphore_mem>> -> memref<!tpu.dma_semaphore, #tpu.memory_space<semaphore_mem>>
    tpu.enqueue_dma source(%arg15 : memref<1024x256xf32, #tpu.memory_space<any>>) target(%arg21 : memref<1024x256xf32, #tpu.memory_space<vmem>>) target_semaphore(%3 : memref<!tpu.dma_semaphore, #tpu.memory_space<semaphore_mem>>)
    %c0 = arith.constant 0 : index
    %c0_0 = arith.constant 0 : index
    %4 = vector.load %arg0[%c0, %c0_0] : memref<16x40xf32, #tpu.memory_space<vmem>>, vector<16x40xf32>
    %c0_1 = arith.constant 0 : index
    %c0_2 = arith.constant 0 : index
    %5 = vector.load %arg1[%c0_1, %c0_2] : memref<40x128xf32, #tpu.memory_space<vmem>>, vector<40x128xf32>
    %c0_3 = arith.constant 0 : index
    %c0_4 = arith.constant 0 : index
    %6 = vector.load %arg2[%c0_3, %c0_4] : memref<128x128xf32, #tpu.memory_space<vmem>>, vector<128x128xf32>
    %cst = arith.constant dense<0.000000e+00> : vector<16x128xf32>
    %7 = tpu.matmul %4, %5, %cst {dimension_numbers = #tpu.dot_dimension_numbers<[1], [0], [0], [1], [0, 0, 1, 1], [], []>} : vector<16x40xf32>, vector<40x128xf32>, vector<16x128xf32> -> vector<16x128xf32>
    %8 = vector.extract_strided_slice %7 {offsets = [14, 64], sizes = [2, 64], strides = [1, 1]} : vector<16x128xf32> to vector<2x64xf32>
    %9 = vector.extract_strided_slice %7 {offsets = [12, 64], sizes = [2, 64], strides = [1, 1]} : vector<16x128xf32> to vector<2x64xf32>
    %10 = vector.extract_strided_slice %7 {offsets = [10, 64], sizes = [2, 64], strides = [1, 1]} : vector<16x128xf32> to vector<2x64xf32>
    %11 = vector.extract_strided_slice %7 {offsets = [8, 64], sizes = [2, 64], strides = [1, 1]} : vector<16x128xf32> to vector<2x64xf32>
    %12 = vector.extract_strided_slice %7 {offsets = [6, 64], sizes = [2, 64], strides = [1, 1]} : vector<16x128xf32> to vector<2x64xf32>
    %13 = vector.extract_strided_slice %7 {offsets = [4, 64], sizes = [2, 64], strides = [1, 1]} : vector<16x128xf32> to vector<2x64xf32>
    %14 = vector.extract_strided_slice %7 {offsets = [2, 64], sizes = [2, 64], strides = [1, 1]} : vector<16x128xf32> to vector<2x64xf32>
    %15 = vector.extract_strided_slice %7 {offsets = [0, 64], sizes = [2, 64], strides = [1, 1]} : vector<16x128xf32> to vector<2x64xf32>
    %16 = tpu.concatenate %8, %9, %10, %11, %12, %13, %14, %15 in 0 : vector<2x64xf32>, vector<2x64xf32>, vector<2x64xf32>, vector<2x64xf32>, vector<2x64xf32>, vector<2x64xf32>, vector<2x64xf32>, vector<2x64xf32> -> vector<16x64xf32>
    %17 = vector.extract_strided_slice %7 {offsets = [0, 0], sizes = [16, 64], strides = [1, 1]} : vector<16x128xf32> to vector<16x64xf32>
    %18 = tpu.concatenate %17, %16 in 1 : vector<16x64xf32>, vector<16x64xf32> -> vector<16x128xf32>
    %19 = vector.extract_strided_slice %18 {offsets = [0, 0], sizes = [2, 128], strides = [1, 1]} : vector<16x128xf32> to vector<2x128xf32>
    %20 = math.tanh %19 : vector<2x128xf32>
    %21 = vector.extract_strided_slice %18 {offsets = [2, 0], sizes = [2, 128], strides = [1, 1]} : vector<16x128xf32> to vector<2x128xf32>
    %cst_5 = arith.constant dense<0.000000e+00> : vector<2x128xf32>
    %22 = tpu.matmul %20, %6, %cst_5 {dimension_numbers = #tpu.dot_dimension_numbers<[1], [0], [0], [1], [0, 0, 1, 1], [], []>} : vector<2x128xf32>, vector<128x128xf32>, vector<2x128xf32> -> vector<2x128xf32>
    %23 = arith.addf %21, %22 : vector<2x128xf32>
    %24 = math.tanh %23 : vector<2x128xf32>
    %25 = vector.extract_strided_slice %18 {offsets = [4, 0], sizes = [2, 128], strides = [1, 1]} : vector<16x128xf32> to vector<2x128xf32>
    %cst_6 = arith.constant dense<0.000000e+00> : vector<2x128xf32>
    %26 = tpu.matmul %24, %6, %cst_6 {dimension_numbers = #tpu.dot_dimension_numbers<[1], [0], [0], [1], [0, 0, 1, 1], [], []>} : vector<2x128xf32>, vector<128x128xf32>, vector<2x128xf32> -> vector<2x128xf32>
    %27 = arith.addf %25, %26 : vector<2x128xf32>
    %28 = math.tanh %27 : vector<2x128xf32>
    %29 = vector.extract_strided_slice %18 {offsets = [6, 0], sizes = [2, 128], strides = [1, 1]} : vector<16x128xf32> to vector<2x128xf32>
    %cst_7 = arith.constant dense<0.000000e+00> : vector<2x128xf32>
    %30 = tpu.matmul %28, %6, %cst_7 {dimension_numbers = #tpu.dot_dimension_numbers<[1], [0], [0], [1], [0, 0, 1, 1], [], []>} : vector<2x128xf32>, vector<128x128xf32>, vector<2x128xf32> -> vector<2x128xf32>
    %31 = arith.addf %29, %30 : vector<2x128xf32>
    %32 = math.tanh %31 : vector<2x128xf32>
    %33 = vector.extract_strided_slice %18 {offsets = [8, 0], sizes = [2, 128], strides = [1, 1]} : vector<16x128xf32> to vector<2x128xf32>
    %cst_8 = arith.constant dense<0.000000e+00> : vector<2x128xf32>
    %34 = tpu.matmul %32, %6, %cst_8 {dimension_numbers = #tpu.dot_dimension_numbers<[1], [0], [0], [1], [0, 0, 1, 1], [], []>} : vector<2x128xf32>, vector<128x128xf32>, vector<2x128xf32> -> vector<2x128xf32>
    %35 = arith.addf %33, %34 : vector<2x128xf32>
    %36 = math.tanh %35 : vector<2x128xf32>
    %37 = vector.extract_strided_slice %18 {offsets = [10, 0], sizes = [2, 128], strides = [1, 1]} : vector<16x128xf32> to vector<2x128xf32>
    %cst_9 = arith.constant dense<0.000000e+00> : vector<2x128xf32>
    %38 = tpu.matmul %36, %6, %cst_9 {dimension_numbers = #tpu.dot_dimension_numbers<[1], [0], [0], [1], [0, 0, 1, 1], [], []>} : vector<2x128xf32>, vector<128x128xf32>, vector<2x128xf32> -> vector<2x128xf32>
    %39 = arith.addf %37, %38 : vector<2x128xf32>
    %40 = math.tanh %39 : vector<2x128xf32>
    %41 = vector.extract_strided_slice %18 {offsets = [12, 0], sizes = [2, 128], strides = [1, 1]} : vector<16x128xf32> to vector<2x128xf32>
    %cst_10 = arith.constant dense<0.000000e+00> : vector<2x128xf32>
    %42 = tpu.matmul %40, %6, %cst_10 {dimension_numbers = #tpu.dot_dimension_numbers<[1], [0], [0], [1], [0, 0, 1, 1], [], []>} : vector<2x128xf32>, vector<128x128xf32>, vector<2x128xf32> -> vector<2x128xf32>
    %43 = arith.addf %41, %42 : vector<2x128xf32>
    %44 = math.tanh %43 : vector<2x128xf32>
    %45 = vector.extract_strided_slice %18 {offsets = [14, 0], sizes = [2, 128], strides = [1, 1]} : vector<16x128xf32> to vector<2x128xf32>
    %cst_11 = arith.constant dense<0.000000e+00> : vector<2x128xf32>
    %46 = tpu.matmul %44, %6, %cst_11 {dimension_numbers = #tpu.dot_dimension_numbers<[1], [0], [0], [1], [0, 0, 1, 1], [], []>} : vector<2x128xf32>, vector<128x128xf32>, vector<2x128xf32> -> vector<2x128xf32>
    %47 = arith.addf %45, %46 : vector<2x128xf32>
    %48 = math.tanh %47 : vector<2x128xf32>
    %49 = vector.extract_strided_slice %20 {offsets = [0, 0], sizes = [2, 64], strides = [1, 1]} : vector<2x128xf32> to vector<2x64xf32>
    %50 = vector.extract_strided_slice %24 {offsets = [0, 0], sizes = [2, 64], strides = [1, 1]} : vector<2x128xf32> to vector<2x64xf32>
    %51 = vector.extract_strided_slice %28 {offsets = [0, 0], sizes = [2, 64], strides = [1, 1]} : vector<2x128xf32> to vector<2x64xf32>
    %52 = vector.extract_strided_slice %32 {offsets = [0, 0], sizes = [2, 64], strides = [1, 1]} : vector<2x128xf32> to vector<2x64xf32>
    %53 = vector.extract_strided_slice %36 {offsets = [0, 0], sizes = [2, 64], strides = [1, 1]} : vector<2x128xf32> to vector<2x64xf32>
    %54 = vector.extract_strided_slice %40 {offsets = [0, 0], sizes = [2, 64], strides = [1, 1]} : vector<2x128xf32> to vector<2x64xf32>
    %55 = vector.extract_strided_slice %44 {offsets = [0, 0], sizes = [2, 64], strides = [1, 1]} : vector<2x128xf32> to vector<2x64xf32>
    %56 = vector.extract_strided_slice %48 {offsets = [0, 0], sizes = [2, 64], strides = [1, 1]} : vector<2x128xf32> to vector<2x64xf32>
    %57 = tpu.concatenate %49, %50, %51, %52, %53, %54, %55, %56 in 0 : vector<2x64xf32>, vector<2x64xf32>, vector<2x64xf32>, vector<2x64xf32>, vector<2x64xf32>, vector<2x64xf32>, vector<2x64xf32>, vector<2x64xf32> -> vector<16x64xf32>
    %58 = vector.extract_strided_slice %48 {offsets = [0, 64], sizes = [2, 64], strides = [1, 1]} : vector<2x128xf32> to vector<2x64xf32>
    %59 = vector.extract_strided_slice %44 {offsets = [0, 64], sizes = [2, 64], strides = [1, 1]} : vector<2x128xf32> to vector<2x64xf32>
    %60 = vector.extract_strided_slice %40 {offsets = [0, 64], sizes = [2, 64], strides = [1, 1]} : vector<2x128xf32> to vector<2x64xf32>
    %61 = vector.extract_strided_slice %36 {offsets = [0, 64], sizes = [2, 64], strides = [1, 1]} : vector<2x128xf32> to vector<2x64xf32>
    %62 = vector.extract_strided_slice %32 {offsets = [0, 64], sizes = [2, 64], strides = [1, 1]} : vector<2x128xf32> to vector<2x64xf32>
    %63 = vector.extract_strided_slice %28 {offsets = [0, 64], sizes = [2, 64], strides = [1, 1]} : vector<2x128xf32> to vector<2x64xf32>
    %64 = vector.extract_strided_slice %24 {offsets = [0, 64], sizes = [2, 64], strides = [1, 1]} : vector<2x128xf32> to vector<2x64xf32>
    %65 = vector.extract_strided_slice %20 {offsets = [0, 64], sizes = [2, 64], strides = [1, 1]} : vector<2x128xf32> to vector<2x64xf32>
    %66 = tpu.concatenate %58, %59, %60, %61, %62, %63, %64, %65 in 0 : vector<2x64xf32>, vector<2x64xf32>, vector<2x64xf32>, vector<2x64xf32>, vector<2x64xf32>, vector<2x64xf32>, vector<2x64xf32>, vector<2x64xf32> -> vector<16x64xf32>
    %67 = tpu.concatenate %57, %66 in 1 : vector<16x64xf32>, vector<16x64xf32> -> vector<16x128xf32>
    %c0_12 = arith.constant 0 : index
    %c0_13 = arith.constant 0 : index
    %68 = vector.load %arg3[%c0_12, %c0_13] : memref<128x96xf32, #tpu.memory_space<vmem>>, vector<128x96xf32>
    %c0_14 = arith.constant 0 : index
    %c0_15 = arith.constant 0 : index
    %69 = vector.load %arg4[%c0_14, %c0_15] : memref<96x96xf32, #tpu.memory_space<vmem>>, vector<96x96xf32>
    %cst_16 = arith.constant dense<0.000000e+00> : vector<16x96xf32>
    %70 = tpu.matmul %67, %68, %cst_16 {dimension_numbers = #tpu.dot_dimension_numbers<[1], [0], [0], [1], [0, 0, 1, 1], [], []>} : vector<16x128xf32>, vector<128x96xf32>, vector<16x96xf32> -> vector<16x96xf32>
    %71 = vector.extract_strided_slice %70 {offsets = [14, 48], sizes = [2, 48], strides = [1, 1]} : vector<16x96xf32> to vector<2x48xf32>
    %72 = vector.extract_strided_slice %70 {offsets = [12, 48], sizes = [2, 48], strides = [1, 1]} : vector<16x96xf32> to vector<2x48xf32>
    %73 = vector.extract_strided_slice %70 {offsets = [10, 48], sizes = [2, 48], strides = [1, 1]} : vector<16x96xf32> to vector<2x48xf32>
    %74 = vector.extract_strided_slice %70 {offsets = [8, 48], sizes = [2, 48], strides = [1, 1]} : vector<16x96xf32> to vector<2x48xf32>
    %75 = vector.extract_strided_slice %70 {offsets = [6, 48], sizes = [2, 48], strides = [1, 1]} : vector<16x96xf32> to vector<2x48xf32>
    %76 = vector.extract_strided_slice %70 {offsets = [4, 48], sizes = [2, 48], strides = [1, 1]} : vector<16x96xf32> to vector<2x48xf32>
    %77 = vector.extract_strided_slice %70 {offsets = [2, 48], sizes = [2, 48], strides = [1, 1]} : vector<16x96xf32> to vector<2x48xf32>
    %78 = vector.extract_strided_slice %70 {offsets = [0, 48], sizes = [2, 48], strides = [1, 1]} : vector<16x96xf32> to vector<2x48xf32>
    %79 = tpu.concatenate %71, %72, %73, %74, %75, %76, %77, %78 in 0 : vector<2x48xf32>, vector<2x48xf32>, vector<2x48xf32>, vector<2x48xf32>, vector<2x48xf32>, vector<2x48xf32>, vector<2x48xf32>, vector<2x48xf32> -> vector<16x48xf32>
    %80 = vector.extract_strided_slice %70 {offsets = [0, 0], sizes = [16, 48], strides = [1, 1]} : vector<16x96xf32> to vector<16x48xf32>
    %81 = tpu.concatenate %80, %79 in 1 : vector<16x48xf32>, vector<16x48xf32> -> vector<16x96xf32>
    %82 = vector.extract_strided_slice %81 {offsets = [0, 0], sizes = [2, 96], strides = [1, 1]} : vector<16x96xf32> to vector<2x96xf32>
    %83 = math.tanh %82 : vector<2x96xf32>
    %84 = vector.extract_strided_slice %81 {offsets = [2, 0], sizes = [2, 96], strides = [1, 1]} : vector<16x96xf32> to vector<2x96xf32>
    %cst_17 = arith.constant dense<0.000000e+00> : vector<2x96xf32>
    %85 = tpu.matmul %83, %69, %cst_17 {dimension_numbers = #tpu.dot_dimension_numbers<[1], [0], [0], [1], [0, 0, 1, 1], [], []>} : vector<2x96xf32>, vector<96x96xf32>, vector<2x96xf32> -> vector<2x96xf32>
    %86 = arith.addf %84, %85 : vector<2x96xf32>
    %87 = math.tanh %86 : vector<2x96xf32>
    %88 = vector.extract_strided_slice %81 {offsets = [4, 0], sizes = [2, 96], strides = [1, 1]} : vector<16x96xf32> to vector<2x96xf32>
    %cst_18 = arith.constant dense<0.000000e+00> : vector<2x96xf32>
    %89 = tpu.matmul %87, %69, %cst_18 {dimension_numbers = #tpu.dot_dimension_numbers<[1], [0], [0], [1], [0, 0, 1, 1], [], []>} : vector<2x96xf32>, vector<96x96xf32>, vector<2x96xf32> -> vector<2x96xf32>
    %90 = arith.addf %88, %89 : vector<2x96xf32>
    %91 = math.tanh %90 : vector<2x96xf32>
    %92 = vector.extract_strided_slice %81 {offsets = [6, 0], sizes = [2, 96], strides = [1, 1]} : vector<16x96xf32> to vector<2x96xf32>
    %cst_19 = arith.constant dense<0.000000e+00> : vector<2x96xf32>
    %93 = tpu.matmul %91, %69, %cst_19 {dimension_numbers = #tpu.dot_dimension_numbers<[1], [0], [0], [1], [0, 0, 1, 1], [], []>} : vector<2x96xf32>, vector<96x96xf32>, vector<2x96xf32> -> vector<2x96xf32>
    %94 = arith.addf %92, %93 : vector<2x96xf32>
    %95 = math.tanh %94 : vector<2x96xf32>
    %96 = vector.extract_strided_slice %81 {offsets = [8, 0], sizes = [2, 96], strides = [1, 1]} : vector<16x96xf32> to vector<2x96xf32>
    %cst_20 = arith.constant dense<0.000000e+00> : vector<2x96xf32>
    %97 = tpu.matmul %95, %69, %cst_20 {dimension_numbers = #tpu.dot_dimension_numbers<[1], [0], [0], [1], [0, 0, 1, 1], [], []>} : vector<2x96xf32>, vector<96x96xf32>, vector<2x96xf32> -> vector<2x96xf32>
    %98 = arith.addf %96, %97 : vector<2x96xf32>
    %99 = math.tanh %98 : vector<2x96xf32>
    %100 = vector.extract_strided_slice %81 {offsets = [10, 0], sizes = [2, 96], strides = [1, 1]} : vector<16x96xf32> to vector<2x96xf32>
    %cst_21 = arith.constant dense<0.000000e+00> : vector<2x96xf32>
    %101 = tpu.matmul %99, %69, %cst_21 {dimension_numbers = #tpu.dot_dimension_numbers<[1], [0], [0], [1], [0, 0, 1, 1], [], []>} : vector<2x96xf32>, vector<96x96xf32>, vector<2x96xf32> -> vector<2x96xf32>
    %102 = arith.addf %100, %101 : vector<2x96xf32>
    %103 = math.tanh %102 : vector<2x96xf32>
    %104 = vector.extract_strided_slice %81 {offsets = [12, 0], sizes = [2, 96], strides = [1, 1]} : vector<16x96xf32> to vector<2x96xf32>
    %cst_22 = arith.constant dense<0.000000e+00> : vector<2x96xf32>
    %105 = tpu.matmul %103, %69, %cst_22 {dimension_numbers = #tpu.dot_dimension_numbers<[1], [0], [0], [1], [0, 0, 1, 1], [], []>} : vector<2x96xf32>, vector<96x96xf32>, vector<2x96xf32> -> vector<2x96xf32>
    %106 = arith.addf %104, %105 : vector<2x96xf32>
    %107 = math.tanh %106 : vector<2x96xf32>
    %108 = vector.extract_strided_slice %81 {offsets = [14, 0], sizes = [2, 96], strides = [1, 1]} : vector<16x96xf32> to vector<2x96xf32>
    %cst_23 = arith.constant dense<0.000000e+00> : vector<2x96xf32>
    %109 = tpu.matmul %107, %69, %cst_23 {dimension_numbers = #tpu.dot_dimension_numbers<[1], [0], [0], [1], [0, 0, 1, 1], [], []>} : vector<2x96xf32>, vector<96x96xf32>, vector<2x96xf32> -> vector<2x96xf32>
    %110 = arith.addf %108, %109 : vector<2x96xf32>
    %111 = math.tanh %110 : vector<2x96xf32>
    %112 = vector.extract_strided_slice %83 {offsets = [0, 0], sizes = [2, 48], strides = [1, 1]} : vector<2x96xf32> to vector<2x48xf32>
    %113 = vector.extract_strided_slice %87 {offsets = [0, 0], sizes = [2, 48], strides = [1, 1]} : vector<2x96xf32> to vector<2x48xf32>
    %114 = vector.extract_strided_slice %91 {offsets = [0, 0], sizes = [2, 48], strides = [1, 1]} : vector<2x96xf32> to vector<2x48xf32>
    %115 = vector.extract_strided_slice %95 {offsets = [0, 0], sizes = [2, 48], strides = [1, 1]} : vector<2x96xf32> to vector<2x48xf32>
    %116 = vector.extract_strided_slice %99 {offsets = [0, 0], sizes = [2, 48], strides = [1, 1]} : vector<2x96xf32> to vector<2x48xf32>
    %117 = vector.extract_strided_slice %103 {offsets = [0, 0], sizes = [2, 48], strides = [1, 1]} : vector<2x96xf32> to vector<2x48xf32>
    %118 = vector.extract_strided_slice %107 {offsets = [0, 0], sizes = [2, 48], strides = [1, 1]} : vector<2x96xf32> to vector<2x48xf32>
    %119 = vector.extract_strided_slice %111 {offsets = [0, 0], sizes = [2, 48], strides = [1, 1]} : vector<2x96xf32> to vector<2x48xf32>
    %120 = tpu.concatenate %112, %113, %114, %115, %116, %117, %118, %119 in 0 : vector<2x48xf32>, vector<2x48xf32>, vector<2x48xf32>, vector<2x48xf32>, vector<2x48xf32>, vector<2x48xf32>, vector<2x48xf32>, vector<2x48xf32> -> vector<16x48xf32>
    %121 = vector.extract_strided_slice %111 {offsets = [0, 48], sizes = [2, 48], strides = [1, 1]} : vector<2x96xf32> to vector<2x48xf32>
    %122 = vector.extract_strided_slice %107 {offsets = [0, 48], sizes = [2, 48], strides = [1, 1]} : vector<2x96xf32> to vector<2x48xf32>
    %123 = vector.extract_strided_slice %103 {offsets = [0, 48], sizes = [2, 48], strides = [1, 1]} : vector<2x96xf32> to vector<2x48xf32>
    %124 = vector.extract_strided_slice %99 {offsets = [0, 48], sizes = [2, 48], strides = [1, 1]} : vector<2x96xf32> to vector<2x48xf32>
    %125 = vector.extract_strided_slice %95 {offsets = [0, 48], sizes = [2, 48], strides = [1, 1]} : vector<2x96xf32> to vector<2x48xf32>
    %126 = vector.extract_strided_slice %91 {offsets = [0, 48], sizes = [2, 48], strides = [1, 1]} : vector<2x96xf32> to vector<2x48xf32>
    %127 = vector.extract_strided_slice %87 {offsets = [0, 48], sizes = [2, 48], strides = [1, 1]} : vector<2x96xf32> to vector<2x48xf32>
    %128 = vector.extract_strided_slice %83 {offsets = [0, 48], sizes = [2, 48], strides = [1, 1]} : vector<2x96xf32> to vector<2x48xf32>
    %129 = tpu.concatenate %121, %122, %123, %124, %125, %126, %127, %128 in 0 : vector<2x48xf32>, vector<2x48xf32>, vector<2x48xf32>, vector<2x48xf32>, vector<2x48xf32>, vector<2x48xf32>, vector<2x48xf32>, vector<2x48xf32> -> vector<16x48xf32>
    %130 = tpu.concatenate %120, %129 in 1 : vector<16x48xf32>, vector<16x48xf32> -> vector<16x96xf32>
    %c0_24 = arith.constant 0 : index
    %c0_25 = arith.constant 0 : index
    %131 = vector.load %arg5[%c0_24, %c0_25] : memref<96x96xf32, #tpu.memory_space<vmem>>, vector<96x96xf32>
    %c0_26 = arith.constant 0 : index
    %c0_27 = arith.constant 0 : index
    %132 = vector.load %arg6[%c0_26, %c0_27] : memref<96x96xf32, #tpu.memory_space<vmem>>, vector<96x96xf32>
    %cst_28 = arith.constant dense<0.000000e+00> : vector<16x96xf32>
    %133 = tpu.matmul %130, %131, %cst_28 {dimension_numbers = #tpu.dot_dimension_numbers<[1], [0], [0], [1], [0, 0, 1, 1], [], []>} : vector<16x96xf32>, vector<96x96xf32>, vector<16x96xf32> -> vector<16x96xf32>
    %134 = vector.extract_strided_slice %133 {offsets = [14, 48], sizes = [2, 48], strides = [1, 1]} : vector<16x96xf32> to vector<2x48xf32>
    %135 = vector.extract_strided_slice %133 {offsets = [12, 48], sizes = [2, 48], strides = [1, 1]} : vector<16x96xf32> to vector<2x48xf32>
    %136 = vector.extract_strided_slice %133 {offsets = [10, 48], sizes = [2, 48], strides = [1, 1]} : vector<16x96xf32> to vector<2x48xf32>
    %137 = vector.extract_strided_slice %133 {offsets = [8, 48], sizes = [2, 48], strides = [1, 1]} : vector<16x96xf32> to vector<2x48xf32>
    %138 = vector.extract_strided_slice %133 {offsets = [6, 48], sizes = [2, 48], strides = [1, 1]} : vector<16x96xf32> to vector<2x48xf32>
    %139 = vector.extract_strided_slice %133 {offsets = [4, 48], sizes = [2, 48], strides = [1, 1]} : vector<16x96xf32> to vector<2x48xf32>
    %140 = vector.extract_strided_slice %133 {offsets = [2, 48], sizes = [2, 48], strides = [1, 1]} : vector<16x96xf32> to vector<2x48xf32>
    %141 = vector.extract_strided_slice %133 {offsets = [0, 48], sizes = [2, 48], strides = [1, 1]} : vector<16x96xf32> to vector<2x48xf32>
    %142 = tpu.concatenate %134, %135, %136, %137, %138, %139, %140, %141 in 0 : vector<2x48xf32>, vector<2x48xf32>, vector<2x48xf32>, vector<2x48xf32>, vector<2x48xf32>, vector<2x48xf32>, vector<2x48xf32>, vector<2x48xf32> -> vector<16x48xf32>
    %143 = vector.extract_strided_slice %133 {offsets = [0, 0], sizes = [16, 48], strides = [1, 1]} : vector<16x96xf32> to vector<16x48xf32>
    %144 = tpu.concatenate %143, %142 in 1 : vector<16x48xf32>, vector<16x48xf32> -> vector<16x96xf32>
    %145 = vector.extract_strided_slice %144 {offsets = [0, 0], sizes = [2, 96], strides = [1, 1]} : vector<16x96xf32> to vector<2x96xf32>
    %146 = math.tanh %145 : vector<2x96xf32>
    %147 = vector.extract_strided_slice %144 {offsets = [2, 0], sizes = [2, 96], strides = [1, 1]} : vector<16x96xf32> to vector<2x96xf32>
    %cst_29 = arith.constant dense<0.000000e+00> : vector<2x96xf32>
    %148 = tpu.matmul %146, %132, %cst_29 {dimension_numbers = #tpu.dot_dimension_numbers<[1], [0], [0], [1], [0, 0, 1, 1], [], []>} : vector<2x96xf32>, vector<96x96xf32>, vector<2x96xf32> -> vector<2x96xf32>
    %149 = arith.addf %147, %148 : vector<2x96xf32>
    %150 = math.tanh %149 : vector<2x96xf32>
    %151 = vector.extract_strided_slice %144 {offsets = [4, 0], sizes = [2, 96], strides = [1, 1]} : vector<16x96xf32> to vector<2x96xf32>
    %cst_30 = arith.constant dense<0.000000e+00> : vector<2x96xf32>
    %152 = tpu.matmul %150, %132, %cst_30 {dimension_numbers = #tpu.dot_dimension_numbers<[1], [0], [0], [1], [0, 0, 1, 1], [], []>} : vector<2x96xf32>, vector<96x96xf32>, vector<2x96xf32> -> vector<2x96xf32>
    %153 = arith.addf %151, %152 : vector<2x96xf32>
    %154 = math.tanh %153 : vector<2x96xf32>
    %155 = vector.extract_strided_slice %144 {offsets = [6, 0], sizes = [2, 96], strides = [1, 1]} : vector<16x96xf32> to vector<2x96xf32>
    %cst_31 = arith.constant dense<0.000000e+00> : vector<2x96xf32>
    %156 = tpu.matmul %154, %132, %cst_31 {dimension_numbers = #tpu.dot_dimension_numbers<[1], [0], [0], [1], [0, 0, 1, 1], [], []>} : vector<2x96xf32>, vector<96x96xf32>, vector<2x96xf32> -> vector<2x96xf32>
    %157 = arith.addf %155, %156 : vector<2x96xf32>
    %158 = math.tanh %157 : vector<2x96xf32>
    %159 = vector.extract_strided_slice %144 {offsets = [8, 0], sizes = [2, 96], strides = [1, 1]} : vector<16x96xf32> to vector<2x96xf32>
    %cst_32 = arith.constant dense<0.000000e+00> : vector<2x96xf32>
    %160 = tpu.matmul %158, %132, %cst_32 {dimension_numbers = #tpu.dot_dimension_numbers<[1], [0], [0], [1], [0, 0, 1, 1], [], []>} : vector<2x96xf32>, vector<96x96xf32>, vector<2x96xf32> -> vector<2x96xf32>
    %161 = arith.addf %159, %160 : vector<2x96xf32>
    %162 = math.tanh %161 : vector<2x96xf32>
    %163 = vector.extract_strided_slice %144 {offsets = [10, 0], sizes = [2, 96], strides = [1, 1]} : vector<16x96xf32> to vector<2x96xf32>
    %cst_33 = arith.constant dense<0.000000e+00> : vector<2x96xf32>
    %164 = tpu.matmul %162, %132, %cst_33 {dimension_numbers = #tpu.dot_dimension_numbers<[1], [0], [0], [1], [0, 0, 1, 1], [], []>} : vector<2x96xf32>, vector<96x96xf32>, vector<2x96xf32> -> vector<2x96xf32>
    %165 = arith.addf %163, %164 : vector<2x96xf32>
    %166 = math.tanh %165 : vector<2x96xf32>
    %167 = vector.extract_strided_slice %144 {offsets = [12, 0], sizes = [2, 96], strides = [1, 1]} : vector<16x96xf32> to vector<2x96xf32>
    %cst_34 = arith.constant dense<0.000000e+00> : vector<2x96xf32>
    %168 = tpu.matmul %166, %132, %cst_34 {dimension_numbers = #tpu.dot_dimension_numbers<[1], [0], [0], [1], [0, 0, 1, 1], [], []>} : vector<2x96xf32>, vector<96x96xf32>, vector<2x96xf32> -> vector<2x96xf32>
    %169 = arith.addf %167, %168 : vector<2x96xf32>
    %170 = math.tanh %169 : vector<2x96xf32>
    %171 = vector.extract_strided_slice %144 {offsets = [14, 0], sizes = [2, 96], strides = [1, 1]} : vector<16x96xf32> to vector<2x96xf32>
    %cst_35 = arith.constant dense<0.000000e+00> : vector<2x96xf32>
    %172 = tpu.matmul %170, %132, %cst_35 {dimension_numbers = #tpu.dot_dimension_numbers<[1], [0], [0], [1], [0, 0, 1, 1], [], []>} : vector<2x96xf32>, vector<96x96xf32>, vector<2x96xf32> -> vector<2x96xf32>
    %173 = arith.addf %171, %172 : vector<2x96xf32>
    %174 = math.tanh %173 : vector<2x96xf32>
    %175 = vector.extract_strided_slice %146 {offsets = [0, 0], sizes = [2, 48], strides = [1, 1]} : vector<2x96xf32> to vector<2x48xf32>
    %176 = vector.extract_strided_slice %150 {offsets = [0, 0], sizes = [2, 48], strides = [1, 1]} : vector<2x96xf32> to vector<2x48xf32>
    %177 = vector.extract_strided_slice %154 {offsets = [0, 0], sizes = [2, 48], strides = [1, 1]} : vector<2x96xf32> to vector<2x48xf32>
    %178 = vector.extract_strided_slice %158 {offsets = [0, 0], sizes = [2, 48], strides = [1, 1]} : vector<2x96xf32> to vector<2x48xf32>
    %179 = vector.extract_strided_slice %162 {offsets = [0, 0], sizes = [2, 48], strides = [1, 1]} : vector<2x96xf32> to vector<2x48xf32>
    %180 = vector.extract_strided_slice %166 {offsets = [0, 0], sizes = [2, 48], strides = [1, 1]} : vector<2x96xf32> to vector<2x48xf32>
    %181 = vector.extract_strided_slice %170 {offsets = [0, 0], sizes = [2, 48], strides = [1, 1]} : vector<2x96xf32> to vector<2x48xf32>
    %182 = vector.extract_strided_slice %174 {offsets = [0, 0], sizes = [2, 48], strides = [1, 1]} : vector<2x96xf32> to vector<2x48xf32>
    %183 = tpu.concatenate %175, %176, %177, %178, %179, %180, %181, %182 in 0 : vector<2x48xf32>, vector<2x48xf32>, vector<2x48xf32>, vector<2x48xf32>, vector<2x48xf32>, vector<2x48xf32>, vector<2x48xf32>, vector<2x48xf32> -> vector<16x48xf32>
    %184 = vector.extract_strided_slice %174 {offsets = [0, 48], sizes = [2, 48], strides = [1, 1]} : vector<2x96xf32> to vector<2x48xf32>
    %185 = vector.extract_strided_slice %170 {offsets = [0, 48], sizes = [2, 48], strides = [1, 1]} : vector<2x96xf32> to vector<2x48xf32>
    %186 = vector.extract_strided_slice %166 {offsets = [0, 48], sizes = [2, 48], strides = [1, 1]} : vector<2x96xf32> to vector<2x48xf32>
    %187 = vector.extract_strided_slice %162 {offsets = [0, 48], sizes = [2, 48], strides = [1, 1]} : vector<2x96xf32> to vector<2x48xf32>
    %188 = vector.extract_strided_slice %158 {offsets = [0, 48], sizes = [2, 48], strides = [1, 1]} : vector<2x96xf32> to vector<2x48xf32>
    %189 = vector.extract_strided_slice %154 {offsets = [0, 48], sizes = [2, 48], strides = [1, 1]} : vector<2x96xf32> to vector<2x48xf32>
    %190 = vector.extract_strided_slice %150 {offsets = [0, 48], sizes = [2, 48], strides = [1, 1]} : vector<2x96xf32> to vector<2x48xf32>
    %191 = vector.extract_strided_slice %146 {offsets = [0, 48], sizes = [2, 48], strides = [1, 1]} : vector<2x96xf32> to vector<2x48xf32>
    %192 = tpu.concatenate %184, %185, %186, %187, %188, %189, %190, %191 in 0 : vector<2x48xf32>, vector<2x48xf32>, vector<2x48xf32>, vector<2x48xf32>, vector<2x48xf32>, vector<2x48xf32>, vector<2x48xf32>, vector<2x48xf32> -> vector<16x48xf32>
    %193 = tpu.concatenate %183, %192 in 1 : vector<16x48xf32>, vector<16x48xf32> -> vector<16x96xf32>
    %c0_36 = arith.constant 0 : index
    %c0_37 = arith.constant 0 : index
    %194 = vector.load %arg7[%c0_36, %c0_37] : memref<96x64xf32, #tpu.memory_space<vmem>>, vector<96x64xf32>
    %c0_38 = arith.constant 0 : index
    %c0_39 = arith.constant 0 : index
    %195 = vector.load %arg8[%c0_38, %c0_39] : memref<64x64xf32, #tpu.memory_space<vmem>>, vector<64x64xf32>
    %cst_40 = arith.constant dense<0.000000e+00> : vector<16x64xf32>
    %196 = tpu.matmul %193, %194, %cst_40 {dimension_numbers = #tpu.dot_dimension_numbers<[1], [0], [0], [1], [0, 0, 1, 1], [], []>} : vector<16x96xf32>, vector<96x64xf32>, vector<16x64xf32> -> vector<16x64xf32>
    %197 = vector.extract_strided_slice %196 {offsets = [14, 32], sizes = [2, 32], strides = [1, 1]} : vector<16x64xf32> to vector<2x32xf32>
    %198 = vector.extract_strided_slice %196 {offsets = [12, 32], sizes = [2, 32], strides = [1, 1]} : vector<16x64xf32> to vector<2x32xf32>
    %199 = vector.extract_strided_slice %196 {offsets = [10, 32], sizes = [2, 32], strides = [1, 1]} : vector<16x64xf32> to vector<2x32xf32>
    %200 = vector.extract_strided_slice %196 {offsets = [8, 32], sizes = [2, 32], strides = [1, 1]} : vector<16x64xf32> to vector<2x32xf32>
    %201 = vector.extract_strided_slice %196 {offsets = [6, 32], sizes = [2, 32], strides = [1, 1]} : vector<16x64xf32> to vector<2x32xf32>
    %202 = vector.extract_strided_slice %196 {offsets = [4, 32], sizes = [2, 32], strides = [1, 1]} : vector<16x64xf32> to vector<2x32xf32>
    %203 = vector.extract_strided_slice %196 {offsets = [2, 32], sizes = [2, 32], strides = [1, 1]} : vector<16x64xf32> to vector<2x32xf32>
    %204 = vector.extract_strided_slice %196 {offsets = [0, 32], sizes = [2, 32], strides = [1, 1]} : vector<16x64xf32> to vector<2x32xf32>
    %205 = tpu.concatenate %197, %198, %199, %200, %201, %202, %203, %204 in 0 : vector<2x32xf32>, vector<2x32xf32>, vector<2x32xf32>, vector<2x32xf32>, vector<2x32xf32>, vector<2x32xf32>, vector<2x32xf32>, vector<2x32xf32> -> vector<16x32xf32>
    %206 = vector.extract_strided_slice %196 {offsets = [0, 0], sizes = [16, 32], strides = [1, 1]} : vector<16x64xf32> to vector<16x32xf32>
    %207 = tpu.concatenate %206, %205 in 1 : vector<16x32xf32>, vector<16x32xf32> -> vector<16x64xf32>
    %208 = vector.extract_strided_slice %207 {offsets = [0, 0], sizes = [2, 64], strides = [1, 1]} : vector<16x64xf32> to vector<2x64xf32>
    %209 = math.tanh %208 : vector<2x64xf32>
    %210 = vector.extract_strided_slice %207 {offsets = [2, 0], sizes = [2, 64], strides = [1, 1]} : vector<16x64xf32> to vector<2x64xf32>
    %cst_41 = arith.constant dense<0.000000e+00> : vector<2x64xf32>
    %211 = tpu.matmul %209, %195, %cst_41 {dimension_numbers = #tpu.dot_dimension_numbers<[1], [0], [0], [1], [0, 0, 1, 1], [], []>} : vector<2x64xf32>, vector<64x64xf32>, vector<2x64xf32> -> vector<2x64xf32>
    %212 = arith.addf %210, %211 : vector<2x64xf32>
    %213 = math.tanh %212 : vector<2x64xf32>
    %214 = vector.extract_strided_slice %207 {offsets = [4, 0], sizes = [2, 64], strides = [1, 1]} : vector<16x64xf32> to vector<2x64xf32>
    %cst_42 = arith.constant dense<0.000000e+00> : vector<2x64xf32>
    %215 = tpu.matmul %213, %195, %cst_42 {dimension_numbers = #tpu.dot_dimension_numbers<[1], [0], [0], [1], [0, 0, 1, 1], [], []>} : vector<2x64xf32>, vector<64x64xf32>, vector<2x64xf32> -> vector<2x64xf32>
    %216 = arith.addf %214, %215 : vector<2x64xf32>
    %217 = math.tanh %216 : vector<2x64xf32>
    %218 = vector.extract_strided_slice %207 {offsets = [6, 0], sizes = [2, 64], strides = [1, 1]} : vector<16x64xf32> to vector<2x64xf32>
    %cst_43 = arith.constant dense<0.000000e+00> : vector<2x64xf32>
    %219 = tpu.matmul %217, %195, %cst_43 {dimension_numbers = #tpu.dot_dimension_numbers<[1], [0], [0], [1], [0, 0, 1, 1], [], []>} : vector<2x64xf32>, vector<64x64xf32>, vector<2x64xf32> -> vector<2x64xf32>
    %220 = arith.addf %218, %219 : vector<2x64xf32>
    %221 = math.tanh %220 : vector<2x64xf32>
    %222 = vector.extract_strided_slice %207 {offsets = [8, 0], sizes = [2, 64], strides = [1, 1]} : vector<16x64xf32> to vector<2x64xf32>
    %cst_44 = arith.constant dense<0.000000e+00> : vector<2x64xf32>
    %223 = tpu.matmul %221, %195, %cst_44 {dimension_numbers = #tpu.dot_dimension_numbers<[1], [0], [0], [1], [0, 0, 1, 1], [], []>} : vector<2x64xf32>, vector<64x64xf32>, vector<2x64xf32> -> vector<2x64xf32>
    %224 = arith.addf %222, %223 : vector<2x64xf32>
    %225 = math.tanh %224 : vector<2x64xf32>
    %226 = vector.extract_strided_slice %207 {offsets = [10, 0], sizes = [2, 64], strides = [1, 1]} : vector<16x64xf32> to vector<2x64xf32>
    %cst_45 = arith.constant dense<0.000000e+00> : vector<2x64xf32>
    %227 = tpu.matmul %225, %195, %cst_45 {dimension_numbers = #tpu.dot_dimension_numbers<[1], [0], [0], [1], [0, 0, 1, 1], [], []>} : vector<2x64xf32>, vector<64x64xf32>, vector<2x64xf32> -> vector<2x64xf32>
    %228 = arith.addf %226, %227 : vector<2x64xf32>
    %229 = math.tanh %228 : vector<2x64xf32>
    %230 = vector.extract_strided_slice %207 {offsets = [12, 0], sizes = [2, 64], strides = [1, 1]} : vector<16x64xf32> to vector<2x64xf32>
    %cst_46 = arith.constant dense<0.000000e+00> : vector<2x64xf32>
    %231 = tpu.matmul %229, %195, %cst_46 {dimension_numbers = #tpu.dot_dimension_numbers<[1], [0], [0], [1], [0, 0, 1, 1], [], []>} : vector<2x64xf32>, vector<64x64xf32>, vector<2x64xf32> -> vector<2x64xf32>
    %232 = arith.addf %230, %231 : vector<2x64xf32>
    %233 = math.tanh %232 : vector<2x64xf32>
    %234 = vector.extract_strided_slice %207 {offsets = [14, 0], sizes = [2, 64], strides = [1, 1]} : vector<16x64xf32> to vector<2x64xf32>
    %cst_47 = arith.constant dense<0.000000e+00> : vector<2x64xf32>
    %235 = tpu.matmul %233, %195, %cst_47 {dimension_numbers = #tpu.dot_dimension_numbers<[1], [0], [0], [1], [0, 0, 1, 1], [], []>} : vector<2x64xf32>, vector<64x64xf32>, vector<2x64xf32> -> vector<2x64xf32>
    %236 = arith.addf %234, %235 : vector<2x64xf32>
    %237 = math.tanh %236 : vector<2x64xf32>
    %238 = vector.extract_strided_slice %209 {offsets = [0, 0], sizes = [2, 32], strides = [1, 1]} : vector<2x64xf32> to vector<2x32xf32>
    %239 = vector.extract_strided_slice %213 {offsets = [0, 0], sizes = [2, 32], strides = [1, 1]} : vector<2x64xf32> to vector<2x32xf32>
    %240 = vector.extract_strided_slice %217 {offsets = [0, 0], sizes = [2, 32], strides = [1, 1]} : vector<2x64xf32> to vector<2x32xf32>
    %241 = vector.extract_strided_slice %221 {offsets = [0, 0], sizes = [2, 32], strides = [1, 1]} : vector<2x64xf32> to vector<2x32xf32>
    %242 = vector.extract_strided_slice %225 {offsets = [0, 0], sizes = [2, 32], strides = [1, 1]} : vector<2x64xf32> to vector<2x32xf32>
    %243 = vector.extract_strided_slice %229 {offsets = [0, 0], sizes = [2, 32], strides = [1, 1]} : vector<2x64xf32> to vector<2x32xf32>
    %244 = vector.extract_strided_slice %233 {offsets = [0, 0], sizes = [2, 32], strides = [1, 1]} : vector<2x64xf32> to vector<2x32xf32>
    %245 = vector.extract_strided_slice %237 {offsets = [0, 0], sizes = [2, 32], strides = [1, 1]} : vector<2x64xf32> to vector<2x32xf32>
    %246 = tpu.concatenate %238, %239, %240, %241, %242, %243, %244, %245 in 0 : vector<2x32xf32>, vector<2x32xf32>, vector<2x32xf32>, vector<2x32xf32>, vector<2x32xf32>, vector<2x32xf32>, vector<2x32xf32>, vector<2x32xf32> -> vector<16x32xf32>
    %247 = vector.extract_strided_slice %237 {offsets = [0, 32], sizes = [2, 32], strides = [1, 1]} : vector<2x64xf32> to vector<2x32xf32>
    %248 = vector.extract_strided_slice %233 {offsets = [0, 32], sizes = [2, 32], strides = [1, 1]} : vector<2x64xf32> to vector<2x32xf32>
    %249 = vector.extract_strided_slice %229 {offsets = [0, 32], sizes = [2, 32], strides = [1, 1]} : vector<2x64xf32> to vector<2x32xf32>
    %250 = vector.extract_strided_slice %225 {offsets = [0, 32], sizes = [2, 32], strides = [1, 1]} : vector<2x64xf32> to vector<2x32xf32>
    %251 = vector.extract_strided_slice %221 {offsets = [0, 32], sizes = [2, 32], strides = [1, 1]} : vector<2x64xf32> to vector<2x32xf32>
    %252 = vector.extract_strided_slice %217 {offsets = [0, 32], sizes = [2, 32], strides = [1, 1]} : vector<2x64xf32> to vector<2x32xf32>
    %253 = vector.extract_strided_slice %213 {offsets = [0, 32], sizes = [2, 32], strides = [1, 1]} : vector<2x64xf32> to vector<2x32xf32>
    %254 = vector.extract_strided_slice %209 {offsets = [0, 32], sizes = [2, 32], strides = [1, 1]} : vector<2x64xf32> to vector<2x32xf32>
    %255 = tpu.concatenate %247, %248, %249, %250, %251, %252, %253, %254 in 0 : vector<2x32xf32>, vector<2x32xf32>, vector<2x32xf32>, vector<2x32xf32>, vector<2x32xf32>, vector<2x32xf32>, vector<2x32xf32>, vector<2x32xf32> -> vector<16x32xf32>
    %256 = tpu.concatenate %246, %255 in 1 : vector<16x32xf32>, vector<16x32xf32> -> vector<16x64xf32>
    %c0_48 = arith.constant 0 : index
    %c0_49 = arith.constant 0 : index
    %257 = vector.load %arg9[%c0_48, %c0_49] : memref<64x64xf32, #tpu.memory_space<vmem>>, vector<64x64xf32>
    %c0_50 = arith.constant 0 : index
    %c0_51 = arith.constant 0 : index
    %258 = vector.load %arg10[%c0_50, %c0_51] : memref<64x64xf32, #tpu.memory_space<vmem>>, vector<64x64xf32>
    %cst_52 = arith.constant dense<0.000000e+00> : vector<16x64xf32>
    %259 = tpu.matmul %256, %257, %cst_52 {dimension_numbers = #tpu.dot_dimension_numbers<[1], [0], [0], [1], [0, 0, 1, 1], [], []>} : vector<16x64xf32>, vector<64x64xf32>, vector<16x64xf32> -> vector<16x64xf32>
    %260 = vector.extract_strided_slice %259 {offsets = [14, 32], sizes = [2, 32], strides = [1, 1]} : vector<16x64xf32> to vector<2x32xf32>
    %261 = vector.extract_strided_slice %259 {offsets = [12, 32], sizes = [2, 32], strides = [1, 1]} : vector<16x64xf32> to vector<2x32xf32>
    %262 = vector.extract_strided_slice %259 {offsets = [10, 32], sizes = [2, 32], strides = [1, 1]} : vector<16x64xf32> to vector<2x32xf32>
    %263 = vector.extract_strided_slice %259 {offsets = [8, 32], sizes = [2, 32], strides = [1, 1]} : vector<16x64xf32> to vector<2x32xf32>
    %264 = vector.extract_strided_slice %259 {offsets = [6, 32], sizes = [2, 32], strides = [1, 1]} : vector<16x64xf32> to vector<2x32xf32>
    %265 = vector.extract_strided_slice %259 {offsets = [4, 32], sizes = [2, 32], strides = [1, 1]} : vector<16x64xf32> to vector<2x32xf32>
    %266 = vector.extract_strided_slice %259 {offsets = [2, 32], sizes = [2, 32], strides = [1, 1]} : vector<16x64xf32> to vector<2x32xf32>
    %267 = vector.extract_strided_slice %259 {offsets = [0, 32], sizes = [2, 32], strides = [1, 1]} : vector<16x64xf32> to vector<2x32xf32>
    %268 = tpu.concatenate %260, %261, %262, %263, %264, %265, %266, %267 in 0 : vector<2x32xf32>, vector<2x32xf32>, vector<2x32xf32>, vector<2x32xf32>, vector<2x32xf32>, vector<2x32xf32>, vector<2x32xf32>, vector<2x32xf32> -> vector<16x32xf32>
    %269 = vector.extract_strided_slice %259 {offsets = [0, 0], sizes = [16, 32], strides = [1, 1]} : vector<16x64xf32> to vector<16x32xf32>
    %270 = tpu.concatenate %269, %268 in 1 : vector<16x32xf32>, vector<16x32xf32> -> vector<16x64xf32>
    %271 = vector.extract_strided_slice %270 {offsets = [0, 0], sizes = [2, 64], strides = [1, 1]} : vector<16x64xf32> to vector<2x64xf32>
    %272 = math.tanh %271 : vector<2x64xf32>
    %273 = vector.extract_strided_slice %270 {offsets = [2, 0], sizes = [2, 64], strides = [1, 1]} : vector<16x64xf32> to vector<2x64xf32>
    %cst_53 = arith.constant dense<0.000000e+00> : vector<2x64xf32>
    %274 = tpu.matmul %272, %258, %cst_53 {dimension_numbers = #tpu.dot_dimension_numbers<[1], [0], [0], [1], [0, 0, 1, 1], [], []>} : vector<2x64xf32>, vector<64x64xf32>, vector<2x64xf32> -> vector<2x64xf32>
    %275 = arith.addf %273, %274 : vector<2x64xf32>
    %276 = math.tanh %275 : vector<2x64xf32>
    %277 = vector.extract_strided_slice %270 {offsets = [4, 0], sizes = [2, 64], strides = [1, 1]} : vector<16x64xf32> to vector<2x64xf32>
    %cst_54 = arith.constant dense<0.000000e+00> : vector<2x64xf32>
    %278 = tpu.matmul %276, %258, %cst_54 {dimension_numbers = #tpu.dot_dimension_numbers<[1], [0], [0], [1], [0, 0, 1, 1], [], []>} : vector<2x64xf32>, vector<64x64xf32>, vector<2x64xf32> -> vector<2x64xf32>
    %279 = arith.addf %277, %278 : vector<2x64xf32>
    %280 = math.tanh %279 : vector<2x64xf32>
    %281 = vector.extract_strided_slice %270 {offsets = [6, 0], sizes = [2, 64], strides = [1, 1]} : vector<16x64xf32> to vector<2x64xf32>
    %cst_55 = arith.constant dense<0.000000e+00> : vector<2x64xf32>
    %282 = tpu.matmul %280, %258, %cst_55 {dimension_numbers = #tpu.dot_dimension_numbers<[1], [0], [0], [1], [0, 0, 1, 1], [], []>} : vector<2x64xf32>, vector<64x64xf32>, vector<2x64xf32> -> vector<2x64xf32>
    %283 = arith.addf %281, %282 : vector<2x64xf32>
    %284 = math.tanh %283 : vector<2x64xf32>
    %285 = vector.extract_strided_slice %270 {offsets = [8, 0], sizes = [2, 64], strides = [1, 1]} : vector<16x64xf32> to vector<2x64xf32>
    %cst_56 = arith.constant dense<0.000000e+00> : vector<2x64xf32>
    %286 = tpu.matmul %284, %258, %cst_56 {dimension_numbers = #tpu.dot_dimension_numbers<[1], [0], [0], [1], [0, 0, 1, 1], [], []>} : vector<2x64xf32>, vector<64x64xf32>, vector<2x64xf32> -> vector<2x64xf32>
    %287 = arith.addf %285, %286 : vector<2x64xf32>
    %288 = math.tanh %287 : vector<2x64xf32>
    %289 = vector.extract_strided_slice %270 {offsets = [10, 0], sizes = [2, 64], strides = [1, 1]} : vector<16x64xf32> to vector<2x64xf32>
    %cst_57 = arith.constant dense<0.000000e+00> : vector<2x64xf32>
    %290 = tpu.matmul %288, %258, %cst_57 {dimension_numbers = #tpu.dot_dimension_numbers<[1], [0], [0], [1], [0, 0, 1, 1], [], []>} : vector<2x64xf32>, vector<64x64xf32>, vector<2x64xf32> -> vector<2x64xf32>
    %291 = arith.addf %289, %290 : vector<2x64xf32>
    %292 = math.tanh %291 : vector<2x64xf32>
    %293 = vector.extract_strided_slice %270 {offsets = [12, 0], sizes = [2, 64], strides = [1, 1]} : vector<16x64xf32> to vector<2x64xf32>
    %cst_58 = arith.constant dense<0.000000e+00> : vector<2x64xf32>
    %294 = tpu.matmul %292, %258, %cst_58 {dimension_numbers = #tpu.dot_dimension_numbers<[1], [0], [0], [1], [0, 0, 1, 1], [], []>} : vector<2x64xf32>, vector<64x64xf32>, vector<2x64xf32> -> vector<2x64xf32>
    %295 = arith.addf %293, %294 : vector<2x64xf32>
    %296 = math.tanh %295 : vector<2x64xf32>
    %297 = vector.extract_strided_slice %270 {offsets = [14, 0], sizes = [2, 64], strides = [1, 1]} : vector<16x64xf32> to vector<2x64xf32>
    %cst_59 = arith.constant dense<0.000000e+00> : vector<2x64xf32>
    %298 = tpu.matmul %296, %258, %cst_59 {dimension_numbers = #tpu.dot_dimension_numbers<[1], [0], [0], [1], [0, 0, 1, 1], [], []>} : vector<2x64xf32>, vector<64x64xf32>, vector<2x64xf32> -> vector<2x64xf32>
    %299 = arith.addf %297, %298 : vector<2x64xf32>
    %300 = math.tanh %299 : vector<2x64xf32>
    %301 = vector.extract_strided_slice %272 {offsets = [0, 0], sizes = [2, 32], strides = [1, 1]} : vector<2x64xf32> to vector<2x32xf32>
    %302 = vector.extract_strided_slice %276 {offsets = [0, 0], sizes = [2, 32], strides = [1, 1]} : vector<2x64xf32> to vector<2x32xf32>
    %303 = vector.extract_strided_slice %280 {offsets = [0, 0], sizes = [2, 32], strides = [1, 1]} : vector<2x64xf32> to vector<2x32xf32>
    %304 = vector.extract_strided_slice %284 {offsets = [0, 0], sizes = [2, 32], strides = [1, 1]} : vector<2x64xf32> to vector<2x32xf32>
    %305 = vector.extract_strided_slice %288 {offsets = [0, 0], sizes = [2, 32], strides = [1, 1]} : vector<2x64xf32> to vector<2x32xf32>
    %306 = vector.extract_strided_slice %292 {offsets = [0, 0], sizes = [2, 32], strides = [1, 1]} : vector<2x64xf32> to vector<2x32xf32>
    %307 = vector.extract_strided_slice %296 {offsets = [0, 0], sizes = [2, 32], strides = [1, 1]} : vector<2x64xf32> to vector<2x32xf32>
    %308 = vector.extract_strided_slice %300 {offsets = [0, 0], sizes = [2, 32], strides = [1, 1]} : vector<2x64xf32> to vector<2x32xf32>
    %309 = tpu.concatenate %301, %302, %303, %304, %305, %306, %307, %308 in 0 : vector<2x32xf32>, vector<2x32xf32>, vector<2x32xf32>, vector<2x32xf32>, vector<2x32xf32>, vector<2x32xf32>, vector<2x32xf32>, vector<2x32xf32> -> vector<16x32xf32>
    %310 = vector.extract_strided_slice %300 {offsets = [0, 32], sizes = [2, 32], strides = [1, 1]} : vector<2x64xf32> to vector<2x32xf32>
    %311 = vector.extract_strided_slice %296 {offsets = [0, 32], sizes = [2, 32], strides = [1, 1]} : vector<2x64xf32> to vector<2x32xf32>
    %312 = vector.extract_strided_slice %292 {offsets = [0, 32], sizes = [2, 32], strides = [1, 1]} : vector<2x64xf32> to vector<2x32xf32>
    %313 = vector.extract_strided_slice %288 {offsets = [0, 32], sizes = [2, 32], strides = [1, 1]} : vector<2x64xf32> to vector<2x32xf32>
    %314 = vector.extract_strided_slice %284 {offsets = [0, 32], sizes = [2, 32], strides = [1, 1]} : vector<2x64xf32> to vector<2x32xf32>
    %315 = vector.extract_strided_slice %280 {offsets = [0, 32], sizes = [2, 32], strides = [1, 1]} : vector<2x64xf32> to vector<2x32xf32>
    %316 = vector.extract_strided_slice %276 {offsets = [0, 32], sizes = [2, 32], strides = [1, 1]} : vector<2x64xf32> to vector<2x32xf32>
    %317 = vector.extract_strided_slice %272 {offsets = [0, 32], sizes = [2, 32], strides = [1, 1]} : vector<2x64xf32> to vector<2x32xf32>
    %318 = tpu.concatenate %310, %311, %312, %313, %314, %315, %316, %317 in 0 : vector<2x32xf32>, vector<2x32xf32>, vector<2x32xf32>, vector<2x32xf32>, vector<2x32xf32>, vector<2x32xf32>, vector<2x32xf32>, vector<2x32xf32> -> vector<16x32xf32>
    %319 = tpu.concatenate %309, %318 in 1 : vector<16x32xf32>, vector<16x32xf32> -> vector<16x64xf32>
    %c0_60 = arith.constant 0 : index
    %c0_61 = arith.constant 0 : index
    %320 = vector.load %arg11[%c0_60, %c0_61] : memref<64x128xf32, #tpu.memory_space<vmem>>, vector<64x128xf32>
    %c0_62 = arith.constant 0 : index
    %c0_63 = arith.constant 0 : index
    %321 = vector.load %arg12[%c0_62, %c0_63] : memref<32x128xf32, #tpu.memory_space<vmem>>, vector<32x128xf32>
    %cst_64 = arith.constant dense<0.000000e+00> : vector<16x128xf32>
    %322 = tpu.matmul %319, %320, %cst_64 {dimension_numbers = #tpu.dot_dimension_numbers<[1], [0], [0], [1], [0, 0, 1, 1], [], []>} : vector<16x64xf32>, vector<64x128xf32>, vector<16x128xf32> -> vector<16x128xf32>
    %323 = vector.extract_strided_slice %322 {offsets = [14, 64], sizes = [2, 64], strides = [1, 1]} : vector<16x128xf32> to vector<2x64xf32>
    %324 = vector.extract_strided_slice %322 {offsets = [12, 64], sizes = [2, 64], strides = [1, 1]} : vector<16x128xf32> to vector<2x64xf32>
    %325 = vector.extract_strided_slice %322 {offsets = [10, 64], sizes = [2, 64], strides = [1, 1]} : vector<16x128xf32> to vector<2x64xf32>
    %326 = vector.extract_strided_slice %322 {offsets = [8, 64], sizes = [2, 64], strides = [1, 1]} : vector<16x128xf32> to vector<2x64xf32>
    %327 = vector.extract_strided_slice %322 {offsets = [6, 64], sizes = [2, 64], strides = [1, 1]} : vector<16x128xf32> to vector<2x64xf32>
    %328 = vector.extract_strided_slice %322 {offsets = [4, 64], sizes = [2, 64], strides = [1, 1]} : vector<16x128xf32> to vector<2x64xf32>
    %329 = vector.extract_strided_slice %322 {offsets = [2, 64], sizes = [2, 64], strides = [1, 1]} : vector<16x128xf32> to vector<2x64xf32>
    %330 = vector.extract_strided_slice %322 {offsets = [0, 64], sizes = [2, 64], strides = [1, 1]} : vector<16x128xf32> to vector<2x64xf32>
    %331 = tpu.concatenate %323, %324, %325, %326, %327, %328, %329, %330 in 0 : vector<2x64xf32>, vector<2x64xf32>, vector<2x64xf32>, vector<2x64xf32>, vector<2x64xf32>, vector<2x64xf32>, vector<2x64xf32>, vector<2x64xf32> -> vector<16x64xf32>
    %332 = vector.extract_strided_slice %322 {offsets = [0, 0], sizes = [16, 64], strides = [1, 1]} : vector<16x128xf32> to vector<16x64xf32>
    %333 = tpu.concatenate %332, %331 in 1 : vector<16x64xf32>, vector<16x64xf32> -> vector<16x128xf32>
    %cst_65 = arith.constant 0.000000e+00 : f32
    %334 = vector.broadcast %cst_65 : f32 to vector<2x32xf32>
    %cst_66 = arith.constant 0.000000e+00 : f32
    %335 = vector.broadcast %cst_66 : f32 to vector<2x16xf32>
    %cst_67 = arith.constant 0.000000e+00 : f32
    %336 = vector.broadcast %cst_67 : f32 to vector<2x16xf32>
    %337 = vector.extract_strided_slice %333 {offsets = [0, 0], sizes = [2, 128], strides = [1, 1]} : vector<16x128xf32> to vector<2x128xf32>
    %cst_68 = arith.constant dense<0.000000e+00> : vector<2x128xf32>
    %338 = tpu.matmul %334, %321, %cst_68 {dimension_numbers = #tpu.dot_dimension_numbers<[1], [0], [0], [1], [0, 0, 1, 1], [], []>} : vector<2x32xf32>, vector<32x128xf32>, vector<2x128xf32> -> vector<2x128xf32>
    %339 = arith.addf %337, %338 : vector<2x128xf32>
    %340 = vector.extract_strided_slice %339 {offsets = [0, 0], sizes = [2, 16], strides = [1, 1]} : vector<2x128xf32> to vector<2x16xf32>
    %cst_69 = arith.constant 5.000000e-01 : f32
    %341 = vector.broadcast %cst_69 : f32 to vector<2x16xf32>
    %342 = arith.mulf %341, %340 : vector<2x16xf32>
    %343 = math.tanh %342 : vector<2x16xf32>
    %cst_70 = arith.constant 1.000000e+00 : f32
    %344 = vector.broadcast %cst_70 : f32 to vector<2x16xf32>
    %345 = arith.addf %343, %344 : vector<2x16xf32>
    %cst_71 = arith.constant 5.000000e-01 : f32
    %346 = vector.broadcast %cst_71 : f32 to vector<2x16xf32>
    %347 = arith.mulf %346, %345 : vector<2x16xf32>
    %348 = vector.extract_strided_slice %339 {offsets = [0, 16], sizes = [2, 16], strides = [1, 1]} : vector<2x128xf32> to vector<2x16xf32>
    %cst_72 = arith.constant 5.000000e-01 : f32
    %349 = vector.broadcast %cst_72 : f32 to vector<2x16xf32>
    %350 = arith.mulf %349, %348 : vector<2x16xf32>
    %351 = math.tanh %350 : vector<2x16xf32>
    %cst_73 = arith.constant 1.000000e+00 : f32
    %352 = vector.broadcast %cst_73 : f32 to vector<2x16xf32>
    %353 = arith.addf %351, %352 : vector<2x16xf32>
    %cst_74 = arith.constant 5.000000e-01 : f32
    %354 = vector.broadcast %cst_74 : f32 to vector<2x16xf32>
    %355 = arith.mulf %354, %353 : vector<2x16xf32>
    %356 = vector.extract_strided_slice %339 {offsets = [0, 32], sizes = [2, 16], strides = [1, 1]} : vector<2x128xf32> to vector<2x16xf32>
    %357 = math.tanh %356 : vector<2x16xf32>
    %358 = vector.extract_strided_slice %339 {offsets = [0, 48], sizes = [2, 16], strides = [1, 1]} : vector<2x128xf32> to vector<2x16xf32>
    %cst_75 = arith.constant 5.000000e-01 : f32
    %359 = vector.broadcast %cst_75 : f32 to vector<2x16xf32>
    %360 = arith.mulf %359, %358 : vector<2x16xf32>
    %361 = math.tanh %360 : vector<2x16xf32>
    %cst_76 = arith.constant 1.000000e+00 : f32
    %362 = vector.broadcast %cst_76 : f32 to vector<2x16xf32>
    %363 = arith.addf %361, %362 : vector<2x16xf32>
    %cst_77 = arith.constant 5.000000e-01 : f32
    %364 = vector.broadcast %cst_77 : f32 to vector<2x16xf32>
    %365 = arith.mulf %364, %363 : vector<2x16xf32>
    %366 = arith.mulf %355, %335 : vector<2x16xf32>
    %367 = arith.mulf %347, %357 : vector<2x16xf32>
    %368 = arith.addf %366, %367 : vector<2x16xf32>
    %369 = math.tanh %368 : vector<2x16xf32>
    %370 = arith.mulf %365, %369 : vector<2x16xf32>
    %371 = vector.extract_strided_slice %339 {offsets = [0, 64], sizes = [2, 16], strides = [1, 1]} : vector<2x128xf32> to vector<2x16xf32>
    %cst_78 = arith.constant 5.000000e-01 : f32
    %372 = vector.broadcast %cst_78 : f32 to vector<2x16xf32>
    %373 = arith.mulf %372, %371 : vector<2x16xf32>
    %374 = math.tanh %373 : vector<2x16xf32>
    %cst_79 = arith.constant 1.000000e+00 : f32
    %375 = vector.broadcast %cst_79 : f32 to vector<2x16xf32>
    %376 = arith.addf %374, %375 : vector<2x16xf32>
    %cst_80 = arith.constant 5.000000e-01 : f32
    %377 = vector.broadcast %cst_80 : f32 to vector<2x16xf32>
    %378 = arith.mulf %377, %376 : vector<2x16xf32>
    %379 = vector.extract_strided_slice %339 {offsets = [0, 80], sizes = [2, 16], strides = [1, 1]} : vector<2x128xf32> to vector<2x16xf32>
    %cst_81 = arith.constant 5.000000e-01 : f32
    %380 = vector.broadcast %cst_81 : f32 to vector<2x16xf32>
    %381 = arith.mulf %380, %379 : vector<2x16xf32>
    %382 = math.tanh %381 : vector<2x16xf32>
    %cst_82 = arith.constant 1.000000e+00 : f32
    %383 = vector.broadcast %cst_82 : f32 to vector<2x16xf32>
    %384 = arith.addf %382, %383 : vector<2x16xf32>
    %cst_83 = arith.constant 5.000000e-01 : f32
    %385 = vector.broadcast %cst_83 : f32 to vector<2x16xf32>
    %386 = arith.mulf %385, %384 : vector<2x16xf32>
    %387 = vector.extract_strided_slice %339 {offsets = [0, 96], sizes = [2, 16], strides = [1, 1]} : vector<2x128xf32> to vector<2x16xf32>
    %388 = math.tanh %387 : vector<2x16xf32>
    %389 = vector.extract_strided_slice %339 {offsets = [0, 112], sizes = [2, 16], strides = [1, 1]} : vector<2x128xf32> to vector<2x16xf32>
    %cst_84 = arith.constant 5.000000e-01 : f32
    %390 = vector.broadcast %cst_84 : f32 to vector<2x16xf32>
    %391 = arith.mulf %390, %389 : vector<2x16xf32>
    %392 = math.tanh %391 : vector<2x16xf32>
    %cst_85 = arith.constant 1.000000e+00 : f32
    %393 = vector.broadcast %cst_85 : f32 to vector<2x16xf32>
    %394 = arith.addf %392, %393 : vector<2x16xf32>
    %cst_86 = arith.constant 5.000000e-01 : f32
    %395 = vector.broadcast %cst_86 : f32 to vector<2x16xf32>
    %396 = arith.mulf %395, %394 : vector<2x16xf32>
    %397 = arith.mulf %386, %336 : vector<2x16xf32>
    %398 = arith.mulf %378, %388 : vector<2x16xf32>
    %399 = arith.addf %397, %398 : vector<2x16xf32>
    %400 = math.tanh %399 : vector<2x16xf32>
    %401 = arith.mulf %396, %400 : vector<2x16xf32>
    %402 = tpu.concatenate %370, %401 in 1 : vector<2x16xf32>, vector<2x16xf32> -> vector<2x32xf32>
    %403 = vector.extract_strided_slice %333 {offsets = [2, 0], sizes = [2, 128], strides = [1, 1]} : vector<16x128xf32> to vector<2x128xf32>
    %cst_87 = arith.constant dense<0.000000e+00> : vector<2x128xf32>
    %404 = tpu.matmul %402, %321, %cst_87 {dimension_numbers = #tpu.dot_dimension_numbers<[1], [0], [0], [1], [0, 0, 1, 1], [], []>} : vector<2x32xf32>, vector<32x128xf32>, vector<2x128xf32> -> vector<2x128xf32>
    %405 = arith.addf %403, %404 : vector<2x128xf32>
    %406 = vector.extract_strided_slice %405 {offsets = [0, 0], sizes = [2, 16], strides = [1, 1]} : vector<2x128xf32> to vector<2x16xf32>
    %cst_88 = arith.constant 5.000000e-01 : f32
    %407 = vector.broadcast %cst_88 : f32 to vector<2x16xf32>
    %408 = arith.mulf %407, %406 : vector<2x16xf32>
    %409 = math.tanh %408 : vector<2x16xf32>
    %cst_89 = arith.constant 1.000000e+00 : f32
    %410 = vector.broadcast %cst_89 : f32 to vector<2x16xf32>
    %411 = arith.addf %409, %410 : vector<2x16xf32>
    %cst_90 = arith.constant 5.000000e-01 : f32
    %412 = vector.broadcast %cst_90 : f32 to vector<2x16xf32>
    %413 = arith.mulf %412, %411 : vector<2x16xf32>
    %414 = vector.extract_strided_slice %405 {offsets = [0, 16], sizes = [2, 16], strides = [1, 1]} : vector<2x128xf32> to vector<2x16xf32>
    %cst_91 = arith.constant 5.000000e-01 : f32
    %415 = vector.broadcast %cst_91 : f32 to vector<2x16xf32>
    %416 = arith.mulf %415, %414 : vector<2x16xf32>
    %417 = math.tanh %416 : vector<2x16xf32>
    %cst_92 = arith.constant 1.000000e+00 : f32
    %418 = vector.broadcast %cst_92 : f32 to vector<2x16xf32>
    %419 = arith.addf %417, %418 : vector<2x16xf32>
    %cst_93 = arith.constant 5.000000e-01 : f32
    %420 = vector.broadcast %cst_93 : f32 to vector<2x16xf32>
    %421 = arith.mulf %420, %419 : vector<2x16xf32>
    %422 = vector.extract_strided_slice %405 {offsets = [0, 32], sizes = [2, 16], strides = [1, 1]} : vector<2x128xf32> to vector<2x16xf32>
    %423 = math.tanh %422 : vector<2x16xf32>
    %424 = vector.extract_strided_slice %405 {offsets = [0, 48], sizes = [2, 16], strides = [1, 1]} : vector<2x128xf32> to vector<2x16xf32>
    %cst_94 = arith.constant 5.000000e-01 : f32
    %425 = vector.broadcast %cst_94 : f32 to vector<2x16xf32>
    %426 = arith.mulf %425, %424 : vector<2x16xf32>
    %427 = math.tanh %426 : vector<2x16xf32>
    %cst_95 = arith.constant 1.000000e+00 : f32
    %428 = vector.broadcast %cst_95 : f32 to vector<2x16xf32>
    %429 = arith.addf %427, %428 : vector<2x16xf32>
    %cst_96 = arith.constant 5.000000e-01 : f32
    %430 = vector.broadcast %cst_96 : f32 to vector<2x16xf32>
    %431 = arith.mulf %430, %429 : vector<2x16xf32>
    %432 = arith.mulf %421, %368 : vector<2x16xf32>
    %433 = arith.mulf %413, %423 : vector<2x16xf32>
    %434 = arith.addf %432, %433 : vector<2x16xf32>
    %435 = math.tanh %434 : vector<2x16xf32>
    %436 = arith.mulf %431, %435 : vector<2x16xf32>
    %437 = vector.extract_strided_slice %405 {offsets = [0, 64], sizes = [2, 16], strides = [1, 1]} : vector<2x128xf32> to vector<2x16xf32>
    %cst_97 = arith.constant 5.000000e-01 : f32
    %438 = vector.broadcast %cst_97 : f32 to vector<2x16xf32>
    %439 = arith.mulf %438, %437 : vector<2x16xf32>
    %440 = math.tanh %439 : vector<2x16xf32>
    %cst_98 = arith.constant 1.000000e+00 : f32
    %441 = vector.broadcast %cst_98 : f32 to vector<2x16xf32>
    %442 = arith.addf %440, %441 : vector<2x16xf32>
    %cst_99 = arith.constant 5.000000e-01 : f32
    %443 = vector.broadcast %cst_99 : f32 to vector<2x16xf32>
    %444 = arith.mulf %443, %442 : vector<2x16xf32>
    %445 = vector.extract_strided_slice %405 {offsets = [0, 80], sizes = [2, 16], strides = [1, 1]} : vector<2x128xf32> to vector<2x16xf32>
    %cst_100 = arith.constant 5.000000e-01 : f32
    %446 = vector.broadcast %cst_100 : f32 to vector<2x16xf32>
    %447 = arith.mulf %446, %445 : vector<2x16xf32>
    %448 = math.tanh %447 : vector<2x16xf32>
    %cst_101 = arith.constant 1.000000e+00 : f32
    %449 = vector.broadcast %cst_101 : f32 to vector<2x16xf32>
    %450 = arith.addf %448, %449 : vector<2x16xf32>
    %cst_102 = arith.constant 5.000000e-01 : f32
    %451 = vector.broadcast %cst_102 : f32 to vector<2x16xf32>
    %452 = arith.mulf %451, %450 : vector<2x16xf32>
    %453 = vector.extract_strided_slice %405 {offsets = [0, 96], sizes = [2, 16], strides = [1, 1]} : vector<2x128xf32> to vector<2x16xf32>
    %454 = math.tanh %453 : vector<2x16xf32>
    %455 = vector.extract_strided_slice %405 {offsets = [0, 112], sizes = [2, 16], strides = [1, 1]} : vector<2x128xf32> to vector<2x16xf32>
    %cst_103 = arith.constant 5.000000e-01 : f32
    %456 = vector.broadcast %cst_103 : f32 to vector<2x16xf32>
    %457 = arith.mulf %456, %455 : vector<2x16xf32>
    %458 = math.tanh %457 : vector<2x16xf32>
    %cst_104 = arith.constant 1.000000e+00 : f32
    %459 = vector.broadcast %cst_104 : f32 to vector<2x16xf32>
    %460 = arith.addf %458, %459 : vector<2x16xf32>
    %cst_105 = arith.constant 5.000000e-01 : f32
    %461 = vector.broadcast %cst_105 : f32 to vector<2x16xf32>
    %462 = arith.mulf %461, %460 : vector<2x16xf32>
    %463 = arith.mulf %452, %399 : vector<2x16xf32>
    %464 = arith.mulf %444, %454 : vector<2x16xf32>
    %465 = arith.addf %463, %464 : vector<2x16xf32>
    %466 = math.tanh %465 : vector<2x16xf32>
    %467 = arith.mulf %462, %466 : vector<2x16xf32>
    %468 = tpu.concatenate %436, %467 in 1 : vector<2x16xf32>, vector<2x16xf32> -> vector<2x32xf32>
    %469 = vector.extract_strided_slice %333 {offsets = [4, 0], sizes = [2, 128], strides = [1, 1]} : vector<16x128xf32> to vector<2x128xf32>
    %cst_106 = arith.constant dense<0.000000e+00> : vector<2x128xf32>
    %470 = tpu.matmul %468, %321, %cst_106 {dimension_numbers = #tpu.dot_dimension_numbers<[1], [0], [0], [1], [0, 0, 1, 1], [], []>} : vector<2x32xf32>, vector<32x128xf32>, vector<2x128xf32> -> vector<2x128xf32>
    %471 = arith.addf %469, %470 : vector<2x128xf32>
    %472 = vector.extract_strided_slice %471 {offsets = [0, 0], sizes = [2, 16], strides = [1, 1]} : vector<2x128xf32> to vector<2x16xf32>
    %cst_107 = arith.constant 5.000000e-01 : f32
    %473 = vector.broadcast %cst_107 : f32 to vector<2x16xf32>
    %474 = arith.mulf %473, %472 : vector<2x16xf32>
    %475 = math.tanh %474 : vector<2x16xf32>
    %cst_108 = arith.constant 1.000000e+00 : f32
    %476 = vector.broadcast %cst_108 : f32 to vector<2x16xf32>
    %477 = arith.addf %475, %476 : vector<2x16xf32>
    %cst_109 = arith.constant 5.000000e-01 : f32
    %478 = vector.broadcast %cst_109 : f32 to vector<2x16xf32>
    %479 = arith.mulf %478, %477 : vector<2x16xf32>
    %480 = vector.extract_strided_slice %471 {offsets = [0, 16], sizes = [2, 16], strides = [1, 1]} : vector<2x128xf32> to vector<2x16xf32>
    %cst_110 = arith.constant 5.000000e-01 : f32
    %481 = vector.broadcast %cst_110 : f32 to vector<2x16xf32>
    %482 = arith.mulf %481, %480 : vector<2x16xf32>
    %483 = math.tanh %482 : vector<2x16xf32>
    %cst_111 = arith.constant 1.000000e+00 : f32
    %484 = vector.broadcast %cst_111 : f32 to vector<2x16xf32>
    %485 = arith.addf %483, %484 : vector<2x16xf32>
    %cst_112 = arith.constant 5.000000e-01 : f32
    %486 = vector.broadcast %cst_112 : f32 to vector<2x16xf32>
    %487 = arith.mulf %486, %485 : vector<2x16xf32>
    %488 = vector.extract_strided_slice %471 {offsets = [0, 32], sizes = [2, 16], strides = [1, 1]} : vector<2x128xf32> to vector<2x16xf32>
    %489 = math.tanh %488 : vector<2x16xf32>
    %490 = vector.extract_strided_slice %471 {offsets = [0, 48], sizes = [2, 16], strides = [1, 1]} : vector<2x128xf32> to vector<2x16xf32>
    %cst_113 = arith.constant 5.000000e-01 : f32
    %491 = vector.broadcast %cst_113 : f32 to vector<2x16xf32>
    %492 = arith.mulf %491, %490 : vector<2x16xf32>
    %493 = math.tanh %492 : vector<2x16xf32>
    %cst_114 = arith.constant 1.000000e+00 : f32
    %494 = vector.broadcast %cst_114 : f32 to vector<2x16xf32>
    %495 = arith.addf %493, %494 : vector<2x16xf32>
    %cst_115 = arith.constant 5.000000e-01 : f32
    %496 = vector.broadcast %cst_115 : f32 to vector<2x16xf32>
    %497 = arith.mulf %496, %495 : vector<2x16xf32>
    %498 = arith.mulf %487, %434 : vector<2x16xf32>
    %499 = arith.mulf %479, %489 : vector<2x16xf32>
    %500 = arith.addf %498, %499 : vector<2x16xf32>
    %501 = math.tanh %500 : vector<2x16xf32>
    %502 = arith.mulf %497, %501 : vector<2x16xf32>
    %503 = vector.extract_strided_slice %471 {offsets = [0, 64], sizes = [2, 16], strides = [1, 1]} : vector<2x128xf32> to vector<2x16xf32>
    %cst_116 = arith.constant 5.000000e-01 : f32
    %504 = vector.broadcast %cst_116 : f32 to vector<2x16xf32>
    %505 = arith.mulf %504, %503 : vector<2x16xf32>
    %506 = math.tanh %505 : vector<2x16xf32>
    %cst_117 = arith.constant 1.000000e+00 : f32
    %507 = vector.broadcast %cst_117 : f32 to vector<2x16xf32>
    %508 = arith.addf %506, %507 : vector<2x16xf32>
    %cst_118 = arith.constant 5.000000e-01 : f32
    %509 = vector.broadcast %cst_118 : f32 to vector<2x16xf32>
    %510 = arith.mulf %509, %508 : vector<2x16xf32>
    %511 = vector.extract_strided_slice %471 {offsets = [0, 80], sizes = [2, 16], strides = [1, 1]} : vector<2x128xf32> to vector<2x16xf32>
    %cst_119 = arith.constant 5.000000e-01 : f32
    %512 = vector.broadcast %cst_119 : f32 to vector<2x16xf32>
    %513 = arith.mulf %512, %511 : vector<2x16xf32>
    %514 = math.tanh %513 : vector<2x16xf32>
    %cst_120 = arith.constant 1.000000e+00 : f32
    %515 = vector.broadcast %cst_120 : f32 to vector<2x16xf32>
    %516 = arith.addf %514, %515 : vector<2x16xf32>
    %cst_121 = arith.constant 5.000000e-01 : f32
    %517 = vector.broadcast %cst_121 : f32 to vector<2x16xf32>
    %518 = arith.mulf %517, %516 : vector<2x16xf32>
    %519 = vector.extract_strided_slice %471 {offsets = [0, 96], sizes = [2, 16], strides = [1, 1]} : vector<2x128xf32> to vector<2x16xf32>
    %520 = math.tanh %519 : vector<2x16xf32>
    %521 = vector.extract_strided_slice %471 {offsets = [0, 112], sizes = [2, 16], strides = [1, 1]} : vector<2x128xf32> to vector<2x16xf32>
    %cst_122 = arith.constant 5.000000e-01 : f32
    %522 = vector.broadcast %cst_122 : f32 to vector<2x16xf32>
    %523 = arith.mulf %522, %521 : vector<2x16xf32>
    %524 = math.tanh %523 : vector<2x16xf32>
    %cst_123 = arith.constant 1.000000e+00 : f32
    %525 = vector.broadcast %cst_123 : f32 to vector<2x16xf32>
    %526 = arith.addf %524, %525 : vector<2x16xf32>
    %cst_124 = arith.constant 5.000000e-01 : f32
    %527 = vector.broadcast %cst_124 : f32 to vector<2x16xf32>
    %528 = arith.mulf %527, %526 : vector<2x16xf32>
    %529 = arith.mulf %518, %465 : vector<2x16xf32>
    %530 = arith.mulf %510, %520 : vector<2x16xf32>
    %531 = arith.addf %529, %530 : vector<2x16xf32>
    %532 = math.tanh %531 : vector<2x16xf32>
    %533 = arith.mulf %528, %532 : vector<2x16xf32>
    %534 = tpu.concatenate %502, %533 in 1 : vector<2x16xf32>, vector<2x16xf32> -> vector<2x32xf32>
    %535 = vector.extract_strided_slice %333 {offsets = [6, 0], sizes = [2, 128], strides = [1, 1]} : vector<16x128xf32> to vector<2x128xf32>
    %cst_125 = arith.constant dense<0.000000e+00> : vector<2x128xf32>
    %536 = tpu.matmul %534, %321, %cst_125 {dimension_numbers = #tpu.dot_dimension_numbers<[1], [0], [0], [1], [0, 0, 1, 1], [], []>} : vector<2x32xf32>, vector<32x128xf32>, vector<2x128xf32> -> vector<2x128xf32>
    %537 = arith.addf %535, %536 : vector<2x128xf32>
    %538 = vector.extract_strided_slice %537 {offsets = [0, 0], sizes = [2, 16], strides = [1, 1]} : vector<2x128xf32> to vector<2x16xf32>
    %cst_126 = arith.constant 5.000000e-01 : f32
    %539 = vector.broadcast %cst_126 : f32 to vector<2x16xf32>
    %540 = arith.mulf %539, %538 : vector<2x16xf32>
    %541 = math.tanh %540 : vector<2x16xf32>
    %cst_127 = arith.constant 1.000000e+00 : f32
    %542 = vector.broadcast %cst_127 : f32 to vector<2x16xf32>
    %543 = arith.addf %541, %542 : vector<2x16xf32>
    %cst_128 = arith.constant 5.000000e-01 : f32
    %544 = vector.broadcast %cst_128 : f32 to vector<2x16xf32>
    %545 = arith.mulf %544, %543 : vector<2x16xf32>
    %546 = vector.extract_strided_slice %537 {offsets = [0, 16], sizes = [2, 16], strides = [1, 1]} : vector<2x128xf32> to vector<2x16xf32>
    %cst_129 = arith.constant 5.000000e-01 : f32
    %547 = vector.broadcast %cst_129 : f32 to vector<2x16xf32>
    %548 = arith.mulf %547, %546 : vector<2x16xf32>
    %549 = math.tanh %548 : vector<2x16xf32>
    %cst_130 = arith.constant 1.000000e+00 : f32
    %550 = vector.broadcast %cst_130 : f32 to vector<2x16xf32>
    %551 = arith.addf %549, %550 : vector<2x16xf32>
    %cst_131 = arith.constant 5.000000e-01 : f32
    %552 = vector.broadcast %cst_131 : f32 to vector<2x16xf32>
    %553 = arith.mulf %552, %551 : vector<2x16xf32>
    %554 = vector.extract_strided_slice %537 {offsets = [0, 32], sizes = [2, 16], strides = [1, 1]} : vector<2x128xf32> to vector<2x16xf32>
    %555 = math.tanh %554 : vector<2x16xf32>
    %556 = vector.extract_strided_slice %537 {offsets = [0, 48], sizes = [2, 16], strides = [1, 1]} : vector<2x128xf32> to vector<2x16xf32>
    %cst_132 = arith.constant 5.000000e-01 : f32
    %557 = vector.broadcast %cst_132 : f32 to vector<2x16xf32>
    %558 = arith.mulf %557, %556 : vector<2x16xf32>
    %559 = math.tanh %558 : vector<2x16xf32>
    %cst_133 = arith.constant 1.000000e+00 : f32
    %560 = vector.broadcast %cst_133 : f32 to vector<2x16xf32>
    %561 = arith.addf %559, %560 : vector<2x16xf32>
    %cst_134 = arith.constant 5.000000e-01 : f32
    %562 = vector.broadcast %cst_134 : f32 to vector<2x16xf32>
    %563 = arith.mulf %562, %561 : vector<2x16xf32>
    %564 = arith.mulf %553, %500 : vector<2x16xf32>
    %565 = arith.mulf %545, %555 : vector<2x16xf32>
    %566 = arith.addf %564, %565 : vector<2x16xf32>
    %567 = math.tanh %566 : vector<2x16xf32>
    %568 = arith.mulf %563, %567 : vector<2x16xf32>
    %569 = vector.extract_strided_slice %537 {offsets = [0, 64], sizes = [2, 16], strides = [1, 1]} : vector<2x128xf32> to vector<2x16xf32>
    %cst_135 = arith.constant 5.000000e-01 : f32
    %570 = vector.broadcast %cst_135 : f32 to vector<2x16xf32>
    %571 = arith.mulf %570, %569 : vector<2x16xf32>
    %572 = math.tanh %571 : vector<2x16xf32>
    %cst_136 = arith.constant 1.000000e+00 : f32
    %573 = vector.broadcast %cst_136 : f32 to vector<2x16xf32>
    %574 = arith.addf %572, %573 : vector<2x16xf32>
    %cst_137 = arith.constant 5.000000e-01 : f32
    %575 = vector.broadcast %cst_137 : f32 to vector<2x16xf32>
    %576 = arith.mulf %575, %574 : vector<2x16xf32>
    %577 = vector.extract_strided_slice %537 {offsets = [0, 80], sizes = [2, 16], strides = [1, 1]} : vector<2x128xf32> to vector<2x16xf32>
    %cst_138 = arith.constant 5.000000e-01 : f32
    %578 = vector.broadcast %cst_138 : f32 to vector<2x16xf32>
    %579 = arith.mulf %578, %577 : vector<2x16xf32>
    %580 = math.tanh %579 : vector<2x16xf32>
    %cst_139 = arith.constant 1.000000e+00 : f32
    %581 = vector.broadcast %cst_139 : f32 to vector<2x16xf32>
    %582 = arith.addf %580, %581 : vector<2x16xf32>
    %cst_140 = arith.constant 5.000000e-01 : f32
    %583 = vector.broadcast %cst_140 : f32 to vector<2x16xf32>
    %584 = arith.mulf %583, %582 : vector<2x16xf32>
    %585 = vector.extract_strided_slice %537 {offsets = [0, 96], sizes = [2, 16], strides = [1, 1]} : vector<2x128xf32> to vector<2x16xf32>
    %586 = math.tanh %585 : vector<2x16xf32>
    %587 = vector.extract_strided_slice %537 {offsets = [0, 112], sizes = [2, 16], strides = [1, 1]} : vector<2x128xf32> to vector<2x16xf32>
    %cst_141 = arith.constant 5.000000e-01 : f32
    %588 = vector.broadcast %cst_141 : f32 to vector<2x16xf32>
    %589 = arith.mulf %588, %587 : vector<2x16xf32>
    %590 = math.tanh %589 : vector<2x16xf32>
    %cst_142 = arith.constant 1.000000e+00 : f32
    %591 = vector.broadcast %cst_142 : f32 to vector<2x16xf32>
    %592 = arith.addf %590, %591 : vector<2x16xf32>
    %cst_143 = arith.constant 5.000000e-01 : f32
    %593 = vector.broadcast %cst_143 : f32 to vector<2x16xf32>
    %594 = arith.mulf %593, %592 : vector<2x16xf32>
    %595 = arith.mulf %584, %531 : vector<2x16xf32>
    %596 = arith.mulf %576, %586 : vector<2x16xf32>
    %597 = arith.addf %595, %596 : vector<2x16xf32>
    %598 = math.tanh %597 : vector<2x16xf32>
    %599 = arith.mulf %594, %598 : vector<2x16xf32>
    %600 = tpu.concatenate %568, %599 in 1 : vector<2x16xf32>, vector<2x16xf32> -> vector<2x32xf32>
    %601 = vector.extract_strided_slice %333 {offsets = [8, 0], sizes = [2, 128], strides = [1, 1]} : vector<16x128xf32> to vector<2x128xf32>
    %cst_144 = arith.constant dense<0.000000e+00> : vector<2x128xf32>
    %602 = tpu.matmul %600, %321, %cst_144 {dimension_numbers = #tpu.dot_dimension_numbers<[1], [0], [0], [1], [0, 0, 1, 1], [], []>} : vector<2x32xf32>, vector<32x128xf32>, vector<2x128xf32> -> vector<2x128xf32>
    %603 = arith.addf %601, %602 : vector<2x128xf32>
    %604 = vector.extract_strided_slice %603 {offsets = [0, 0], sizes = [2, 16], strides = [1, 1]} : vector<2x128xf32> to vector<2x16xf32>
    %cst_145 = arith.constant 5.000000e-01 : f32
    %605 = vector.broadcast %cst_145 : f32 to vector<2x16xf32>
    %606 = arith.mulf %605, %604 : vector<2x16xf32>
    %607 = math.tanh %606 : vector<2x16xf32>
    %cst_146 = arith.constant 1.000000e+00 : f32
    %608 = vector.broadcast %cst_146 : f32 to vector<2x16xf32>
    %609 = arith.addf %607, %608 : vector<2x16xf32>
    %cst_147 = arith.constant 5.000000e-01 : f32
    %610 = vector.broadcast %cst_147 : f32 to vector<2x16xf32>
    %611 = arith.mulf %610, %609 : vector<2x16xf32>
    %612 = vector.extract_strided_slice %603 {offsets = [0, 16], sizes = [2, 16], strides = [1, 1]} : vector<2x128xf32> to vector<2x16xf32>
    %cst_148 = arith.constant 5.000000e-01 : f32
    %613 = vector.broadcast %cst_148 : f32 to vector<2x16xf32>
    %614 = arith.mulf %613, %612 : vector<2x16xf32>
    %615 = math.tanh %614 : vector<2x16xf32>
    %cst_149 = arith.constant 1.000000e+00 : f32
    %616 = vector.broadcast %cst_149 : f32 to vector<2x16xf32>
    %617 = arith.addf %615, %616 : vector<2x16xf32>
    %cst_150 = arith.constant 5.000000e-01 : f32
    %618 = vector.broadcast %cst_150 : f32 to vector<2x16xf32>
    %619 = arith.mulf %618, %617 : vector<2x16xf32>
    %620 = vector.extract_strided_slice %603 {offsets = [0, 32], sizes = [2, 16], strides = [1, 1]} : vector<2x128xf32> to vector<2x16xf32>
    %621 = math.tanh %620 : vector<2x16xf32>
    %622 = vector.extract_strided_slice %603 {offsets = [0, 48], sizes = [2, 16], strides = [1, 1]} : vector<2x128xf32> to vector<2x16xf32>
    %cst_151 = arith.constant 5.000000e-01 : f32
    %623 = vector.broadcast %cst_151 : f32 to vector<2x16xf32>
    %624 = arith.mulf %623, %622 : vector<2x16xf32>
    %625 = math.tanh %624 : vector<2x16xf32>
    %cst_152 = arith.constant 1.000000e+00 : f32
    %626 = vector.broadcast %cst_152 : f32 to vector<2x16xf32>
    %627 = arith.addf %625, %626 : vector<2x16xf32>
    %cst_153 = arith.constant 5.000000e-01 : f32
    %628 = vector.broadcast %cst_153 : f32 to vector<2x16xf32>
    %629 = arith.mulf %628, %627 : vector<2x16xf32>
    %630 = arith.mulf %619, %566 : vector<2x16xf32>
    %631 = arith.mulf %611, %621 : vector<2x16xf32>
    %632 = arith.addf %630, %631 : vector<2x16xf32>
    %633 = math.tanh %632 : vector<2x16xf32>
    %634 = arith.mulf %629, %633 : vector<2x16xf32>
    %635 = vector.extract_strided_slice %603 {offsets = [0, 64], sizes = [2, 16], strides = [1, 1]} : vector<2x128xf32> to vector<2x16xf32>
    %cst_154 = arith.constant 5.000000e-01 : f32
    %636 = vector.broadcast %cst_154 : f32 to vector<2x16xf32>
    %637 = arith.mulf %636, %635 : vector<2x16xf32>
    %638 = math.tanh %637 : vector<2x16xf32>
    %cst_155 = arith.constant 1.000000e+00 : f32
    %639 = vector.broadcast %cst_155 : f32 to vector<2x16xf32>
    %640 = arith.addf %638, %639 : vector<2x16xf32>
    %cst_156 = arith.constant 5.000000e-01 : f32
    %641 = vector.broadcast %cst_156 : f32 to vector<2x16xf32>
    %642 = arith.mulf %641, %640 : vector<2x16xf32>
    %643 = vector.extract_strided_slice %603 {offsets = [0, 80], sizes = [2, 16], strides = [1, 1]} : vector<2x128xf32> to vector<2x16xf32>
    %cst_157 = arith.constant 5.000000e-01 : f32
    %644 = vector.broadcast %cst_157 : f32 to vector<2x16xf32>
    %645 = arith.mulf %644, %643 : vector<2x16xf32>
    %646 = math.tanh %645 : vector<2x16xf32>
    %cst_158 = arith.constant 1.000000e+00 : f32
    %647 = vector.broadcast %cst_158 : f32 to vector<2x16xf32>
    %648 = arith.addf %646, %647 : vector<2x16xf32>
    %cst_159 = arith.constant 5.000000e-01 : f32
    %649 = vector.broadcast %cst_159 : f32 to vector<2x16xf32>
    %650 = arith.mulf %649, %648 : vector<2x16xf32>
    %651 = vector.extract_strided_slice %603 {offsets = [0, 96], sizes = [2, 16], strides = [1, 1]} : vector<2x128xf32> to vector<2x16xf32>
    %652 = math.tanh %651 : vector<2x16xf32>
    %653 = vector.extract_strided_slice %603 {offsets = [0, 112], sizes = [2, 16], strides = [1, 1]} : vector<2x128xf32> to vector<2x16xf32>
    %cst_160 = arith.constant 5.000000e-01 : f32
    %654 = vector.broadcast %cst_160 : f32 to vector<2x16xf32>
    %655 = arith.mulf %654, %653 : vector<2x16xf32>
    %656 = math.tanh %655 : vector<2x16xf32>
    %cst_161 = arith.constant 1.000000e+00 : f32
    %657 = vector.broadcast %cst_161 : f32 to vector<2x16xf32>
    %658 = arith.addf %656, %657 : vector<2x16xf32>
    %cst_162 = arith.constant 5.000000e-01 : f32
    %659 = vector.broadcast %cst_162 : f32 to vector<2x16xf32>
    %660 = arith.mulf %659, %658 : vector<2x16xf32>
    %661 = arith.mulf %650, %597 : vector<2x16xf32>
    %662 = arith.mulf %642, %652 : vector<2x16xf32>
    %663 = arith.addf %661, %662 : vector<2x16xf32>
    %664 = math.tanh %663 : vector<2x16xf32>
    %665 = arith.mulf %660, %664 : vector<2x16xf32>
    %666 = tpu.concatenate %634, %665 in 1 : vector<2x16xf32>, vector<2x16xf32> -> vector<2x32xf32>
    %667 = vector.extract_strided_slice %333 {offsets = [10, 0], sizes = [2, 128], strides = [1, 1]} : vector<16x128xf32> to vector<2x128xf32>
    %cst_163 = arith.constant dense<0.000000e+00> : vector<2x128xf32>
    %668 = tpu.matmul %666, %321, %cst_163 {dimension_numbers = #tpu.dot_dimension_numbers<[1], [0], [0], [1], [0, 0, 1, 1], [], []>} : vector<2x32xf32>, vector<32x128xf32>, vector<2x128xf32> -> vector<2x128xf32>
    %669 = arith.addf %667, %668 : vector<2x128xf32>
    %670 = vector.extract_strided_slice %669 {offsets = [0, 0], sizes = [2, 16], strides = [1, 1]} : vector<2x128xf32> to vector<2x16xf32>
    %cst_164 = arith.constant 5.000000e-01 : f32
    %671 = vector.broadcast %cst_164 : f32 to vector<2x16xf32>
    %672 = arith.mulf %671, %670 : vector<2x16xf32>
    %673 = math.tanh %672 : vector<2x16xf32>
    %cst_165 = arith.constant 1.000000e+00 : f32
    %674 = vector.broadcast %cst_165 : f32 to vector<2x16xf32>
    %675 = arith.addf %673, %674 : vector<2x16xf32>
    %cst_166 = arith.constant 5.000000e-01 : f32
    %676 = vector.broadcast %cst_166 : f32 to vector<2x16xf32>
    %677 = arith.mulf %676, %675 : vector<2x16xf32>
    %678 = vector.extract_strided_slice %669 {offsets = [0, 16], sizes = [2, 16], strides = [1, 1]} : vector<2x128xf32> to vector<2x16xf32>
    %cst_167 = arith.constant 5.000000e-01 : f32
    %679 = vector.broadcast %cst_167 : f32 to vector<2x16xf32>
    %680 = arith.mulf %679, %678 : vector<2x16xf32>
    %681 = math.tanh %680 : vector<2x16xf32>
    %cst_168 = arith.constant 1.000000e+00 : f32
    %682 = vector.broadcast %cst_168 : f32 to vector<2x16xf32>
    %683 = arith.addf %681, %682 : vector<2x16xf32>
    %cst_169 = arith.constant 5.000000e-01 : f32
    %684 = vector.broadcast %cst_169 : f32 to vector<2x16xf32>
    %685 = arith.mulf %684, %683 : vector<2x16xf32>
    %686 = vector.extract_strided_slice %669 {offsets = [0, 32], sizes = [2, 16], strides = [1, 1]} : vector<2x128xf32> to vector<2x16xf32>
    %687 = math.tanh %686 : vector<2x16xf32>
    %688 = vector.extract_strided_slice %669 {offsets = [0, 48], sizes = [2, 16], strides = [1, 1]} : vector<2x128xf32> to vector<2x16xf32>
    %cst_170 = arith.constant 5.000000e-01 : f32
    %689 = vector.broadcast %cst_170 : f32 to vector<2x16xf32>
    %690 = arith.mulf %689, %688 : vector<2x16xf32>
    %691 = math.tanh %690 : vector<2x16xf32>
    %cst_171 = arith.constant 1.000000e+00 : f32
    %692 = vector.broadcast %cst_171 : f32 to vector<2x16xf32>
    %693 = arith.addf %691, %692 : vector<2x16xf32>
    %cst_172 = arith.constant 5.000000e-01 : f32
    %694 = vector.broadcast %cst_172 : f32 to vector<2x16xf32>
    %695 = arith.mulf %694, %693 : vector<2x16xf32>
    %696 = arith.mulf %685, %632 : vector<2x16xf32>
    %697 = arith.mulf %677, %687 : vector<2x16xf32>
    %698 = arith.addf %696, %697 : vector<2x16xf32>
    %699 = math.tanh %698 : vector<2x16xf32>
    %700 = arith.mulf %695, %699 : vector<2x16xf32>
    %701 = vector.extract_strided_slice %669 {offsets = [0, 64], sizes = [2, 16], strides = [1, 1]} : vector<2x128xf32> to vector<2x16xf32>
    %cst_173 = arith.constant 5.000000e-01 : f32
    %702 = vector.broadcast %cst_173 : f32 to vector<2x16xf32>
    %703 = arith.mulf %702, %701 : vector<2x16xf32>
    %704 = math.tanh %703 : vector<2x16xf32>
    %cst_174 = arith.constant 1.000000e+00 : f32
    %705 = vector.broadcast %cst_174 : f32 to vector<2x16xf32>
    %706 = arith.addf %704, %705 : vector<2x16xf32>
    %cst_175 = arith.constant 5.000000e-01 : f32
    %707 = vector.broadcast %cst_175 : f32 to vector<2x16xf32>
    %708 = arith.mulf %707, %706 : vector<2x16xf32>
    %709 = vector.extract_strided_slice %669 {offsets = [0, 80], sizes = [2, 16], strides = [1, 1]} : vector<2x128xf32> to vector<2x16xf32>
    %cst_176 = arith.constant 5.000000e-01 : f32
    %710 = vector.broadcast %cst_176 : f32 to vector<2x16xf32>
    %711 = arith.mulf %710, %709 : vector<2x16xf32>
    %712 = math.tanh %711 : vector<2x16xf32>
    %cst_177 = arith.constant 1.000000e+00 : f32
    %713 = vector.broadcast %cst_177 : f32 to vector<2x16xf32>
    %714 = arith.addf %712, %713 : vector<2x16xf32>
    %cst_178 = arith.constant 5.000000e-01 : f32
    %715 = vector.broadcast %cst_178 : f32 to vector<2x16xf32>
    %716 = arith.mulf %715, %714 : vector<2x16xf32>
    %717 = vector.extract_strided_slice %669 {offsets = [0, 96], sizes = [2, 16], strides = [1, 1]} : vector<2x128xf32> to vector<2x16xf32>
    %718 = math.tanh %717 : vector<2x16xf32>
    %719 = vector.extract_strided_slice %669 {offsets = [0, 112], sizes = [2, 16], strides = [1, 1]} : vector<2x128xf32> to vector<2x16xf32>
    %cst_179 = arith.constant 5.000000e-01 : f32
    %720 = vector.broadcast %cst_179 : f32 to vector<2x16xf32>
    %721 = arith.mulf %720, %719 : vector<2x16xf32>
    %722 = math.tanh %721 : vector<2x16xf32>
    %cst_180 = arith.constant 1.000000e+00 : f32
    %723 = vector.broadcast %cst_180 : f32 to vector<2x16xf32>
    %724 = arith.addf %722, %723 : vector<2x16xf32>
    %cst_181 = arith.constant 5.000000e-01 : f32
    %725 = vector.broadcast %cst_181 : f32 to vector<2x16xf32>
    %726 = arith.mulf %725, %724 : vector<2x16xf32>
    %727 = arith.mulf %716, %663 : vector<2x16xf32>
    %728 = arith.mulf %708, %718 : vector<2x16xf32>
    %729 = arith.addf %727, %728 : vector<2x16xf32>
    %730 = math.tanh %729 : vector<2x16xf32>
    %731 = arith.mulf %726, %730 : vector<2x16xf32>
    %732 = tpu.concatenate %700, %731 in 1 : vector<2x16xf32>, vector<2x16xf32> -> vector<2x32xf32>
    %733 = vector.extract_strided_slice %333 {offsets = [12, 0], sizes = [2, 128], strides = [1, 1]} : vector<16x128xf32> to vector<2x128xf32>
    %cst_182 = arith.constant dense<0.000000e+00> : vector<2x128xf32>
    %734 = tpu.matmul %732, %321, %cst_182 {dimension_numbers = #tpu.dot_dimension_numbers<[1], [0], [0], [1], [0, 0, 1, 1], [], []>} : vector<2x32xf32>, vector<32x128xf32>, vector<2x128xf32> -> vector<2x128xf32>
    %735 = arith.addf %733, %734 : vector<2x128xf32>
    %736 = vector.extract_strided_slice %735 {offsets = [0, 0], sizes = [2, 16], strides = [1, 1]} : vector<2x128xf32> to vector<2x16xf32>
    %cst_183 = arith.constant 5.000000e-01 : f32
    %737 = vector.broadcast %cst_183 : f32 to vector<2x16xf32>
    %738 = arith.mulf %737, %736 : vector<2x16xf32>
    %739 = math.tanh %738 : vector<2x16xf32>
    %cst_184 = arith.constant 1.000000e+00 : f32
    %740 = vector.broadcast %cst_184 : f32 to vector<2x16xf32>
    %741 = arith.addf %739, %740 : vector<2x16xf32>
    %cst_185 = arith.constant 5.000000e-01 : f32
    %742 = vector.broadcast %cst_185 : f32 to vector<2x16xf32>
    %743 = arith.mulf %742, %741 : vector<2x16xf32>
    %744 = vector.extract_strided_slice %735 {offsets = [0, 16], sizes = [2, 16], strides = [1, 1]} : vector<2x128xf32> to vector<2x16xf32>
    %cst_186 = arith.constant 5.000000e-01 : f32
    %745 = vector.broadcast %cst_186 : f32 to vector<2x16xf32>
    %746 = arith.mulf %745, %744 : vector<2x16xf32>
    %747 = math.tanh %746 : vector<2x16xf32>
    %cst_187 = arith.constant 1.000000e+00 : f32
    %748 = vector.broadcast %cst_187 : f32 to vector<2x16xf32>
    %749 = arith.addf %747, %748 : vector<2x16xf32>
    %cst_188 = arith.constant 5.000000e-01 : f32
    %750 = vector.broadcast %cst_188 : f32 to vector<2x16xf32>
    %751 = arith.mulf %750, %749 : vector<2x16xf32>
    %752 = vector.extract_strided_slice %735 {offsets = [0, 32], sizes = [2, 16], strides = [1, 1]} : vector<2x128xf32> to vector<2x16xf32>
    %753 = math.tanh %752 : vector<2x16xf32>
    %754 = vector.extract_strided_slice %735 {offsets = [0, 48], sizes = [2, 16], strides = [1, 1]} : vector<2x128xf32> to vector<2x16xf32>
    %cst_189 = arith.constant 5.000000e-01 : f32
    %755 = vector.broadcast %cst_189 : f32 to vector<2x16xf32>
    %756 = arith.mulf %755, %754 : vector<2x16xf32>
    %757 = math.tanh %756 : vector<2x16xf32>
    %cst_190 = arith.constant 1.000000e+00 : f32
    %758 = vector.broadcast %cst_190 : f32 to vector<2x16xf32>
    %759 = arith.addf %757, %758 : vector<2x16xf32>
    %cst_191 = arith.constant 5.000000e-01 : f32
    %760 = vector.broadcast %cst_191 : f32 to vector<2x16xf32>
    %761 = arith.mulf %760, %759 : vector<2x16xf32>
    %762 = arith.mulf %751, %698 : vector<2x16xf32>
    %763 = arith.mulf %743, %753 : vector<2x16xf32>
    %764 = arith.addf %762, %763 : vector<2x16xf32>
    %765 = math.tanh %764 : vector<2x16xf32>
    %766 = arith.mulf %761, %765 : vector<2x16xf32>
    %767 = vector.extract_strided_slice %735 {offsets = [0, 64], sizes = [2, 16], strides = [1, 1]} : vector<2x128xf32> to vector<2x16xf32>
    %cst_192 = arith.constant 5.000000e-01 : f32
    %768 = vector.broadcast %cst_192 : f32 to vector<2x16xf32>
    %769 = arith.mulf %768, %767 : vector<2x16xf32>
    %770 = math.tanh %769 : vector<2x16xf32>
    %cst_193 = arith.constant 1.000000e+00 : f32
    %771 = vector.broadcast %cst_193 : f32 to vector<2x16xf32>
    %772 = arith.addf %770, %771 : vector<2x16xf32>
    %cst_194 = arith.constant 5.000000e-01 : f32
    %773 = vector.broadcast %cst_194 : f32 to vector<2x16xf32>
    %774 = arith.mulf %773, %772 : vector<2x16xf32>
    %775 = vector.extract_strided_slice %735 {offsets = [0, 80], sizes = [2, 16], strides = [1, 1]} : vector<2x128xf32> to vector<2x16xf32>
    %cst_195 = arith.constant 5.000000e-01 : f32
    %776 = vector.broadcast %cst_195 : f32 to vector<2x16xf32>
    %777 = arith.mulf %776, %775 : vector<2x16xf32>
    %778 = math.tanh %777 : vector<2x16xf32>
    %cst_196 = arith.constant 1.000000e+00 : f32
    %779 = vector.broadcast %cst_196 : f32 to vector<2x16xf32>
    %780 = arith.addf %778, %779 : vector<2x16xf32>
    %cst_197 = arith.constant 5.000000e-01 : f32
    %781 = vector.broadcast %cst_197 : f32 to vector<2x16xf32>
    %782 = arith.mulf %781, %780 : vector<2x16xf32>
    %783 = vector.extract_strided_slice %735 {offsets = [0, 96], sizes = [2, 16], strides = [1, 1]} : vector<2x128xf32> to vector<2x16xf32>
    %784 = math.tanh %783 : vector<2x16xf32>
    %785 = vector.extract_strided_slice %735 {offsets = [0, 112], sizes = [2, 16], strides = [1, 1]} : vector<2x128xf32> to vector<2x16xf32>
    %cst_198 = arith.constant 5.000000e-01 : f32
    %786 = vector.broadcast %cst_198 : f32 to vector<2x16xf32>
    %787 = arith.mulf %786, %785 : vector<2x16xf32>
    %788 = math.tanh %787 : vector<2x16xf32>
    %cst_199 = arith.constant 1.000000e+00 : f32
    %789 = vector.broadcast %cst_199 : f32 to vector<2x16xf32>
    %790 = arith.addf %788, %789 : vector<2x16xf32>
    %cst_200 = arith.constant 5.000000e-01 : f32
    %791 = vector.broadcast %cst_200 : f32 to vector<2x16xf32>
    %792 = arith.mulf %791, %790 : vector<2x16xf32>
    %793 = arith.mulf %782, %729 : vector<2x16xf32>
    %794 = arith.mulf %774, %784 : vector<2x16xf32>
    %795 = arith.addf %793, %794 : vector<2x16xf32>
    %796 = math.tanh %795 : vector<2x16xf32>
    %797 = arith.mulf %792, %796 : vector<2x16xf32>
    %798 = tpu.concatenate %766, %797 in 1 : vector<2x16xf32>, vector<2x16xf32> -> vector<2x32xf32>
    %799 = vector.extract_strided_slice %333 {offsets = [14, 0], sizes = [2, 128], strides = [1, 1]} : vector<16x128xf32> to vector<2x128xf32>
    %cst_201 = arith.constant dense<0.000000e+00> : vector<2x128xf32>
    %800 = tpu.matmul %798, %321, %cst_201 {dimension_numbers = #tpu.dot_dimension_numbers<[1], [0], [0], [1], [0, 0, 1, 1], [], []>} : vector<2x32xf32>, vector<32x128xf32>, vector<2x128xf32> -> vector<2x128xf32>
    %801 = arith.addf %799, %800 : vector<2x128xf32>
    %802 = vector.extract_strided_slice %801 {offsets = [0, 0], sizes = [2, 16], strides = [1, 1]} : vector<2x128xf32> to vector<2x16xf32>
    %cst_202 = arith.constant 5.000000e-01 : f32
    %803 = vector.broadcast %cst_202 : f32 to vector<2x16xf32>
    %804 = arith.mulf %803, %802 : vector<2x16xf32>
    %805 = math.tanh %804 : vector<2x16xf32>
    %cst_203 = arith.constant 1.000000e+00 : f32
    %806 = vector.broadcast %cst_203 : f32 to vector<2x16xf32>
    %807 = arith.addf %805, %806 : vector<2x16xf32>
    %cst_204 = arith.constant 5.000000e-01 : f32
    %808 = vector.broadcast %cst_204 : f32 to vector<2x16xf32>
    %809 = arith.mulf %808, %807 : vector<2x16xf32>
    %810 = vector.extract_strided_slice %801 {offsets = [0, 16], sizes = [2, 16], strides = [1, 1]} : vector<2x128xf32> to vector<2x16xf32>
    %cst_205 = arith.constant 5.000000e-01 : f32
    %811 = vector.broadcast %cst_205 : f32 to vector<2x16xf32>
    %812 = arith.mulf %811, %810 : vector<2x16xf32>
    %813 = math.tanh %812 : vector<2x16xf32>
    %cst_206 = arith.constant 1.000000e+00 : f32
    %814 = vector.broadcast %cst_206 : f32 to vector<2x16xf32>
    %815 = arith.addf %813, %814 : vector<2x16xf32>
    %cst_207 = arith.constant 5.000000e-01 : f32
    %816 = vector.broadcast %cst_207 : f32 to vector<2x16xf32>
    %817 = arith.mulf %816, %815 : vector<2x16xf32>
    %818 = vector.extract_strided_slice %801 {offsets = [0, 32], sizes = [2, 16], strides = [1, 1]} : vector<2x128xf32> to vector<2x16xf32>
    %819 = math.tanh %818 : vector<2x16xf32>
    %820 = vector.extract_strided_slice %801 {offsets = [0, 48], sizes = [2, 16], strides = [1, 1]} : vector<2x128xf32> to vector<2x16xf32>
    %cst_208 = arith.constant 5.000000e-01 : f32
    %821 = vector.broadcast %cst_208 : f32 to vector<2x16xf32>
    %822 = arith.mulf %821, %820 : vector<2x16xf32>
    %823 = math.tanh %822 : vector<2x16xf32>
    %cst_209 = arith.constant 1.000000e+00 : f32
    %824 = vector.broadcast %cst_209 : f32 to vector<2x16xf32>
    %825 = arith.addf %823, %824 : vector<2x16xf32>
    %cst_210 = arith.constant 5.000000e-01 : f32
    %826 = vector.broadcast %cst_210 : f32 to vector<2x16xf32>
    %827 = arith.mulf %826, %825 : vector<2x16xf32>
    %828 = arith.mulf %817, %764 : vector<2x16xf32>
    %829 = arith.mulf %809, %819 : vector<2x16xf32>
    %830 = arith.addf %828, %829 : vector<2x16xf32>
    %831 = math.tanh %830 : vector<2x16xf32>
    %832 = arith.mulf %827, %831 : vector<2x16xf32>
    %833 = vector.extract_strided_slice %801 {offsets = [0, 64], sizes = [2, 16], strides = [1, 1]} : vector<2x128xf32> to vector<2x16xf32>
    %cst_211 = arith.constant 5.000000e-01 : f32
    %834 = vector.broadcast %cst_211 : f32 to vector<2x16xf32>
    %835 = arith.mulf %834, %833 : vector<2x16xf32>
    %836 = math.tanh %835 : vector<2x16xf32>
    %cst_212 = arith.constant 1.000000e+00 : f32
    %837 = vector.broadcast %cst_212 : f32 to vector<2x16xf32>
    %838 = arith.addf %836, %837 : vector<2x16xf32>
    %cst_213 = arith.constant 5.000000e-01 : f32
    %839 = vector.broadcast %cst_213 : f32 to vector<2x16xf32>
    %840 = arith.mulf %839, %838 : vector<2x16xf32>
    %841 = vector.extract_strided_slice %801 {offsets = [0, 80], sizes = [2, 16], strides = [1, 1]} : vector<2x128xf32> to vector<2x16xf32>
    %cst_214 = arith.constant 5.000000e-01 : f32
    %842 = vector.broadcast %cst_214 : f32 to vector<2x16xf32>
    %843 = arith.mulf %842, %841 : vector<2x16xf32>
    %844 = math.tanh %843 : vector<2x16xf32>
    %cst_215 = arith.constant 1.000000e+00 : f32
    %845 = vector.broadcast %cst_215 : f32 to vector<2x16xf32>
    %846 = arith.addf %844, %845 : vector<2x16xf32>
    %cst_216 = arith.constant 5.000000e-01 : f32
    %847 = vector.broadcast %cst_216 : f32 to vector<2x16xf32>
    %848 = arith.mulf %847, %846 : vector<2x16xf32>
    %849 = vector.extract_strided_slice %801 {offsets = [0, 96], sizes = [2, 16], strides = [1, 1]} : vector<2x128xf32> to vector<2x16xf32>
    %850 = math.tanh %849 : vector<2x16xf32>
    %851 = vector.extract_strided_slice %801 {offsets = [0, 112], sizes = [2, 16], strides = [1, 1]} : vector<2x128xf32> to vector<2x16xf32>
    %cst_217 = arith.constant 5.000000e-01 : f32
    %852 = vector.broadcast %cst_217 : f32 to vector<2x16xf32>
    %853 = arith.mulf %852, %851 : vector<2x16xf32>
    %854 = math.tanh %853 : vector<2x16xf32>
    %cst_218 = arith.constant 1.000000e+00 : f32
    %855 = vector.broadcast %cst_218 : f32 to vector<2x16xf32>
    %856 = arith.addf %854, %855 : vector<2x16xf32>
    %cst_219 = arith.constant 5.000000e-01 : f32
    %857 = vector.broadcast %cst_219 : f32 to vector<2x16xf32>
    %858 = arith.mulf %857, %856 : vector<2x16xf32>
    %859 = arith.mulf %848, %795 : vector<2x16xf32>
    %860 = arith.mulf %840, %850 : vector<2x16xf32>
    %861 = arith.addf %859, %860 : vector<2x16xf32>
    %862 = math.tanh %861 : vector<2x16xf32>
    %863 = arith.mulf %858, %862 : vector<2x16xf32>
    %864 = tpu.concatenate %832, %863 in 1 : vector<2x16xf32>, vector<2x16xf32> -> vector<2x32xf32>
    %865 = vector.extract_strided_slice %402 {offsets = [0, 0], sizes = [2, 16], strides = [1, 1]} : vector<2x32xf32> to vector<2x16xf32>
    %866 = vector.extract_strided_slice %864 {offsets = [0, 16], sizes = [2, 16], strides = [1, 1]} : vector<2x32xf32> to vector<2x16xf32>
    %867 = vector.extract_strided_slice %468 {offsets = [0, 0], sizes = [2, 16], strides = [1, 1]} : vector<2x32xf32> to vector<2x16xf32>
    %868 = vector.extract_strided_slice %798 {offsets = [0, 16], sizes = [2, 16], strides = [1, 1]} : vector<2x32xf32> to vector<2x16xf32>
    %869 = vector.extract_strided_slice %534 {offsets = [0, 0], sizes = [2, 16], strides = [1, 1]} : vector<2x32xf32> to vector<2x16xf32>
    %870 = vector.extract_strided_slice %732 {offsets = [0, 16], sizes = [2, 16], strides = [1, 1]} : vector<2x32xf32> to vector<2x16xf32>
    %871 = vector.extract_strided_slice %600 {offsets = [0, 0], sizes = [2, 16], strides = [1, 1]} : vector<2x32xf32> to vector<2x16xf32>
    %872 = vector.extract_strided_slice %666 {offsets = [0, 16], sizes = [2, 16], strides = [1, 1]} : vector<2x32xf32> to vector<2x16xf32>
    %873 = vector.extract_strided_slice %666 {offsets = [0, 0], sizes = [2, 16], strides = [1, 1]} : vector<2x32xf32> to vector<2x16xf32>
    %874 = vector.extract_strided_slice %600 {offsets = [0, 16], sizes = [2, 16], strides = [1, 1]} : vector<2x32xf32> to vector<2x16xf32>
    %875 = vector.extract_strided_slice %732 {offsets = [0, 0], sizes = [2, 16], strides = [1, 1]} : vector<2x32xf32> to vector<2x16xf32>
    %876 = vector.extract_strided_slice %534 {offsets = [0, 16], sizes = [2, 16], strides = [1, 1]} : vector<2x32xf32> to vector<2x16xf32>
    %877 = vector.extract_strided_slice %798 {offsets = [0, 0], sizes = [2, 16], strides = [1, 1]} : vector<2x32xf32> to vector<2x16xf32>
    %878 = vector.extract_strided_slice %468 {offsets = [0, 16], sizes = [2, 16], strides = [1, 1]} : vector<2x32xf32> to vector<2x16xf32>
    %879 = vector.extract_strided_slice %864 {offsets = [0, 0], sizes = [2, 16], strides = [1, 1]} : vector<2x32xf32> to vector<2x16xf32>
    %880 = vector.extract_strided_slice %402 {offsets = [0, 16], sizes = [2, 16], strides = [1, 1]} : vector<2x32xf32> to vector<2x16xf32>
    %881 = tpu.concatenate %865, %866, %867, %868, %869, %870, %871, %872, %873, %874, %875, %876, %877, %878, %879, %880 in 1 : vector<2x16xf32>, vector<2x16xf32>, vector<2x16xf32>, vector<2x16xf32>, vector<2x16xf32>, vector<2x16xf32>, vector<2x16xf32>, vector<2x16xf32>, vector<2x16xf32>, vector<2x16xf32>, vector<2x16xf32>, vector<2x16xf32>, vector<2x16xf32>, vector<2x16xf32>, vector<2x16xf32>, vector<2x16xf32> -> vector<2x256xf32>
    %c0_i32_220 = arith.constant 0 : i32
    %882 = tpu.memref_slice %arg22[%c0_i32_220] : memref<2x!tpu.dma_semaphore, #tpu.memory_space<semaphore_mem>> -> memref<1x!tpu.dma_semaphore, #tpu.memory_space<semaphore_mem>>
    %883 = tpu.memref_squeeze %882 : memref<1x!tpu.dma_semaphore, #tpu.memory_space<semaphore_mem>> -> memref<!tpu.dma_semaphore, #tpu.memory_space<semaphore_mem>>
    tpu.wait_dma2 semaphore(%883 : memref<!tpu.dma_semaphore, #tpu.memory_space<semaphore_mem>>) src(%arg13 : memref<256x1024xf32, #tpu.memory_space<any>>) dst(%arg20 : memref<256x1024xf32, #tpu.memory_space<vmem>>)
    %c0_221 = arith.constant 0 : index
    %c0_222 = arith.constant 0 : index
    %884 = vector.load %arg20[%c0_221, %c0_222] : memref<256x1024xf32, #tpu.memory_space<vmem>>, vector<256x1024xf32>
    %cst_223 = arith.constant dense<0.000000e+00> : vector<2x1024xf32>
    %885 = tpu.matmul %881, %884, %cst_223 {dimension_numbers = #tpu.dot_dimension_numbers<[1], [0], [0], [1], [0, 0, 1, 1], [], []>} : vector<2x256xf32>, vector<256x1024xf32>, vector<2x1024xf32> -> vector<2x1024xf32>
    %c0_224 = arith.constant 0 : index
    %c0_225 = arith.constant 0 : index
    %886 = vector.load %arg14[%c0_224, %c0_225] : memref<1x1024xf32, #tpu.memory_space<vmem>>, vector<1x1024xf32>
    %887 = vector.broadcast %886 : vector<1x1024xf32> to vector<2x1024xf32>
    %888 = arith.addf %885, %887 : vector<2x1024xf32>
    %c1_i32_226 = arith.constant 1 : i32
    %889 = tpu.memref_slice %arg22[%c1_i32_226] : memref<2x!tpu.dma_semaphore, #tpu.memory_space<semaphore_mem>> -> memref<1x!tpu.dma_semaphore, #tpu.memory_space<semaphore_mem>>
    %890 = tpu.memref_squeeze %889 : memref<1x!tpu.dma_semaphore, #tpu.memory_space<semaphore_mem>> -> memref<!tpu.dma_semaphore, #tpu.memory_space<semaphore_mem>>
    tpu.wait_dma2 semaphore(%890 : memref<!tpu.dma_semaphore, #tpu.memory_space<semaphore_mem>>) src(%arg15 : memref<1024x256xf32, #tpu.memory_space<any>>) dst(%arg21 : memref<1024x256xf32, #tpu.memory_space<vmem>>)
    %c0_227 = arith.constant 0 : index
    %c0_228 = arith.constant 0 : index
    %891 = vector.load %arg21[%c0_227, %c0_228] : memref<1024x256xf32, #tpu.memory_space<vmem>>, vector<1024x256xf32>
    %cst_229 = arith.constant dense<0.000000e+00> : vector<2x256xf32>
    %892 = tpu.matmul %888, %891, %cst_229 {dimension_numbers = #tpu.dot_dimension_numbers<[1], [0], [0], [1], [0, 0, 1, 1], [], []>} : vector<2x1024xf32>, vector<1024x256xf32>, vector<2x256xf32> -> vector<2x256xf32>
    %c0_230 = arith.constant 0 : index
    %c0_231 = arith.constant 0 : index
    %893 = vector.load %arg16[%c0_230, %c0_231] : memref<1x256xf32, #tpu.memory_space<vmem>>, vector<1x256xf32>
    %894 = vector.broadcast %893 : vector<1x256xf32> to vector<2x256xf32>
    %895 = arith.addf %892, %894 : vector<2x256xf32>
    %c0_232 = arith.constant 0 : index
    %c0_233 = arith.constant 0 : index
    %896 = vector.load %arg17[%c0_232, %c0_233] : memref<256x6xf32, #tpu.memory_space<vmem>>, vector<256x6xf32>
    %cst_234 = arith.constant dense<0.000000e+00> : vector<2x6xf32>
    %897 = tpu.matmul %895, %896, %cst_234 {dimension_numbers = #tpu.dot_dimension_numbers<[1], [0], [0], [1], [0, 0, 1, 1], [], []>} : vector<2x256xf32>, vector<256x6xf32>, vector<2x6xf32> -> vector<2x6xf32>
    %c0_235 = arith.constant 0 : index
    %c0_236 = arith.constant 0 : index
    %898 = vector.load %arg18[%c0_235, %c0_236] : memref<1x6xf32, #tpu.memory_space<vmem>>, vector<1x6xf32>
    %899 = vector.broadcast %898 : vector<1x6xf32> to vector<2x6xf32>
    %900 = arith.addf %897, %899 : vector<2x6xf32>
    %c0_237 = arith.constant 0 : index
    %c0_238 = arith.constant 0 : index
    %901 = vector.load %arg19[%c0_237, %c0_238] : memref<2x6xf32, #tpu.memory_space<vmem>>, vector<2x6xf32>
    tpu.vector_store %arg19[%c0_237, %c0_238], %900 {strides = array<i32>} : memref<2x6xf32, #tpu.memory_space<vmem>>, vector<2x6xf32>,
    return
  }
}

</mosaic_0001>

<llo_original>
// kernel: phrnn_forward.1
$region0: #{phrnn_forward.1}
  #allocation0 [shape = 'u32[]', space=smem, size = 0x4, offset = 0x4, fixed_abs, tag = 'smem constant byte address 0x4 - core index']
  #allocation1 [shape = 'u32[72,128]{1,0:T(1,128)}', space=vmem, size = 0x9000, scoped, tag = 'internal scratch']
  #allocation2 [shape = 'f32[256,1024]{1,0:T(8,128)}', space=vmem, size = 0x100000, scoped, tag = 'scratch operand']
  #allocation3 [shape = 'f32[1024,256]{1,0:T(8,128)}', space=vmem, size = 0x100000, scoped, tag = 'scratch operand']
  #allocation4 [shape = 's32[2]{0}', space=sflag, size = 0x8, scoped, tag = 'scratch operand']
  #allocation12 [shape = 's32[]', space=sflag, size = 0x4, offset = 0, fixed_abs, tag = 'sflag constant byte address 0x0 - dummy sync flag']
  #allocation13 [shape = 's32[]', space=sflag, size = 0x4, offset = 0, fixed_abs, tag = 'sflag constant byte address 0x0 - dummy sync flag']
  #allocation14 [shape = 'u32[]', space=smem, size = 0x4, offset = 0x44, fixed_abs, tag = 'smem constant byte address 0x44 - assertion arg 0']
  #allocation15 [shape = 'u32[]', space=smem, size = 0x4, offset = 0x48, fixed_abs, tag = 'smem constant byte address 0x48 - assertion arg 1']
  #allocation16 [shape = 's32[]', space=sflag, size = 0x4, offset = 0, fixed_abs, tag = 'sflag constant byte address 0x0 - dummy sync flag']
  #allocation17 [shape = 's32[]', space=sflag, size = 0x4, offset = 0, fixed_abs, tag = 'sflag constant byte address 0x0 - dummy sync flag']
  %s0 = inlined_call_operand.vmem [shape: f32[16,40], index: 0, kind: input, shape index: {}]
  %s1 = inlined_call_operand.vmem [shape: f32[40,128], index: 1, kind: input, shape index: {}]
  %s2 = inlined_call_operand.vmem [shape: f32[128,128], index: 2, kind: input, shape index: {}]
  %s3 = inlined_call_operand.vmem [shape: f32[128,96], index: 3, kind: input, shape index: {}]
  %s4 = inlined_call_operand.vmem [shape: f32[96,96], index: 4, kind: input, shape index: {}]
  %s5 = inlined_call_operand.vmem [shape: f32[96,96], index: 5, kind: input, shape index: {}]
  %s6 = inlined_call_operand.vmem [shape: f32[96,96], index: 6, kind: input, shape index: {}]
  %s7 = inlined_call_operand.vmem [shape: f32[96,64], index: 7, kind: input, shape index: {}]
  %s8 = inlined_call_operand.vmem [shape: f32[64,64], index: 8, kind: input, shape index: {}]
  %s9 = inlined_call_operand.vmem [shape: f32[64,64], index: 9, kind: input, shape index: {}]
  %s10 = inlined_call_operand.hbm [shape: f32[64,64], index: 10, kind: input, shape index: {}]
  %s11 = inlined_call_operand.hbm [shape: f32[64,128], index: 11, kind: input, shape index: {}]
  %s12 = inlined_call_operand.hbm [shape: f32[32,128], index: 12, kind: input, shape index: {}]
  %s13 = inlined_call_operand.hbm [shape: f32[256,1024], index: 13, kind: input, shape index: {}]
  %s14 = inlined_call_operand.vmem [shape: f32[1,1024], index: 14, kind: input, shape index: {}]
  %s15 = inlined_call_operand.hbm [shape: f32[1024,256], index: 15, kind: input, shape index: {}]
  %s16 = inlined_call_operand.vmem [shape: f32[1,256], index: 16, kind: input, shape index: {}]
  %s17 = inlined_call_operand.vmem [shape: f32[256,6], index: 17, kind: input, shape index: {}]
  %s18 = inlined_call_operand.vmem [shape: f32[1,6], index: 18, kind: input, shape index: {}]
  %s19 = inlined_call_operand.hbm [shape: f32[2,6], index: 19, kind: output, shape index: {}]
  %s20 = sld [smem:[#allocation0]]
  $region98: #{phrnn_forward.1} parent=0
    _
  %s22 = ssub.s32 1, %s20
  %s23 = scalar_select 0, %s22, %s20
  $region1: #{phrnn_forward.1} parent=0
    #allocation5 [shape = 'u8[32768]{0}', space=vmem, size = 0x8000, scoped, tag = 'input window, operand 10, single buffered']
    #allocation6 [shape = 's32[1]{0}', space=sflag, size = 0x4, scoped, tag = 'scoped memory for phrnn_forward.1']
    #allocation7 [shape = 's32[1]{0}', space=sflag, size = 0x4, scoped, tag = 'scoped memory for phrnn_forward.1']
    #allocation8 [shape = 'u8[32768]{0}', space=vmem, size = 0x8000, scoped, tag = 'input window, operand 11, single buffered']
    #allocation9 [shape = 's32[1]{0}', space=sflag, size = 0x4, scoped, tag = 'scoped memory for phrnn_forward.1']
    #allocation10 [shape = 'u8[16384]{0}', space=vmem, size = 0x4000, scoped, tag = 'input window, operand 12, single buffered']
    #allocation11 [shape = 'u8[1024]{0}', space=vmem, size = 0x400, scoped, tag = 'output window, operand 0, single buffered']
    %24 = vsyncpa [#allocation6], 0
    %25 = vsyncpa [#allocation9], 0
    %26 = vsyncpa [#allocation7], 0
    // Predicated region
    $region2: #{phrnn_forward.1} parent=1 // pred_check
      _
    $region3: #{phrnn_forward.1} parent=1 // pred_check_branch
      %28 = sbr.rel (0) target = $region5
    $region4: #{phrnn_forward.1} parent=1 // pred_region
      _
    $region5: #{phrnn_forward.1} parent=1 // pred_fallthru
      _
    // Predicated region
    $region6: #{phrnn_forward.1} parent=1 // pred_check
      _
    $region7: #{phrnn_forward.1} parent=1 // pred_check_branch
      %30 = sbr.rel (0) target = $region9
    $region8: #{phrnn_forward.1} parent=1 // pred_region
      _
    $region9: #{phrnn_forward.1} parent=1 // pred_fallthru
      _
    // Predicated region
    $region10: #{phrnn_forward.1} parent=1 // pred_check
      _
    $region11: #{phrnn_forward.1} parent=1 // pred_check_branch
      %32 = sbr.rel (0) target = $region13
    $region12: #{phrnn_forward.1} parent=1 // pred_region
      _
    $region13: #{phrnn_forward.1} parent=1 // pred_fallthru
      _
    // Predicated region
    $region14: #{phrnn_forward.1} parent=1 // pred_check
      _
    $region15: #{phrnn_forward.1} parent=1 // pred_check_branch
      %34 = sbr.rel (0) target = $region17
    $region16: #{phrnn_forward.1} parent=1 // pred_region
      _
    $region17: #{phrnn_forward.1} parent=1 // pred_fallthru
      _
    // Predicated region
    $region18: #{phrnn_forward.1} parent=1 // pred_check
      _
    $region19: #{phrnn_forward.1} parent=1 // pred_check_branch
      %36 = sbr.rel (0) target = $region21
    $region20: #{phrnn_forward.1} parent=1 // pred_region
      _
    $region21: #{phrnn_forward.1} parent=1 // pred_fallthru
      _
    // Predicated region
    $region22: #{phrnn_forward.1} parent=1 // pred_check
      _
    $region23: #{phrnn_forward.1} parent=1 // pred_check_branch
      %38 = sbr.rel (0) target = $region25
    $region24: #{phrnn_forward.1} parent=1 // pred_region
      _
    $region25: #{phrnn_forward.1} parent=1 // pred_fallthru
      _
    // Predicated region
    $region26: #{phrnn_forward.1} parent=1 // pred_check
      _
    $region27: #{phrnn_forward.1} parent=1 // pred_check_branch
      %40 = sbr.rel (0) target = $region29
    $region28: #{phrnn_forward.1} parent=1 // pred_region
      _
    $region29: #{phrnn_forward.1} parent=1 // pred_fallthru
      _
    // Predicated region
    $region30: #{phrnn_forward.1} parent=1 // pred_check
      _
    $region31: #{phrnn_forward.1} parent=1 // pred_check_branch
      %42 = sbr.rel (0) target = $region33
    $region32: #{phrnn_forward.1} parent=1 // pred_region
      _
    $region33: #{phrnn_forward.1} parent=1 // pred_fallthru
      _
    // Predicated region
    $region34: #{phrnn_forward.1} parent=1 // pred_check
      _
    $region35: #{phrnn_forward.1} parent=1 // pred_check_branch
      %44 = sbr.rel (0) target = $region37
    $region36: #{phrnn_forward.1} parent=1 // pred_region
      _
    $region37: #{phrnn_forward.1} parent=1 // pred_fallthru
      _
    // Predicated region
    $region38: #{phrnn_forward.1} parent=1 // pred_check
      _
    $region39: #{phrnn_forward.1} parent=1 // pred_check_branch
      %46 = sbr.rel (0) target = $region41
    $region40: #{phrnn_forward.1} parent=1 // pred_region
      _
    $region41: #{phrnn_forward.1} parent=1 // pred_fallthru
      _
    // Predicated region
    $region42: #{phrnn_forward.1} parent=1 // pred_check
      _
    $region43: #{phrnn_forward.1} parent=1 // pred_check_branch
      %48 = sbr.rel (0) target = $region45
    $region44: #{phrnn_forward.1} parent=1 // pred_region
      %50 = vsyncadd [#allocation6], 0
      %s51 = sshll.u32 %s10, 4
      %s52 = int_to_ptr.hbm [resolvable:$true] %s51
      %s53 = sshll.u32 [#allocation5], 4
      %s54 = int_to_ptr.vmem [resolvable:$true] %s53
      %59 = dma.hbm_to_vmem [thread:$0]  %s52, 1024, %s54, [#allocation6], 128, 128, 8
    $region45: #{phrnn_forward.1} parent=1 // pred_fallthru
      _
    // Predicated region
    $region46: #{phrnn_forward.1} parent=1 // pred_check
      _
    $region47: #{phrnn_forward.1} parent=1 // pred_check_branch
      %61 = sbr.rel (0) target = $region49
    $region48: #{phrnn_forward.1} parent=1 // pred_region
      %63 = vsyncadd [#allocation9], 0
      %s64 = sshll.u32 %s11, 4
      %s65 = int_to_ptr.hbm [resolvable:$true] %s64
      %s66 = sshll.u32 [#allocation8], 4
      %s67 = int_to_ptr.vmem [resolvable:$true] %s66
      %72 = dma.hbm_to_vmem [thread:$0]  %s65, 1024, %s67, [#allocation9], 128, 128, 8
    $region49: #{phrnn_forward.1} parent=1 // pred_fallthru
      _
    // Predicated region
    $region50: #{phrnn_forward.1} parent=1 // pred_check
      _
    $region51: #{phrnn_forward.1} parent=1 // pred_check_branch
      %74 = sbr.rel (0) target = $region53
    $region52: #{phrnn_forward.1} parent=1 // pred_region
      %76 = vsyncadd [#allocation9], 0
      %s77 = sshll.u32 %s12, 4
      %s78 = int_to_ptr.hbm [resolvable:$true] %s77
      %s79 = sshll.u32 [#allocation10], 4
      %s80 = int_to_ptr.vmem [resolvable:$true] %s79
      %85 = dma.hbm_to_vmem [thread:$0]  %s78, 512, %s80, [#allocation9], 128, 128, 8
    $region53: #{phrnn_forward.1} parent=1 // pred_fallthru
      _
    // Predicated region
    $region54: #{phrnn_forward.1} parent=1 // pred_check
      _
    $region55: #{phrnn_forward.1} parent=1 // pred_check_branch
      %87 = sbr.rel (0) target = $region57
    $region56: #{phrnn_forward.1} parent=1 // pred_region
      _
    $region57: #{phrnn_forward.1} parent=1 // pred_fallthru
      _
    // Predicated region
    $region58: #{phrnn_forward.1} parent=1 // pred_check
      _
    $region59: #{phrnn_forward.1} parent=1 // pred_check_branch
      %89 = sbr.rel (0) target = $region61
    $region60: #{phrnn_forward.1} parent=1 // pred_region
      _
    $region61: #{phrnn_forward.1} parent=1 // pred_fallthru
      _
    // Predicated region
    $region62: #{phrnn_forward.1} parent=1 // pred_check
      _
    $region63: #{phrnn_forward.1} parent=1 // pred_check_branch
      %91 = sbr.rel (0) target = $region65
    $region64: #{phrnn_forward.1} parent=1 // pred_region
      _
    $region65: #{phrnn_forward.1} parent=1 // pred_fallthru
      _
    // Predicated region
    $region66: #{phrnn_forward.1} parent=1 // pred_check
      _
    $region67: #{phrnn_forward.1} parent=1 // pred_check_branch
      %93 = sbr.rel (0) target = $region69
    $region68: #{phrnn_forward.1} parent=1 // pred_region
      _
    $region69: #{phrnn_forward.1} parent=1 // pred_fallthru
      _
    // Predicated region
    $region70: #{phrnn_forward.1} parent=1 // pred_check
      _
    $region71: #{phrnn_forward.1} parent=1 // pred_check_branch
      %95 = sbr.rel (0) target = $region73
    $region72: #{phrnn_forward.1} parent=1 // pred_region
      %97 = dma.done [#allocation6], 1024
    $region73: #{phrnn_forward.1} parent=1 // pred_fallthru
      _
    // Predicated region
    $region74: #{phrnn_forward.1} parent=1 // pred_check
      _
    $region75: #{phrnn_forward.1} parent=1 // pred_check_branch
      %99 = sbr.rel (0) target = $region77
    $region76: #{phrnn_forward.1} parent=1 // pred_region
      %101 = dma.done [#allocation9], 1024
    $region77: #{phrnn_forward.1} parent=1 // pred_fallthru
      _
    // Predicated region
    $region78: #{phrnn_forward.1} parent=1 // pred_check
      _
    $region79: #{phrnn_forward.1} parent=1 // pred_check_branch
      %103 = sbr.rel (0) target = $region81
    $region80: #{phrnn_forward.1} parent=1 // pred_region
      %105 = dma.done [#allocation9], 512
    $region81: #{phrnn_forward.1} parent=1 // pred_fallthru
      _
    // Predicated region
    $region82: #{phrnn_forward.1} parent=1 // pred_check
      _
    $region83: #{phrnn_forward.1} parent=1 // pred_check_branch
      %107 = sbr.rel target = $region85
    $region84: #{phrnn_forward.1} parent=1 // pred_region
      %108 = sst [smem:[#allocation14]] [#allocation13]
      %109 = sst [smem:[#allocation15]] [#allocation12]
    $region85: #{phrnn_forward.1} parent=1 // pred_fallthru
      _
    %111 = shalt.err (0)
    %s113 = sshll.u32 %s13, 4
    %s114 = int_to_ptr.hbm [resolvable:$true] %s113
    %s115 = sshll.u32 [#allocation2], 4
    %s116 = int_to_ptr.vmem [resolvable:$true] %s115
    %118 = dma.hbm_to_vmem [thread:$0]  %s114, 32768, %s116, [#allocation4]
    %s119 = scalar_lea.sflag [#allocation4], 1
    // Predicated region
    $region86: #{phrnn_forward.1} parent=1 // pred_check
      _
    $region87: #{phrnn_forward.1} parent=1 // pred_check_branch
      %121 = sbr.rel target = $region89
    $region88: #{phrnn_forward.1} parent=1 // pred_region
      %122 = sst [smem:[#allocation14]] [#allocation17]
      %123 = sst [smem:[#allocation15]] [#allocation16]
    $region89: #{phrnn_forward.1} parent=1 // pred_fallthru
      _
    %125 = shalt.err (0)
    %s127 = sshll.u32 %s15, 4
    %s128 = int_to_ptr.hbm [resolvable:$true] %s127
    %s129 = sshll.u32 [#allocation3], 4
    %s130 = int_to_ptr.vmem [resolvable:$true] %s129
    %132 = dma.hbm_to_vmem [thread:$0]  %s128, 32768, %s130, %s119
    %v133 = vld [vmem:[%s0] sm:$0xff]
    %v134 = vld [vmem:[%s0 + $0x8] sm:$0xff]
    %v135 = vld [vmem:[%s1] sm:$0xff]
    %v136 = vld [vmem:[%s1 + $0x8] sm:$0xff]
    %v137 = vld [vmem:[%s1 + $0x10] sm:$0xff]
    %v138 = vld [vmem:[%s1 + $0x18] sm:$0xff]
    %v139 = vld [vmem:[%s1 + $0x20] sm:$0xff]
    %v140 = vld [vmem:[%s2] sm:$0xff]
    %v141 = vld [vmem:[%s2 + $0x8] sm:$0xff]
    %v142 = vld [vmem:[%s2 + $0x10] sm:$0xff]
    %v143 = vld [vmem:[%s2 + $0x18] sm:$0xff]
    %v144 = vld [vmem:[%s2 + $0x20] sm:$0xff]
    %v145 = vld [vmem:[%s2 + $0x28] sm:$0xff]
    %v146 = vld [vmem:[%s2 + $0x30] sm:$0xff]
    %v147 = vld [vmem:[%s2 + $0x38] sm:$0xff]
    %v148 = vld [vmem:[%s2 + $0x40] sm:$0xff]
    %v149 = vld [vmem:[%s2 + $0x48] sm:$0xff]
    %v150 = vld [vmem:[%s2 + $0x50] sm:$0xff]
    %v151 = vld [vmem:[%s2 + $0x58] sm:$0xff]
    %v152 = vld [vmem:[%s2 + $0x60] sm:$0xff]
    %v153 = vld [vmem:[%s2 + $0x68] sm:$0xff]
    %v154 = vld [vmem:[%s2 + $0x70] sm:$0xff]
    %v155 = vld [vmem:[%s2 + $0x78] sm:$0xff]
    %vm156 = vcmask 326656
    %v158 = vsel %vm156, %v133, 0
    %v161 = vsel %vm156, %v134, 0
    %163 = vmatpush.msra.mxu0 0.0
    %164 = vmatpush.msra.mxu0 0.0
    %165 = vmatpush.msra.mxu0 0.0
    %166 = vmatpush.msra.mxu0 0.0
    %167 = vmatpush.msra.mxu0 0.0
    %168 = vmatpush.msra.mxu0 0.0
    %169 = vmatpush.msra.mxu0 0.0
    %170 = vmatpush.msra.mxu0 0.0
    %171 = vmatpush.msra.mxu0 0.0
    %172 = vmatpush.msra.mxu0 0.0
    %173 = vmatpush.msra.mxu0 0.0
    %174 = vmatpush.msra.mxu0 %v139
    %175 = vmatpush.msra.mxu0 %v138
    %176 = vmatpush.msra.mxu0 %v137
    %177 = vmatpush.msra.mxu0 %v136
    %178 = vmatpush.msra.mxu0 %v135
    %179 = vmatmul.f32.gmra.mxu0 %v158
    %v180 = vpop.f32.mrf.mxu0
    %v181 = vadd.f32 0.0, %v180
    %182 = vmatmul.f32.gmra.mxu0 %v161
    %v183 = vpop.f32.mrf.mxu0
    %v184 = vadd.f32 0.0, %v183
    %185 = vdwg.mxu0
    %v187 = vrot.slane %v184, 6
    %v189 = vrot.slane %v184, 2
    %v192 = vrot.slane %v181, 6
    %v194 = vrot.slane %v181, 2
    %vm196 = vcmask 1041408
    %v197 = vsel %vm196, %v187, %v189
    %vm198 = vcmask 1043456
    %v199 = vsel %vm198, %v197, %v187
    %vm200 = vcmask 1045504
    %v201 = vsel %vm200, %v199, %v189
    %v202 = vsel %vm196, %v192, %v194
    %v203 = vsel %vm198, %v202, %v192
    %v204 = vsel %vm200, %v203, %v194
    %vm205 = vcmask 523264
    %v206 = vsel %vm205, %v181, %v201
    %v207 = vsel %vm205, %v184, %v204
    %v208 = vtanh.pop %v206
    %209 = vmatpush.msra.mxu0 %v155
    %210 = vmatpush.msra.mxu0 %v154
    %211 = vmatpush.msra.mxu0 %v153
    %212 = vmatpush.msra.mxu0 %v152
    %213 = vmatpush.msra.mxu0 %v151
    %214 = vmatpush.msra.mxu0 %v150
    %215 = vmatpush.msra.mxu0 %v149
    %216 = vmatpush.msra.mxu0 %v148
    %217 = vmatpush.msra.mxu0 %v147
    %218 = vmatpush.msra.mxu0 %v146
    %219 = vmatpush.msra.mxu0 %v145
    %220 = vmatpush.msra.mxu0 %v144
    %221 = vmatpush.msra.mxu0 %v143
    %222 = vmatpush.msra.mxu0 %v142
    %223 = vmatpush.msra.mxu0 %v141
    %224 = vmatpush.msra.mxu0 %v140
    %225 = vmatmul.f32.gmra.mxu0 %v208
    %v226 = vpop.f32.mrf.mxu0
    %v227 = vadd.f32 0.0, %v226
    %228 = vdwg.mxu0
    %v230 = vrot.slane %v227, 6
    %v232 = vadd.f32 %v206, %v230
    %v233 = vtanh.pop %v232
    %v235 = vrot.slane %v233, 2
    %237 = vmatpush.msra.mxu0 %v155
    %238 = vmatpush.msra.mxu0 %v154
    %239 = vmatpush.msra.mxu0 %v153
    %240 = vmatpush.msra.mxu0 %v152
    %241 = vmatpush.msra.mxu0 %v151
    %242 = vmatpush.msra.mxu0 %v150
    %243 = vmatpush.msra.mxu0 %v149
    %244 = vmatpush.msra.mxu0 %v148
    %245 = vmatpush.msra.mxu0 %v147
    %246 = vmatpush.msra.mxu0 %v146
    %247 = vmatpush.msra.mxu0 %v145
    %248 = vmatpush.msra.mxu0 %v144
    %249 = vmatpush.msra.mxu0 %v143
    %250 = vmatpush.msra.mxu0 %v142
    %251 = vmatpush.msra.mxu0 %v141
    %252 = vmatpush.msra.mxu0 %v140
    %253 = vmatmul.f32.gmra.mxu0 %v235
    %v254 = vpop.f32.mrf.mxu0
    %v255 = vadd.f32 0.0, %v254
    %256 = vdwg.mxu0
    %v258 = vrot.slane %v255, 4
    %v260 = vadd.f32 %v206, %v258
    %v261 = vtanh.pop %v260
    %v263 = vrot.slane %v261, 4
    %265 = vmatpush.msra.mxu0 %v155
    %266 = vmatpush.msra.mxu0 %v154
    %267 = vmatpush.msra.mxu0 %v153
    %268 = vmatpush.msra.mxu0 %v152
    %269 = vmatpush.msra.mxu0 %v151
    %270 = vmatpush.msra.mxu0 %v150
    %271 = vmatpush.msra.mxu0 %v149
    %272 = vmatpush.msra.mxu0 %v148
    %273 = vmatpush.msra.mxu0 %v147
    %274 = vmatpush.msra.mxu0 %v146
    %275 = vmatpush.msra.mxu0 %v145
    %276 = vmatpush.msra.mxu0 %v144
    %277 = vmatpush.msra.mxu0 %v143
    %278 = vmatpush.msra.mxu0 %v142
    %279 = vmatpush.msra.mxu0 %v141
    %280 = vmatpush.msra.mxu0 %v140
    %281 = vmatmul.f32.gmra.mxu0 %v263
    %v282 = vpop.f32.mrf.mxu0
    %v283 = vadd.f32 0.0, %v282
    %284 = vdwg.mxu0
    %v286 = vrot.slane %v283, 2
    %v288 = vadd.f32 %v206, %v286
    %v289 = vtanh.pop %v288
    %v291 = vrot.slane %v289, 6
    %293 = vmatpush.msra.mxu0 %v155
    %294 = vmatpush.msra.mxu0 %v154
    %295 = vmatpush.msra.mxu0 %v153
    %296 = vmatpush.msra.mxu0 %v152
    %297 = vmatpush.msra.mxu0 %v151
    %298 = vmatpush.msra.mxu0 %v150
    %299 = vmatpush.msra.mxu0 %v149
    %300 = vmatpush.msra.mxu0 %v148
    %301 = vmatpush.msra.mxu0 %v147
    %302 = vmatpush.msra.mxu0 %v146
    %303 = vmatpush.msra.mxu0 %v145
    %304 = vmatpush.msra.mxu0 %v144
    %305 = vmatpush.msra.mxu0 %v143
    %306 = vmatpush.msra.mxu0 %v142
    %307 = vmatpush.msra.mxu0 %v141
    %308 = vmatpush.msra.mxu0 %v140
    %309 = vmatmul.f32.gmra.mxu0 %v291
    %v310 = vpop.f32.mrf.mxu0
    %v311 = vadd.f32 0.0, %v310
    %312 = vdwg.mxu0
    %v313 = vadd.f32 %v207, %v311
    %v314 = vtanh.pop %v313
    %315 = vmatpush.msra.mxu0 %v155
    %316 = vmatpush.msra.mxu0 %v154
    %317 = vmatpush.msra.mxu0 %v153
    %318 = vmatpush.msra.mxu0 %v152
    %319 = vmatpush.msra.mxu0 %v151
    %320 = vmatpush.msra.mxu0 %v150
    %321 = vmatpush.msra.mxu0 %v149
    %322 = vmatpush.msra.mxu0 %v148
    %323 = vmatpush.msra.mxu0 %v147
    %324 = vmatpush.msra.mxu0 %v146
    %325 = vmatpush.msra.mxu0 %v145
    %326 = vmatpush.msra.mxu0 %v144
    %327 = vmatpush.msra.mxu0 %v143
    %328 = vmatpush.msra.mxu0 %v142
    %329 = vmatpush.msra.mxu0 %v141
    %330 = vmatpush.msra.mxu0 %v140
    %331 = vmatmul.f32.gmra.mxu0 %v314
    %v332 = vpop.f32.mrf.mxu0
    %v333 = vadd.f32 0.0, %v332
    %334 = vdwg.mxu0
    %v336 = vrot.slane %v333, 6
    %v338 = vadd.f32 %v207, %v336
    %v339 = vtanh.pop %v338
    %v341 = vrot.slane %v339, 2
    %343 = vmatpush.msra.mxu0 %v155
    %344 = vmatpush.msra.mxu0 %v154
    %345 = vmatpush.msra.mxu0 %v153
    %346 = vmatpush.msra.mxu0 %v152
    %347 = vmatpush.msra.mxu0 %v151
    %348 = vmatpush.msra.mxu0 %v150
    %349 = vmatpush.msra.mxu0 %v149
    %350 = vmatpush.msra.mxu0 %v148
    %351 = vmatpush.msra.mxu0 %v147
    %352 = vmatpush.msra.mxu0 %v146
    %353 = vmatpush.msra.mxu0 %v145
    %354 = vmatpush.msra.mxu0 %v144
    %355 = vmatpush.msra.mxu0 %v143
    %356 = vmatpush.msra.mxu0 %v142
    %357 = vmatpush.msra.mxu0 %v141
    %358 = vmatpush.msra.mxu0 %v140
    %359 = vmatmul.f32.gmra.mxu0 %v341
    %v360 = vpop.f32.mrf.mxu0
    %v361 = vadd.f32 0.0, %v360
    %362 = vdwg.mxu0
    %v364 = vrot.slane %v361, 4
    %v366 = vadd.f32 %v207, %v364
    %v367 = vtanh.pop %v366
    %v369 = vrot.slane %v367, 4
    %371 = vmatpush.msra.mxu0 %v155
    %372 = vmatpush.msra.mxu0 %v154
    %373 = vmatpush.msra.mxu0 %v153
    %374 = vmatpush.msra.mxu0 %v152
    %375 = vmatpush.msra.mxu0 %v151
    %376 = vmatpush.msra.mxu0 %v150
    %377 = vmatpush.msra.mxu0 %v149
    %378 = vmatpush.msra.mxu0 %v148
    %379 = vmatpush.msra.mxu0 %v147
    %380 = vmatpush.msra.mxu0 %v146
    %381 = vmatpush.msra.mxu0 %v145
    %382 = vmatpush.msra.mxu0 %v144
    %383 = vmatpush.msra.mxu0 %v143
    %384 = vmatpush.msra.mxu0 %v142
    %385 = vmatpush.msra.mxu0 %v141
    %386 = vmatpush.msra.mxu0 %v140
    %387 = vmatmul.f32.gmra.mxu0 %v369
    %v388 = vpop.f32.mrf.mxu0
    %v389 = vadd.f32 0.0, %v388
    %390 = vdwg.mxu0
    %v392 = vrot.slane %v389, 2
    %v394 = vadd.f32 %v207, %v392
    %v395 = vtanh.pop %v394
    %v396 = vsel %vm196, %v208, %v233
    %v397 = vsel %vm198, %v396, %v261
    %v398 = vsel %vm200, %v397, %v289
    %v399 = vsel %vm196, %v314, %v339
    %v400 = vsel %vm198, %v399, %v367
    %v401 = vsel %vm200, %v400, %v395
    %v403 = vrot.slane %v395, 6
    %v405 = vrot.slane %v367, 2
    %v407 = vrot.slane %v339, 6
    %v410 = vrot.slane %v314, 2
    %v412 = vrot.slane %v261, 2
    %v414 = vrot.slane %v233, 6
    %v417 = vrot.slane %v208, 2
    %v419 = vsel %vm196, %v403, %v405
    %v420 = vsel %vm198, %v419, %v407
    %v421 = vsel %vm200, %v420, %v410
    %v422 = vsel %vm196, %v291, %v412
    %v423 = vsel %vm198, %v422, %v414
    %v424 = vsel %vm200, %v423, %v417
    %v425 = vsel %vm205, %v398, %v421
    %v426 = vsel %vm205, %v401, %v424
    %v427 = vld [vmem:[%s3] sm:$0xff]
    %v428 = vld [vmem:[%s3 + $0x8] sm:$0xff]
    %v429 = vld [vmem:[%s3 + $0x10] sm:$0xff]
    %v430 = vld [vmem:[%s3 + $0x18] sm:$0xff]
    %v431 = vld [vmem:[%s3 + $0x20] sm:$0xff]
    %v432 = vld [vmem:[%s3 + $0x28] sm:$0xff]
    %v433 = vld [vmem:[%s3 + $0x30] sm:$0xff]
    %v434 = vld [vmem:[%s3 + $0x38] sm:$0xff]
    %v435 = vld [vmem:[%s3 + $0x40] sm:$0xff]
    %v436 = vld [vmem:[%s3 + $0x48] sm:$0xff]
    %v437 = vld [vmem:[%s3 + $0x50] sm:$0xff]
    %v438 = vld [vmem:[%s3 + $0x58] sm:$0xff]
    %v439 = vld [vmem:[%s3 + $0x60] sm:$0xff]
    %v440 = vld [vmem:[%s3 + $0x68] sm:$0xff]
    %v441 = vld [vmem:[%s3 + $0x70] sm:$0xff]
    %v442 = vld [vmem:[%s3 + $0x78] sm:$0xff]
    %v443 = vld [vmem:[%s4] sm:$0xff]
    %v444 = vld [vmem:[%s4 + $0x8] sm:$0xff]
    %v445 = vld [vmem:[%s4 + $0x10] sm:$0xff]
    %v446 = vld [vmem:[%s4 + $0x18] sm:$0xff]
    %v447 = vld [vmem:[%s4 + $0x20] sm:$0xff]
    %v448 = vld [vmem:[%s4 + $0x28] sm:$0xff]
    %v449 = vld [vmem:[%s4 + $0x30] sm:$0xff]
    %v450 = vld [vmem:[%s4 + $0x38] sm:$0xff]
    %v451 = vld [vmem:[%s4 + $0x40] sm:$0xff]
    %v452 = vld [vmem:[%s4 + $0x48] sm:$0xff]
    %v453 = vld [vmem:[%s4 + $0x50] sm:$0xff]
    %v454 = vld [vmem:[%s4 + $0x58] sm:$0xff]
    %455 = vmatpush.msra.mxu0 %v442
    %456 = vmatpush.msra.mxu0 %v441
    %457 = vmatpush.msra.mxu0 %v440
    %458 = vmatpush.msra.mxu0 %v439
    %459 = vmatpush.msra.mxu0 %v438
    %460 = vmatpush.msra.mxu0 %v437
    %461 = vmatpush.msra.mxu0 %v436
    %462 = vmatpush.msra.mxu0 %v435
    %463 = vmatpush.msra.mxu0 %v434
    %464 = vmatpush.msra.mxu0 %v433
    %465 = vmatpush.msra.mxu0 %v432
    %466 = vmatpush.msra.mxu0 %v431
    %467 = vmatpush.msra.mxu0 %v430
    %468 = vmatpush.msra.mxu0 %v429
    %469 = vmatpush.msra.mxu0 %v428
    %470 = vmatpush.msra.mxu0 %v427
    %471 = vmatmul.f32.gmra.mxu0 %v425
    %v472 = vpop.f32.mrf.mxu0
    %v473 = vadd.f32 0.0, %v472
    %474 = vmatmul.f32.gmra.mxu0 %v426
    %v475 = vpop.f32.mrf.mxu0
    %v476 = vadd.f32 0.0, %v475
    %477 = vdwg.mxu0
    %v479 = vrot.slane %v476, 6
    %v481 = vrot.slane %v476, 2
    %v484 = vrot.slane %v473, 6
    %v486 = vrot.slane %v473, 2
    %v488 = vsel %vm196, %v479, %v481
    %v489 = vsel %vm198, %v488, %v479
    %v490 = vsel %vm200, %v489, %v481
    %v491 = vsel %vm196, %v484, %v486
    %v492 = vsel %vm198, %v491, %v484
    %v493 = vsel %vm200, %v492, %v486
    %vm494 = vcmask 392192
    %v495 = vsel %vm494, %v473, %v490
    %v496 = vsel %vm494, %v476, %v493
    %v497 = vtanh.pop %v495
    %vm498 = vcmask 785408
    %v500 = vsel %vm498, %v497, 0
    %502 = vmatpush.msra.mxu0 0.0
    %503 = vmatpush.msra.mxu0 0.0
    %504 = vmatpush.msra.mxu0 0.0
    %505 = vmatpush.msra.mxu0 0.0
    %506 = vmatpush.msra.mxu0 %v454
    %507 = vmatpush.msra.mxu0 %v453
    %508 = vmatpush.msra.mxu0 %v452
    %509 = vmatpush.msra.mxu0 %v451
    %510 = vmatpush.msra.mxu0 %v450
    %511 = vmatpush.msra.mxu0 %v449
    %512 = vmatpush.msra.mxu0 %v448
    %513 = vmatpush.msra.mxu0 %v447
    %514 = vmatpush.msra.mxu0 %v446
    %515 = vmatpush.msra.mxu0 %v445
    %516 = vmatpush.msra.mxu0 %v444
    %517 = vmatpush.msra.mxu0 %v443
    %518 = vmatmul.f32.gmra.mxu0 %v500
    %v519 = vpop.f32.mrf.mxu0
    %v520 = vadd.f32 0.0, %v519
    %521 = vdwg.mxu0
    %v523 = vrot.slane %v520, 6
    %v525 = vadd.f32 %v495, %v523
    %v526 = vtanh.pop %v525
    %v528 = vrot.slane %v526, 2
    %v529 = vsel %vm498, %v528, 0
    %531 = vmatpush.msra.mxu0 0.0
    %532 = vmatpush.msra.mxu0 0.0
    %533 = vmatpush.msra.mxu0 0.0
    %534 = vmatpush.msra.mxu0 0.0
    %535 = vmatpush.msra.mxu0 %v454
    %536 = vmatpush.msra.mxu0 %v453
    %537 = vmatpush.msra.mxu0 %v452
    %538 = vmatpush.msra.mxu0 %v451
    %539 = vmatpush.msra.mxu0 %v450
    %540 = vmatpush.msra.mxu0 %v449
    %541 = vmatpush.msra.mxu0 %v448
    %542 = vmatpush.msra.mxu0 %v447
    %543 = vmatpush.msra.mxu0 %v446
    %544 = vmatpush.msra.mxu0 %v445
    %545 = vmatpush.msra.mxu0 %v444
    %546 = vmatpush.msra.mxu0 %v443
    %547 = vmatmul.f32.gmra.mxu0 %v529
    %v548 = vpop.f32.mrf.mxu0
    %v549 = vadd.f32 0.0, %v548
    %550 = vdwg.mxu0
    %v552 = vrot.slane %v549, 4
    %v554 = vadd.f32 %v495, %v552
    %v555 = vtanh.pop %v554
    %v557 = vrot.slane %v555, 4
    %v558 = vsel %vm498, %v557, 0
    %560 = vmatpush.msra.mxu0 0.0
    %561 = vmatpush.msra.mxu0 0.0
    %562 = vmatpush.msra.mxu0 0.0
    %563 = vmatpush.msra.mxu0 0.0
    %564 = vmatpush.msra.mxu0 %v454
    %565 = vmatpush.msra.mxu0 %v453
    %566 = vmatpush.msra.mxu0 %v452
    %567 = vmatpush.msra.mxu0 %v451
    %568 = vmatpush.msra.mxu0 %v450
    %569 = vmatpush.msra.mxu0 %v449
    %570 = vmatpush.msra.mxu0 %v448
    %571 = vmatpush.msra.mxu0 %v447
    %572 = vmatpush.msra.mxu0 %v446
    %573 = vmatpush.msra.mxu0 %v445
    %574 = vmatpush.msra.mxu0 %v444
    %575 = vmatpush.msra.mxu0 %v443
    %576 = vmatmul.f32.gmra.mxu0 %v558
    %v577 = vpop.f32.mrf.mxu0
    %v578 = vadd.f32 0.0, %v577
    %579 = vdwg.mxu0
    %v581 = vrot.slane %v578, 2
    %v583 = vadd.f32 %v495, %v581
    %v584 = vtanh.pop %v583
    %v586 = vrot.slane %v584, 6
    %v587 = vsel %vm498, %v586, 0
    %589 = vmatpush.msra.mxu0 0.0
    %590 = vmatpush.msra.mxu0 0.0
    %591 = vmatpush.msra.mxu0 0.0
    %592 = vmatpush.msra.mxu0 0.0
    %593 = vmatpush.msra.mxu0 %v454
    %594 = vmatpush.msra.mxu0 %v453
    %595 = vmatpush.msra.mxu0 %v452
    %596 = vmatpush.msra.mxu0 %v451
    %597 = vmatpush.msra.mxu0 %v450
    %598 = vmatpush.msra.mxu0 %v449
    %599 = vmatpush.msra.mxu0 %v448
    %600 = vmatpush.msra.mxu0 %v447
    %601 = vmatpush.msra.mxu0 %v446
    %602 = vmatpush.msra.mxu0 %v445
    %603 = vmatpush.msra.mxu0 %v444
    %604 = vmatpush.msra.mxu0 %v443
    %605 = vmatmul.f32.gmra.mxu0 %v587
    %v606 = vpop.f32.mrf.mxu0
    %v607 = vadd.f32 0.0, %v606
    %608 = vdwg.mxu0
    %v609 = vadd.f32 %v496, %v607
    %v610 = vtanh.pop %v609
    %v612 = vsel %vm498, %v610, 0
    %614 = vmatpush.msra.mxu0 0.0
    %615 = vmatpush.msra.mxu0 0.0
    %616 = vmatpush.msra.mxu0 0.0
    %617 = vmatpush.msra.mxu0 0.0
    %618 = vmatpush.msra.mxu0 %v454
    %619 = vmatpush.msra.mxu0 %v453
    %620 = vmatpush.msra.mxu0 %v452
    %621 = vmatpush.msra.mxu0 %v451
    %622 = vmatpush.msra.mxu0 %v450
    %623 = vmatpush.msra.mxu0 %v449
    %624 = vmatpush.msra.mxu0 %v448
    %625 = vmatpush.msra.mxu0 %v447
    %626 = vmatpush.msra.mxu0 %v446
    %627 = vmatpush.msra.mxu0 %v445
    %628 = vmatpush.msra.mxu0 %v444
    %629 = vmatpush.msra.mxu0 %v443
    %630 = vmatmul.f32.gmra.mxu0 %v612
    %v631 = vpop.f32.mrf.mxu0
    %v632 = vadd.f32 0.0, %v631
    %633 = vdwg.mxu0
    %v635 = vrot.slane %v632, 6
    %v637 = vadd.f32 %v496, %v635
    %v638 = vtanh.pop %v637
    %v640 = vrot.slane %v638, 2
    %v641 = vsel %vm498, %v640, 0
    %643 = vmatpush.msra.mxu0 0.0
    %644 = vmatpush.msra.mxu0 0.0
    %645 = vmatpush.msra.mxu0 0.0
    %646 = vmatpush.msra.mxu0 0.0
    %647 = vmatpush.msra.mxu0 %v454
    %648 = vmatpush.msra.mxu0 %v453
    %649 = vmatpush.msra.mxu0 %v452
    %650 = vmatpush.msra.mxu0 %v451
    %651 = vmatpush.msra.mxu0 %v450
    %652 = vmatpush.msra.mxu0 %v449
    %653 = vmatpush.msra.mxu0 %v448
    %654 = vmatpush.msra.mxu0 %v447
    %655 = vmatpush.msra.mxu0 %v446
    %656 = vmatpush.msra.mxu0 %v445
    %657 = vmatpush.msra.mxu0 %v444
    %658 = vmatpush.msra.mxu0 %v443
    %659 = vmatmul.f32.gmra.mxu0 %v641
    %v660 = vpop.f32.mrf.mxu0
    %v661 = vadd.f32 0.0, %v660
    %662 = vdwg.mxu0
    %v664 = vrot.slane %v661, 4
    %v666 = vadd.f32 %v496, %v664
    %v667 = vtanh.pop %v666
    %v669 = vrot.slane %v667, 4
    %v670 = vsel %vm498, %v669, 0
    %672 = vmatpush.msra.mxu0 0.0
    %673 = vmatpush.msra.mxu0 0.0
    %674 = vmatpush.msra.mxu0 0.0
    %675 = vmatpush.msra.mxu0 0.0
    %676 = vmatpush.msra.mxu0 %v454
    %677 = vmatpush.msra.mxu0 %v453
    %678 = vmatpush.msra.mxu0 %v452
    %679 = vmatpush.msra.mxu0 %v451
    %680 = vmatpush.msra.mxu0 %v450
    %681 = vmatpush.msra.mxu0 %v449
    %682 = vmatpush.msra.mxu0 %v448
    %683 = vmatpush.msra.mxu0 %v447
    %684 = vmatpush.msra.mxu0 %v446
    %685 = vmatpush.msra.mxu0 %v445
    %686 = vmatpush.msra.mxu0 %v444
    %687 = vmatpush.msra.mxu0 %v443
    %688 = vmatmul.f32.gmra.mxu0 %v670
    %v689 = vpop.f32.mrf.mxu0
    %v690 = vadd.f32 0.0, %v689
    %691 = vdwg.mxu0
    %v693 = vrot.slane %v690, 2
    %v695 = vadd.f32 %v496, %v693
    %v696 = vtanh.pop %v695
    %v697 = vsel %vm196, %v497, %v526
    %v698 = vsel %vm198, %v697, %v555
    %v699 = vsel %vm200, %v698, %v584
    %v700 = vsel %vm196, %v610, %v638
    %v701 = vsel %vm198, %v700, %v667
    %v702 = vsel %vm200, %v701, %v696
    %v704 = vrot.slane %v696, 6
    %v706 = vrot.slane %v667, 2
    %v708 = vrot.slane %v638, 6
    %v710 = vrot.slane %v610, 2
    %v713 = vrot.slane %v555, 2
    %v715 = vrot.slane %v526, 6
    %v717 = vrot.slane %v497, 2
    %v719 = vsel %vm196, %v704, %v706
    %v720 = vsel %vm198, %v719, %v708
    %v721 = vsel %vm200, %v720, %v710
    %v722 = vsel %vm196, %v586, %v713
    %v723 = vsel %vm198, %v722, %v715
    %v724 = vsel %vm200, %v723, %v717
    %v725 = vsel %vm494, %v699, %v721
    %v726 = vsel %vm494, %v702, %v724
    %v727 = vld [vmem:[%s5] sm:$0xff]
    %v728 = vld [vmem:[%s5 + $0x8] sm:$0xff]
    %v729 = vld [vmem:[%s5 + $0x10] sm:$0xff]
    %v730 = vld [vmem:[%s5 + $0x18] sm:$0xff]
    %v731 = vld [vmem:[%s5 + $0x20] sm:$0xff]
    %v732 = vld [vmem:[%s5 + $0x28] sm:$0xff]
    %v733 = vld [vmem:[%s5 + $0x30] sm:$0xff]
    %v734 = vld [vmem:[%s5 + $0x38] sm:$0xff]
    %v735 = vld [vmem:[%s5 + $0x40] sm:$0xff]
    %v736 = vld [vmem:[%s5 + $0x48] sm:$0xff]
    %v737 = vld [vmem:[%s5 + $0x50] sm:$0xff]
    %v738 = vld [vmem:[%s5 + $0x58] sm:$0xff]
    %v739 = vld [vmem:[%s6] sm:$0xff]
    %v740 = vld [vmem:[%s6 + $0x8] sm:$0xff]
    %v741 = vld [vmem:[%s6 + $0x10] sm:$0xff]
    %v742 = vld [vmem:[%s6 + $0x18] sm:$0xff]
    %v743 = vld [vmem:[%s6 + $0x20] sm:$0xff]
    %v744 = vld [vmem:[%s6 + $0x28] sm:$0xff]
    %v745 = vld [vmem:[%s6 + $0x30] sm:$0xff]
    %v746 = vld [vmem:[%s6 + $0x38] sm:$0xff]
    %v747 = vld [vmem:[%s6 + $0x40] sm:$0xff]
    %v748 = vld [vmem:[%s6 + $0x48] sm:$0xff]
    %v749 = vld [vmem:[%s6 + $0x50] sm:$0xff]
    %v750 = vld [vmem:[%s6 + $0x58] sm:$0xff]
    %v752 = vsel %vm498, %v725, 0
    %v755 = vsel %vm498, %v726, 0
    %757 = vmatpush.msra.mxu0 0.0
    %758 = vmatpush.msra.mxu0 0.0
    %759 = vmatpush.msra.mxu0 0.0
    %760 = vmatpush.msra.mxu0 0.0
    %761 = vmatpush.msra.mxu0 %v738
    %762 = vmatpush.msra.mxu0 %v737
    %763 = vmatpush.msra.mxu0 %v736
    %764 = vmatpush.msra.mxu0 %v735
    %765 = vmatpush.msra.mxu0 %v734
    %766 = vmatpush.msra.mxu0 %v733
    %767 = vmatpush.msra.mxu0 %v732
    %768 = vmatpush.msra.mxu0 %v731
    %769 = vmatpush.msra.mxu0 %v730
    %770 = vmatpush.msra.mxu0 %v729
    %771 = vmatpush.msra.mxu0 %v728
    %772 = vmatpush.msra.mxu0 %v727
    %773 = vmatmul.f32.gmra.mxu0 %v752
    %v774 = vpop.f32.mrf.mxu0
    %v775 = vadd.f32 0.0, %v774
    %776 = vmatmul.f32.gmra.mxu0 %v755
    %v777 = vpop.f32.mrf.mxu0
    %v778 = vadd.f32 0.0, %v777
    %779 = vdwg.mxu0
    %v781 = vrot.slane %v778, 6
    %v783 = vrot.slane %v778, 2
    %v786 = vrot.slane %v775, 6
    %v788 = vrot.slane %v775, 2
    %v790 = vsel %vm196, %v781, %v783
    %v791 = vsel %vm198, %v790, %v781
    %v792 = vsel %vm200, %v791, %v783
    %v793 = vsel %vm196, %v786, %v788
    %v794 = vsel %vm198, %v793, %v786
    %v795 = vsel %vm200, %v794, %v788
    %v796 = vsel %vm494, %v775, %v792
    %v797 = vsel %vm494, %v778, %v795
    %v798 = vtanh.pop %v796
    %v800 = vsel %vm498, %v798, 0
    %802 = vmatpush.msra.mxu0 0.0
    %803 = vmatpush.msra.mxu0 0.0
    %804 = vmatpush.msra.mxu0 0.0
    %805 = vmatpush.msra.mxu0 0.0
    %806 = vmatpush.msra.mxu0 %v750
    %807 = vmatpush.msra.mxu0 %v749
    %808 = vmatpush.msra.mxu0 %v748
    %809 = vmatpush.msra.mxu0 %v747
    %810 = vmatpush.msra.mxu0 %v746
    %811 = vmatpush.msra.mxu0 %v745
    %812 = vmatpush.msra.mxu0 %v744
    %813 = vmatpush.msra.mxu0 %v743
    %814 = vmatpush.msra.mxu0 %v742
    %815 = vmatpush.msra.mxu0 %v741
    %816 = vmatpush.msra.mxu0 %v740
    %817 = vmatpush.msra.mxu0 %v739
    %818 = vmatmul.f32.gmra.mxu0 %v800
    %v819 = vpop.f32.mrf.mxu0
    %v820 = vadd.f32 0.0, %v819
    %821 = vdwg.mxu0
    %v823 = vrot.slane %v820, 6
    %v825 = vadd.f32 %v796, %v823
    %v826 = vtanh.pop %v825
    %v828 = vrot.slane %v826, 2
    %v829 = vsel %vm498, %v828, 0
    %831 = vmatpush.msra.mxu0 0.0
    %832 = vmatpush.msra.mxu0 0.0
    %833 = vmatpush.msra.mxu0 0.0
    %834 = vmatpush.msra.mxu0 0.0
    %835 = vmatpush.msra.mxu0 %v750
    %836 = vmatpush.msra.mxu0 %v749
    %837 = vmatpush.msra.mxu0 %v748
    %838 = vmatpush.msra.mxu0 %v747
    %839 = vmatpush.msra.mxu0 %v746
    %840 = vmatpush.msra.mxu0 %v745
    %841 = vmatpush.msra.mxu0 %v744
    %842 = vmatpush.msra.mxu0 %v743
    %843 = vmatpush.msra.mxu0 %v742
    %844 = vmatpush.msra.mxu0 %v741
    %845 = vmatpush.msra.mxu0 %v740
    %846 = vmatpush.msra.mxu0 %v739
    %847 = vmatmul.f32.gmra.mxu0 %v829
    %v848 = vpop.f32.mrf.mxu0
    %v849 = vadd.f32 0.0, %v848
    %850 = vdwg.mxu0
    %v852 = vrot.slane %v849, 4
    %v854 = vadd.f32 %v796, %v852
    %v855 = vtanh.pop %v854
    %v857 = vrot.slane %v855, 4
    %v858 = vsel %vm498, %v857, 0
    %860 = vmatpush.msra.mxu0 0.0
    %861 = vmatpush.msra.mxu0 0.0
    %862 = vmatpush.msra.mxu0 0.0
    %863 = vmatpush.msra.mxu0 0.0
    %864 = vmatpush.msra.mxu0 %v750
    %865 = vmatpush.msra.mxu0 %v749
    %866 = vmatpush.msra.mxu0 %v748
    %867 = vmatpush.msra.mxu0 %v747
    %868 = vmatpush.msra.mxu0 %v746
    %869 = vmatpush.msra.mxu0 %v745
    %870 = vmatpush.msra.mxu0 %v744
    %871 = vmatpush.msra.mxu0 %v743
    %872 = vmatpush.msra.mxu0 %v742
    %873 = vmatpush.msra.mxu0 %v741
    %874 = vmatpush.msra.mxu0 %v740
    %875 = vmatpush.msra.mxu0 %v739
    %876 = vmatmul.f32.gmra.mxu0 %v858
    %v877 = vpop.f32.mrf.mxu0
    %v878 = vadd.f32 0.0, %v877
    %879 = vdwg.mxu0
    %v881 = vrot.slane %v878, 2
    %v883 = vadd.f32 %v796, %v881
    %v884 = vtanh.pop %v883
    %v886 = vrot.slane %v884, 6
    %v887 = vsel %vm498, %v886, 0
    %889 = vmatpush.msra.mxu0 0.0
    %890 = vmatpush.msra.mxu0 0.0
    %891 = vmatpush.msra.mxu0 0.0
    %892 = vmatpush.msra.mxu0 0.0
    %893 = vmatpush.msra.mxu0 %v750
    %894 = vmatpush.msra.mxu0 %v749
    %895 = vmatpush.msra.mxu0 %v748
    %896 = vmatpush.msra.mxu0 %v747
    %897 = vmatpush.msra.mxu0 %v746
    %898 = vmatpush.msra.mxu0 %v745
    %899 = vmatpush.msra.mxu0 %v744
    %900 = vmatpush.msra.mxu0 %v743
    %901 = vmatpush.msra.mxu0 %v742
    %902 = vmatpush.msra.mxu0 %v741
    %903 = vmatpush.msra.mxu0 %v740
    %904 = vmatpush.msra.mxu0 %v739
    %905 = vmatmul.f32.gmra.mxu0 %v887
    %v906 = vpop.f32.mrf.mxu0
    %v907 = vadd.f32 0.0, %v906
    %908 = vdwg.mxu0
    %v909 = vadd.f32 %v797, %v907
    %v910 = vtanh.pop %v909
    %v912 = vsel %vm498, %v910, 0
    %914 = vmatpush.msra.mxu0 0.0
    %915 = vmatpush.msra.mxu0 0.0
    %916 = vmatpush.msra.mxu0 0.0
    %917 = vmatpush.msra.mxu0 0.0
    %918 = vmatpush.msra.mxu0 %v750
    %919 = vmatpush.msra.mxu0 %v749
    %920 = vmatpush.msra.mxu0 %v748
    %921 = vmatpush.msra.mxu0 %v747
    %922 = vmatpush.msra.mxu0 %v746
    %923 = vmatpush.msra.mxu0 %v745
    %924 = vmatpush.msra.mxu0 %v744
    %925 = vmatpush.msra.mxu0 %v743
    %926 = vmatpush.msra.mxu0 %v742
    %927 = vmatpush.msra.mxu0 %v741
    %928 = vmatpush.msra.mxu0 %v740
    %929 = vmatpush.msra.mxu0 %v739
    %930 = vmatmul.f32.gmra.mxu0 %v912
    %v931 = vpop.f32.mrf.mxu0
    %v932 = vadd.f32 0.0, %v931
    %933 = vdwg.mxu0
    %v935 = vrot.slane %v932, 6
    %v937 = vadd.f32 %v797, %v935
    %v938 = vtanh.pop %v937
    %v940 = vrot.slane %v938, 2
    %v941 = vsel %vm498, %v940, 0
    %943 = vmatpush.msra.mxu0 0.0
    %944 = vmatpush.msra.mxu0 0.0
    %945 = vmatpush.msra.mxu0 0.0
    %946 = vmatpush.msra.mxu0 0.0
    %947 = vmatpush.msra.mxu0 %v750
    %948 = vmatpush.msra.mxu0 %v749
    %949 = vmatpush.msra.mxu0 %v748
    %950 = vmatpush.msra.mxu0 %v747
    %951 = vmatpush.msra.mxu0 %v746
    %952 = vmatpush.msra.mxu0 %v745
    %953 = vmatpush.msra.mxu0 %v744
    %954 = vmatpush.msra.mxu0 %v743
    %955 = vmatpush.msra.mxu0 %v742
    %956 = vmatpush.msra.mxu0 %v741
    %957 = vmatpush.msra.mxu0 %v740
    %958 = vmatpush.msra.mxu0 %v739
    %959 = vmatmul.f32.gmra.mxu0 %v941
    %v960 = vpop.f32.mrf.mxu0
    %v961 = vadd.f32 0.0, %v960
    %962 = vdwg.mxu0
    %v964 = vrot.slane %v961, 4
    %v966 = vadd.f32 %v797, %v964
    %v967 = vtanh.pop %v966
    %v969 = vrot.slane %v967, 4
    %v970 = vsel %vm498, %v969, 0
    %972 = vmatpush.msra.mxu0 0.0
    %973 = vmatpush.msra.mxu0 0.0
    %974 = vmatpush.msra.mxu0 0.0
    %975 = vmatpush.msra.mxu0 0.0
    %976 = vmatpush.msra.mxu0 %v750
    %977 = vmatpush.msra.mxu0 %v749
    %978 = vmatpush.msra.mxu0 %v748
    %979 = vmatpush.msra.mxu0 %v747
    %980 = vmatpush.msra.mxu0 %v746
    %981 = vmatpush.msra.mxu0 %v745
    %982 = vmatpush.msra.mxu0 %v744
    %983 = vmatpush.msra.mxu0 %v743
    %984 = vmatpush.msra.mxu0 %v742
    %985 = vmatpush.msra.mxu0 %v741
    %986 = vmatpush.msra.mxu0 %v740
    %987 = vmatpush.msra.mxu0 %v739
    %988 = vmatmul.f32.gmra.mxu0 %v970
    %v989 = vpop.f32.mrf.mxu0
    %v990 = vadd.f32 0.0, %v989
    %991 = vdwg.mxu0
    %v993 = vrot.slane %v990, 2
    %v995 = vadd.f32 %v797, %v993
    %v996 = vtanh.pop %v995
    %v997 = vsel %vm196, %v798, %v826
    %v998 = vsel %vm198, %v997, %v855
    %v999 = vsel %vm200, %v998, %v884
    %v1000 = vsel %vm196, %v910, %v938
    %v1001 = vsel %vm198, %v1000, %v967
    %v1002 = vsel %vm200, %v1001, %v996
    %v1004 = vrot.slane %v996, 6
    %v1006 = vrot.slane %v967, 2
    %v1008 = vrot.slane %v938, 6
    %v1010 = vrot.slane %v910, 2
    %v1013 = vrot.slane %v855, 2
    %v1015 = vrot.slane %v826, 6
    %v1017 = vrot.slane %v798, 2
    %v1019 = vsel %vm196, %v1004, %v1006
    %v1020 = vsel %vm198, %v1019, %v1008
    %v1021 = vsel %vm200, %v1020, %v1010
    %v1022 = vsel %vm196, %v886, %v1013
    %v1023 = vsel %vm198, %v1022, %v1015
    %v1024 = vsel %vm200, %v1023, %v1017
    %v1025 = vsel %vm494, %v999, %v1021
    %v1026 = vsel %vm494, %v1002, %v1024
    %v1027 = vld [vmem:[%s7] sm:$0xff]
    %v1028 = vld [vmem:[%s7 + $0x8] sm:$0xff]
    %v1029 = vld [vmem:[%s7 + $0x10] sm:$0xff]
    %v1030 = vld [vmem:[%s7 + $0x18] sm:$0xff]
    %v1031 = vld [vmem:[%s7 + $0x20] sm:$0xff]
    %v1032 = vld [vmem:[%s7 + $0x28] sm:$0xff]
    %v1033 = vld [vmem:[%s7 + $0x30] sm:$0xff]
    %v1034 = vld [vmem:[%s7 + $0x38] sm:$0xff]
    %v1035 = vld [vmem:[%s7 + $0x40] sm:$0xff]
    %v1036 = vld [vmem:[%s7 + $0x48] sm:$0xff]
    %v1037 = vld [vmem:[%s7 + $0x50] sm:$0xff]
    %v1038 = vld [vmem:[%s7 + $0x58] sm:$0xff]
    %v1039 = vld [vmem:[%s8] sm:$0xff]
    %v1040 = vld [vmem:[%s8 + $0x8] sm:$0xff]
    %v1041 = vld [vmem:[%s8 + $0x10] sm:$0xff]
    %v1042 = vld [vmem:[%s8 + $0x18] sm:$0xff]
    %v1043 = vld [vmem:[%s8 + $0x20] sm:$0xff]
    %v1044 = vld [vmem:[%s8 + $0x28] sm:$0xff]
    %v1045 = vld [vmem:[%s8 + $0x30] sm:$0xff]
    %v1046 = vld [vmem:[%s8 + $0x38] sm:$0xff]
    %v1048 = vsel %vm498, %v1025, 0
    %v1051 = vsel %vm498, %v1026, 0
    %1053 = vmatpush.msra.mxu0 0.0
    %1054 = vmatpush.msra.mxu0 0.0
    %1055 = vmatpush.msra.mxu0 0.0
    %1056 = vmatpush.msra.mxu0 0.0
    %1057 = vmatpush.msra.mxu0 %v1038
    %1058 = vmatpush.msra.mxu0 %v1037
    %1059 = vmatpush.msra.mxu0 %v1036
    %1060 = vmatpush.msra.mxu0 %v1035
    %1061 = vmatpush.msra.mxu0 %v1034
    %1062 = vmatpush.msra.mxu0 %v1033
    %1063 = vmatpush.msra.mxu0 %v1032
    %1064 = vmatpush.msra.mxu0 %v1031
    %1065 = vmatpush.msra.mxu0 %v1030
    %1066 = vmatpush.msra.mxu0 %v1029
    %1067 = vmatpush.msra.mxu0 %v1028
    %1068 = vmatpush.msra.mxu0 %v1027
    %1069 = vmatmul.f32.gmra.mxu0 %v1048
    %v1070 = vpop.f32.mrf.mxu0
    %v1071 = vadd.f32 0.0, %v1070
    %1072 = vmatmul.f32.gmra.mxu0 %v1051
    %v1073 = vpop.f32.mrf.mxu0
    %v1074 = vadd.f32 0.0, %v1073
    %1075 = vdwg.mxu0
    %v1077 = vrot.slane %v1074, 6
    %v1079 = vrot.slane %v1074, 2
    %v1082 = vrot.slane %v1071, 6
    %v1084 = vrot.slane %v1071, 2
    %v1086 = vsel %vm196, %v1077, %v1079
    %v1087 = vsel %vm198, %v1086, %v1077
    %v1088 = vsel %vm200, %v1087, %v1079
    %v1089 = vsel %vm196, %v1082, %v1084
    %v1090 = vsel %vm198, %v1089, %v1082
    %v1091 = vsel %vm200, %v1090, %v1084
    %vm1092 = vcmask 261120
    %v1093 = vsel %vm1092, %v1071, %v1088
    %v1094 = vsel %vm1092, %v1074, %v1091
    %v1095 = vtanh.pop %v1093
    %v1097 = vsel %vm205, %v1095, 0
    %1099 = vmatpush.msra.mxu0 0.0
    %1100 = vmatpush.msra.mxu0 0.0
    %1101 = vmatpush.msra.mxu0 0.0
    %1102 = vmatpush.msra.mxu0 0.0
    %1103 = vmatpush.msra.mxu0 0.0
    %1104 = vmatpush.msra.mxu0 0.0
    %1105 = vmatpush.msra.mxu0 0.0
    %1106 = vmatpush.msra.mxu0 0.0
    %1107 = vmatpush.msra.mxu0 %v1046
    %1108 = vmatpush.msra.mxu0 %v1045
    %1109 = vmatpush.msra.mxu0 %v1044
    %1110 = vmatpush.msra.mxu0 %v1043
    %1111 = vmatpush.msra.mxu0 %v1042
    %1112 = vmatpush.msra.mxu0 %v1041
    %1113 = vmatpush.msra.mxu0 %v1040
    %1114 = vmatpush.msra.mxu0 %v1039
    %1115 = vmatmul.f32.gmra.mxu0 %v1097
    %v1116 = vpop.f32.mrf.mxu0
    %v1117 = vadd.f32 0.0, %v1116
    %1118 = vdwg.mxu0
    %v1120 = vrot.slane %v1117, 6
    %v1122 = vadd.f32 %v1093, %v1120
    %v1123 = vtanh.pop %v1122
    %v1125 = vrot.slane %v1123, 2
    %v1126 = vsel %vm205, %v1125, 0
    %1128 = vmatpush.msra.mxu0 0.0
    %1129 = vmatpush.msra.mxu0 0.0
    %1130 = vmatpush.msra.mxu0 0.0
    %1131 = vmatpush.msra.mxu0 0.0
    %1132 = vmatpush.msra.mxu0 0.0
    %1133 = vmatpush.msra.mxu0 0.0
    %1134 = vmatpush.msra.mxu0 0.0
    %1135 = vmatpush.msra.mxu0 0.0
    %1136 = vmatpush.msra.mxu0 %v1046
    %1137 = vmatpush.msra.mxu0 %v1045
    %1138 = vmatpush.msra.mxu0 %v1044
    %1139 = vmatpush.msra.mxu0 %v1043
    %1140 = vmatpush.msra.mxu0 %v1042
    %1141 = vmatpush.msra.mxu0 %v1041
    %1142 = vmatpush.msra.mxu0 %v1040
    %1143 = vmatpush.msra.mxu0 %v1039
    %1144 = vmatmul.f32.gmra.mxu0 %v1126
    %v1145 = vpop.f32.mrf.mxu0
    %v1146 = vadd.f32 0.0, %v1145
    %1147 = vdwg.mxu0
    %v1149 = vrot.slane %v1146, 4
    %v1151 = vadd.f32 %v1093, %v1149
    %v1152 = vtanh.pop %v1151
    %v1154 = vrot.slane %v1152, 4
    %v1155 = vsel %vm205, %v1154, 0
    %1157 = vmatpush.msra.mxu0 0.0
    %1158 = vmatpush.msra.mxu0 0.0
    %1159 = vmatpush.msra.mxu0 0.0
    %1160 = vmatpush.msra.mxu0 0.0
    %1161 = vmatpush.msra.mxu0 0.0
    %1162 = vmatpush.msra.mxu0 0.0
    %1163 = vmatpush.msra.mxu0 0.0
    %1164 = vmatpush.msra.mxu0 0.0
    %1165 = vmatpush.msra.mxu0 %v1046
    %1166 = vmatpush.msra.mxu0 %v1045
    %1167 = vmatpush.msra.mxu0 %v1044
    %1168 = vmatpush.msra.mxu0 %v1043
    %1169 = vmatpush.msra.mxu0 %v1042
    %1170 = vmatpush.msra.mxu0 %v1041
    %1171 = vmatpush.msra.mxu0 %v1040
    %1172 = vmatpush.msra.mxu0 %v1039
    %1173 = vmatmul.f32.gmra.mxu0 %v1155
    %v1174 = vpop.f32.mrf.mxu0
    %v1175 = vadd.f32 0.0, %v1174
    %1176 = vdwg.mxu0
    %v1178 = vrot.slane %v1175, 2
    %v1180 = vadd.f32 %v1093, %v1178
    %v1181 = vtanh.pop %v1180
    %v1183 = vrot.slane %v1181, 6
    %v1184 = vsel %vm205, %v1183, 0
    %1186 = vmatpush.msra.mxu0 0.0
    %1187 = vmatpush.msra.mxu0 0.0
    %1188 = vmatpush.msra.mxu0 0.0
    %1189 = vmatpush.msra.mxu0 0.0
    %1190 = vmatpush.msra.mxu0 0.0
    %1191 = vmatpush.msra.mxu0 0.0
    %1192 = vmatpush.msra.mxu0 0.0
    %1193 = vmatpush.msra.mxu0 0.0
    %1194 = vmatpush.msra.mxu0 %v1046
    %1195 = vmatpush.msra.mxu0 %v1045
    %1196 = vmatpush.msra.mxu0 %v1044
    %1197 = vmatpush.msra.mxu0 %v1043
    %1198 = vmatpush.msra.mxu0 %v1042
    %1199 = vmatpush.msra.mxu0 %v1041
    %1200 = vmatpush.msra.mxu0 %v1040
    %1201 = vmatpush.msra.mxu0 %v1039
    %1202 = vmatmul.f32.gmra.mxu0 %v1184
    %v1203 = vpop.f32.mrf.mxu0
    %v1204 = vadd.f32 0.0, %v1203
    %1205 = vdwg.mxu0
    %v1206 = vadd.f32 %v1094, %v1204
    %v1207 = vtanh.pop %v1206
    %v1209 = vsel %vm205, %v1207, 0
    %1211 = vmatpush.msra.mxu0 0.0
    %1212 = vmatpush.msra.mxu0 0.0
    %1213 = vmatpush.msra.mxu0 0.0
    %1214 = vmatpush.msra.mxu0 0.0
    %1215 = vmatpush.msra.mxu0 0.0
    %1216 = vmatpush.msra.mxu0 0.0
    %1217 = vmatpush.msra.mxu0 0.0
    %1218 = vmatpush.msra.mxu0 0.0
    %1219 = vmatpush.msra.mxu0 %v1046
    %1220 = vmatpush.msra.mxu0 %v1045
    %1221 = vmatpush.msra.mxu0 %v1044
    %1222 = vmatpush.msra.mxu0 %v1043
    %1223 = vmatpush.msra.mxu0 %v1042
    %1224 = vmatpush.msra.mxu0 %v1041
    %1225 = vmatpush.msra.mxu0 %v1040
    %1226 = vmatpush.msra.mxu0 %v1039
    %1227 = vmatmul.f32.gmra.mxu0 %v1209
    %v1228 = vpop.f32.mrf.mxu0
    %v1229 = vadd.f32 0.0, %v1228
    %1230 = vdwg.mxu0
    %v1232 = vrot.slane %v1229, 6
    %v1234 = vadd.f32 %v1094, %v1232
    %v1235 = vtanh.pop %v1234
    %v1237 = vrot.slane %v1235, 2
    %v1238 = vsel %vm205, %v1237, 0
    %1240 = vmatpush.msra.mxu0 0.0
    %1241 = vmatpush.msra.mxu0 0.0
    %1242 = vmatpush.msra.mxu0 0.0
    %1243 = vmatpush.msra.mxu0 0.0
    %1244 = vmatpush.msra.mxu0 0.0
    %1245 = vmatpush.msra.mxu0 0.0
    %1246 = vmatpush.msra.mxu0 0.0
    %1247 = vmatpush.msra.mxu0 0.0
    %1248 = vmatpush.msra.mxu0 %v1046
    %1249 = vmatpush.msra.mxu0 %v1045
    %1250 = vmatpush.msra.mxu0 %v1044
    %1251 = vmatpush.msra.mxu0 %v1043
    %1252 = vmatpush.msra.mxu0 %v1042
    %1253 = vmatpush.msra.mxu0 %v1041
    %1254 = vmatpush.msra.mxu0 %v1040
    %1255 = vmatpush.msra.mxu0 %v1039
    %1256 = vmatmul.f32.gmra.mxu0 %v1238
    %v1257 = vpop.f32.mrf.mxu0
    %v1258 = vadd.f32 0.0, %v1257
    %1259 = vdwg.mxu0
    %v1261 = vrot.slane %v1258, 4
    %v1263 = vadd.f32 %v1094, %v1261
    %v1264 = vtanh.pop %v1263
    %v1266 = vrot.slane %v1264, 4
    %v1267 = vsel %vm205, %v1266, 0
    %1269 = vmatpush.msra.mxu0 0.0
    %1270 = vmatpush.msra.mxu0 0.0
    %1271 = vmatpush.msra.mxu0 0.0
    %1272 = vmatpush.msra.mxu0 0.0
    %1273 = vmatpush.msra.mxu0 0.0
    %1274 = vmatpush.msra.mxu0 0.0
    %1275 = vmatpush.msra.mxu0 0.0
    %1276 = vmatpush.msra.mxu0 0.0
    %1277 = vmatpush.msra.mxu0 %v1046
    %1278 = vmatpush.msra.mxu0 %v1045
    %1279 = vmatpush.msra.mxu0 %v1044
    %1280 = vmatpush.msra.mxu0 %v1043
    %1281 = vmatpush.msra.mxu0 %v1042
    %1282 = vmatpush.msra.mxu0 %v1041
    %1283 = vmatpush.msra.mxu0 %v1040
    %1284 = vmatpush.msra.mxu0 %v1039
    %1285 = vmatmul.f32.gmra.mxu0 %v1267
    %v1286 = vpop.f32.mrf.mxu0
    %v1287 = vadd.f32 0.0, %v1286
    %1288 = vdwg.mxu0
    %v1290 = vrot.slane %v1287, 2
    %v1292 = vadd.f32 %v1094, %v1290
    %v1293 = vtanh.pop %v1292
    %v1294 = vsel %vm196, %v1095, %v1123
    %v1295 = vsel %vm198, %v1294, %v1152
    %v1296 = vsel %vm200, %v1295, %v1181
    %v1297 = vsel %vm196, %v1207, %v1235
    %v1298 = vsel %vm198, %v1297, %v1264
    %v1299 = vsel %vm200, %v1298, %v1293
    %v1301 = vrot.slane %v1293, 6
    %v1303 = vrot.slane %v1264, 2
    %v1305 = vrot.slane %v1235, 6
    %v1307 = vrot.slane %v1207, 2
    %v1310 = vrot.slane %v1152, 2
    %v1312 = vrot.slane %v1123, 6
    %v1314 = vrot.slane %v1095, 2
    %v1316 = vsel %vm196, %v1301, %v1303
    %v1317 = vsel %vm198, %v1316, %v1305
    %v1318 = vsel %vm200, %v1317, %v1307
    %v1319 = vsel %vm196, %v1183, %v1310
    %v1320 = vsel %vm198, %v1319, %v1312
    %v1321 = vsel %vm200, %v1320, %v1314
    %v1322 = vsel %vm1092, %v1296, %v1318
    %v1323 = vsel %vm1092, %v1299, %v1321
    %v1324 = vld [vmem:[%s9] sm:$0xff]
    %v1325 = vld [vmem:[%s9 + $0x8] sm:$0xff]
    %v1326 = vld [vmem:[%s9 + $0x10] sm:$0xff]
    %v1327 = vld [vmem:[%s9 + $0x18] sm:$0xff]
    %v1328 = vld [vmem:[%s9 + $0x20] sm:$0xff]
    %v1329 = vld [vmem:[%s9 + $0x28] sm:$0xff]
    %v1330 = vld [vmem:[%s9 + $0x30] sm:$0xff]
    %v1331 = vld [vmem:[%s9 + $0x38] sm:$0xff]
    %v1332 = vld [vmem:[#allocation5] sm:$0xff]
    %v1333 = vld [vmem:[#allocation5 + $0x8] sm:$0xff]
    %v1334 = vld [vmem:[#allocation5 + $0x10] sm:$0xff]
    %v1335 = vld [vmem:[#allocation5 + $0x18] sm:$0xff]
    %v1336 = vld [vmem:[#allocation5 + $0x20] sm:$0xff]
    %v1337 = vld [vmem:[#allocation5 + $0x28] sm:$0xff]
    %v1338 = vld [vmem:[#allocation5 + $0x30] sm:$0xff]
    %v1339 = vld [vmem:[#allocation5 + $0x38] sm:$0xff]
    %v1341 = vsel %vm205, %v1322, 0
    %v1344 = vsel %vm205, %v1323, 0
    %1346 = vmatpush.msra.mxu0 0.0
    %1347 = vmatpush.msra.mxu0 0.0
    %1348 = vmatpush.msra.mxu0 0.0
    %1349 = vmatpush.msra.mxu0 0.0
    %1350 = vmatpush.msra.mxu0 0.0
    %1351 = vmatpush.msra.mxu0 0.0
    %1352 = vmatpush.msra.mxu0 0.0
    %1353 = vmatpush.msra.mxu0 0.0
    %1354 = vmatpush.msra.mxu0 %v1331
    %1355 = vmatpush.msra.mxu0 %v1330
    %1356 = vmatpush.msra.mxu0 %v1329
    %1357 = vmatpush.msra.mxu0 %v1328
    %1358 = vmatpush.msra.mxu0 %v1327
    %1359 = vmatpush.msra.mxu0 %v1326
    %1360 = vmatpush.msra.mxu0 %v1325
    %1361 = vmatpush.msra.mxu0 %v1324
    %1362 = vmatmul.f32.gmra.mxu0 %v1341
    %v1363 = vpop.f32.mrf.mxu0
    %v1364 = vadd.f32 0.0, %v1363
    %1365 = vmatmul.f32.gmra.mxu0 %v1344
    %v1366 = vpop.f32.mrf.mxu0
    %v1367 = vadd.f32 0.0, %v1366
    %1368 = vdwg.mxu0
    %v1370 = vrot.slane %v1367, 6
    %v1372 = vrot.slane %v1367, 2
    %v1375 = vrot.slane %v1364, 6
    %v1377 = vrot.slane %v1364, 2
    %v1379 = vsel %vm196, %v1370, %v1372
    %v1380 = vsel %vm198, %v1379, %v1370
    %v1381 = vsel %vm200, %v1380, %v1372
    %v1382 = vsel %vm196, %v1375, %v1377
    %v1383 = vsel %vm198, %v1382, %v1375
    %v1384 = vsel %vm200, %v1383, %v1377
    %v1385 = vsel %vm1092, %v1364, %v1381
    %v1386 = vsel %vm1092, %v1367, %v1384
    %v1387 = vtanh.pop %v1385
    %v1389 = vsel %vm205, %v1387, 0
    %1391 = vmatpush.msra.mxu0 0.0
    %1392 = vmatpush.msra.mxu0 0.0
    %1393 = vmatpush.msra.mxu0 0.0
    %1394 = vmatpush.msra.mxu0 0.0
    %1395 = vmatpush.msra.mxu0 0.0
    %1396 = vmatpush.msra.mxu0 0.0
    %1397 = vmatpush.msra.mxu0 0.0
    %1398 = vmatpush.msra.mxu0 0.0
    %1399 = vmatpush.msra.mxu0 %v1339
    %1400 = vmatpush.msra.mxu0 %v1338
    %1401 = vmatpush.msra.mxu0 %v1337
    %1402 = vmatpush.msra.mxu0 %v1336
    %1403 = vmatpush.msra.mxu0 %v1335
    %1404 = vmatpush.msra.mxu0 %v1334
    %1405 = vmatpush.msra.mxu0 %v1333
    %1406 = vmatpush.msra.mxu0 %v1332
    %1407 = vmatmul.f32.gmra.mxu0 %v1389
    %v1408 = vpop.f32.mrf.mxu0
    %v1409 = vadd.f32 0.0, %v1408
    %1410 = vdwg.mxu0
    %v1412 = vrot.slane %v1409, 6
    %v1414 = vadd.f32 %v1385, %v1412
    %v1415 = vtanh.pop %v1414
    %v1417 = vrot.slane %v1415, 2
    %v1418 = vsel %vm205, %v1417, 0
    %1420 = vmatpush.msra.mxu0 0.0
    %1421 = vmatpush.msra.mxu0 0.0
    %1422 = vmatpush.msra.mxu0 0.0
    %1423 = vmatpush.msra.mxu0 0.0
    %1424 = vmatpush.msra.mxu0 0.0
    %1425 = vmatpush.msra.mxu0 0.0
    %1426 = vmatpush.msra.mxu0 0.0
    %1427 = vmatpush.msra.mxu0 0.0
    %1428 = vmatpush.msra.mxu0 %v1339
    %1429 = vmatpush.msra.mxu0 %v1338
    %1430 = vmatpush.msra.mxu0 %v1337
    %1431 = vmatpush.msra.mxu0 %v1336
    %1432 = vmatpush.msra.mxu0 %v1335
    %1433 = vmatpush.msra.mxu0 %v1334
    %1434 = vmatpush.msra.mxu0 %v1333
    %1435 = vmatpush.msra.mxu0 %v1332
    %1436 = vmatmul.f32.gmra.mxu0 %v1418
    %v1437 = vpop.f32.mrf.mxu0
    %v1438 = vadd.f32 0.0, %v1437
    %1439 = vdwg.mxu0
    %v1441 = vrot.slane %v1438, 4
    %v1443 = vadd.f32 %v1385, %v1441
    %v1444 = vtanh.pop %v1443
    %v1446 = vrot.slane %v1444, 4
    %v1447 = vsel %vm205, %v1446, 0
    %1449 = vmatpush.msra.mxu0 0.0
    %1450 = vmatpush.msra.mxu0 0.0
    %1451 = vmatpush.msra.mxu0 0.0
    %1452 = vmatpush.msra.mxu0 0.0
    %1453 = vmatpush.msra.mxu0 0.0
    %1454 = vmatpush.msra.mxu0 0.0
    %1455 = vmatpush.msra.mxu0 0.0
    %1456 = vmatpush.msra.mxu0 0.0
    %1457 = vmatpush.msra.mxu0 %v1339
    %1458 = vmatpush.msra.mxu0 %v1338
    %1459 = vmatpush.msra.mxu0 %v1337
    %1460 = vmatpush.msra.mxu0 %v1336
    %1461 = vmatpush.msra.mxu0 %v1335
    %1462 = vmatpush.msra.mxu0 %v1334
    %1463 = vmatpush.msra.mxu0 %v1333
    %1464 = vmatpush.msra.mxu0 %v1332
    %1465 = vmatmul.f32.gmra.mxu0 %v1447
    %v1466 = vpop.f32.mrf.mxu0
    %v1467 = vadd.f32 0.0, %v1466
    %1468 = vdwg.mxu0
    %v1470 = vrot.slane %v1467, 2
    %v1472 = vadd.f32 %v1385, %v1470
    %v1473 = vtanh.pop %v1472
    %v1475 = vrot.slane %v1473, 6
    %v1476 = vsel %vm205, %v1475, 0
    %1478 = vmatpush.msra.mxu0 0.0
    %1479 = vmatpush.msra.mxu0 0.0
    %1480 = vmatpush.msra.mxu0 0.0
    %1481 = vmatpush.msra.mxu0 0.0
    %1482 = vmatpush.msra.mxu0 0.0
    %1483 = vmatpush.msra.mxu0 0.0
    %1484 = vmatpush.msra.mxu0 0.0
    %1485 = vmatpush.msra.mxu0 0.0
    %1486 = vmatpush.msra.mxu0 %v1339
    %1487 = vmatpush.msra.mxu0 %v1338
    %1488 = vmatpush.msra.mxu0 %v1337
    %1489 = vmatpush.msra.mxu0 %v1336
    %1490 = vmatpush.msra.mxu0 %v1335
    %1491 = vmatpush.msra.mxu0 %v1334
    %1492 = vmatpush.msra.mxu0 %v1333
    %1493 = vmatpush.msra.mxu0 %v1332
    %1494 = vmatmul.f32.gmra.mxu0 %v1476
    %v1495 = vpop.f32.mrf.mxu0
    %v1496 = vadd.f32 0.0, %v1495
    %1497 = vdwg.mxu0
    %v1498 = vadd.f32 %v1386, %v1496
    %v1499 = vtanh.pop %v1498
    %v1501 = vsel %vm205, %v1499, 0
    %1503 = vmatpush.msra.mxu0 0.0
    %1504 = vmatpush.msra.mxu0 0.0
    %1505 = vmatpush.msra.mxu0 0.0
    %1506 = vmatpush.msra.mxu0 0.0
    %1507 = vmatpush.msra.mxu0 0.0
    %1508 = vmatpush.msra.mxu0 0.0
    %1509 = vmatpush.msra.mxu0 0.0
    %1510 = vmatpush.msra.mxu0 0.0
    %1511 = vmatpush.msra.mxu0 %v1339
    %1512 = vmatpush.msra.mxu0 %v1338
    %1513 = vmatpush.msra.mxu0 %v1337
    %1514 = vmatpush.msra.mxu0 %v1336
    %1515 = vmatpush.msra.mxu0 %v1335
    %1516 = vmatpush.msra.mxu0 %v1334
    %1517 = vmatpush.msra.mxu0 %v1333
    %1518 = vmatpush.msra.mxu0 %v1332
    %1519 = vmatmul.f32.gmra.mxu0 %v1501
    %v1520 = vpop.f32.mrf.mxu0
    %v1521 = vadd.f32 0.0, %v1520
    %1522 = vdwg.mxu0
    %v1524 = vrot.slane %v1521, 6
    %v1526 = vadd.f32 %v1386, %v1524
    %v1527 = vtanh.pop %v1526
    %v1529 = vrot.slane %v1527, 2
    %v1530 = vsel %vm205, %v1529, 0
    %1532 = vmatpush.msra.mxu0 0.0
    %1533 = vmatpush.msra.mxu0 0.0
    %1534 = vmatpush.msra.mxu0 0.0
    %1535 = vmatpush.msra.mxu0 0.0
    %1536 = vmatpush.msra.mxu0 0.0
    %1537 = vmatpush.msra.mxu0 0.0
    %1538 = vmatpush.msra.mxu0 0.0
    %1539 = vmatpush.msra.mxu0 0.0
    %1540 = vmatpush.msra.mxu0 %v1339
    %1541 = vmatpush.msra.mxu0 %v1338
    %1542 = vmatpush.msra.mxu0 %v1337
    %1543 = vmatpush.msra.mxu0 %v1336
    %1544 = vmatpush.msra.mxu0 %v1335
    %1545 = vmatpush.msra.mxu0 %v1334
    %1546 = vmatpush.msra.mxu0 %v1333
    %1547 = vmatpush.msra.mxu0 %v1332
    %1548 = vmatmul.f32.gmra.mxu0 %v1530
    %v1549 = vpop.f32.mrf.mxu0
    %v1550 = vadd.f32 0.0, %v1549
    %1551 = vdwg.mxu0
    %v1553 = vrot.slane %v1550, 4
    %v1555 = vadd.f32 %v1386, %v1553
    %v1556 = vtanh.pop %v1555
    %v1558 = vrot.slane %v1556, 4
    %v1559 = vsel %vm205, %v1558, 0
    %1561 = vmatpush.msra.mxu0 0.0
    %1562 = vmatpush.msra.mxu0 0.0
    %1563 = vmatpush.msra.mxu0 0.0
    %1564 = vmatpush.msra.mxu0 0.0
    %1565 = vmatpush.msra.mxu0 0.0
    %1566 = vmatpush.msra.mxu0 0.0
    %1567 = vmatpush.msra.mxu0 0.0
    %1568 = vmatpush.msra.mxu0 0.0
    %1569 = vmatpush.msra.mxu0 %v1339
    %1570 = vmatpush.msra.mxu0 %v1338
    %1571 = vmatpush.msra.mxu0 %v1337
    %1572 = vmatpush.msra.mxu0 %v1336
    %1573 = vmatpush.msra.mxu0 %v1335
    %1574 = vmatpush.msra.mxu0 %v1334
    %1575 = vmatpush.msra.mxu0 %v1333
    %1576 = vmatpush.msra.mxu0 %v1332
    %1577 = vmatmul.f32.gmra.mxu0 %v1559
    %v1578 = vpop.f32.mrf.mxu0
    %v1579 = vadd.f32 0.0, %v1578
    %1580 = vdwg.mxu0
    %v1582 = vrot.slane %v1579, 2
    %v1584 = vadd.f32 %v1386, %v1582
    %v1585 = vtanh.pop %v1584
    %v1586 = vsel %vm196, %v1387, %v1415
    %v1587 = vsel %vm198, %v1586, %v1444
    %v1588 = vsel %vm200, %v1587, %v1473
    %v1589 = vsel %vm196, %v1499, %v1527
    %v1590 = vsel %vm198, %v1589, %v1556
    %v1591 = vsel %vm200, %v1590, %v1585
    %v1593 = vrot.slane %v1585, 6
    %v1595 = vrot.slane %v1556, 2
    %v1597 = vrot.slane %v1527, 6
    %v1599 = vrot.slane %v1499, 2
    %v1602 = vrot.slane %v1444, 2
    %v1604 = vrot.slane %v1415, 6
    %v1606 = vrot.slane %v1387, 2
    %v1608 = vsel %vm196, %v1593, %v1595
    %v1609 = vsel %vm198, %v1608, %v1597
    %v1610 = vsel %vm200, %v1609, %v1599
    %v1611 = vsel %vm196, %v1475, %v1602
    %v1612 = vsel %vm198, %v1611, %v1604
    %v1613 = vsel %vm200, %v1612, %v1606
    %v1614 = vsel %vm1092, %v1588, %v1610
    %v1615 = vsel %vm1092, %v1591, %v1613
    %v1616 = vld [vmem:[#allocation8] sm:$0xff]
    %v1617 = vld [vmem:[#allocation8 + $0x8] sm:$0xff]
    %v1618 = vld [vmem:[#allocation8 + $0x10] sm:$0xff]
    %v1619 = vld [vmem:[#allocation8 + $0x18] sm:$0xff]
    %v1620 = vld [vmem:[#allocation8 + $0x20] sm:$0xff]
    %v1621 = vld [vmem:[#allocation8 + $0x28] sm:$0xff]
    %v1622 = vld [vmem:[#allocation8 + $0x30] sm:$0xff]
    %v1623 = vld [vmem:[#allocation8 + $0x38] sm:$0xff]
    %v1624 = vld [vmem:[#allocation10] sm:$0xff]
    %v1625 = vld [vmem:[#allocation10 + $0x8] sm:$0xff]
    %v1626 = vld [vmem:[#allocation10 + $0x10] sm:$0xff]
    %v1627 = vld [vmem:[#allocation10 + $0x18] sm:$0xff]
    %v1629 = vsel %vm205, %v1614, 0
    %v1632 = vsel %vm205, %v1615, 0
    %1634 = vmatpush.msra.mxu0 0.0
    %1635 = vmatpush.msra.mxu0 0.0
    %1636 = vmatpush.msra.mxu0 0.0
    %1637 = vmatpush.msra.mxu0 0.0
    %1638 = vmatpush.msra.mxu0 0.0
    %1639 = vmatpush.msra.mxu0 0.0
    %1640 = vmatpush.msra.mxu0 0.0
    %1641 = vmatpush.msra.mxu0 0.0
    %1642 = vmatpush.msra.mxu0 %v1623
    %1643 = vmatpush.msra.mxu0 %v1622
    %1644 = vmatpush.msra.mxu0 %v1621
    %1645 = vmatpush.msra.mxu0 %v1620
    %1646 = vmatpush.msra.mxu0 %v1619
    %1647 = vmatpush.msra.mxu0 %v1618
    %1648 = vmatpush.msra.mxu0 %v1617
    %1649 = vmatpush.msra.mxu0 %v1616
    %1650 = vmatmul.f32.gmra.mxu0 %v1629
    %v1651 = vpop.f32.mrf.mxu0
    %v1652 = vadd.f32 0.0, %v1651
    %1653 = vmatmul.f32.gmra.mxu0 %v1632
    %v1654 = vpop.f32.mrf.mxu0
    %v1655 = vadd.f32 0.0, %v1654
    %1656 = vdwg.mxu0
    %v1658 = vrot.slane %v1655, 6
    %v1660 = vrot.slane %v1655, 2
    %v1663 = vrot.slane %v1652, 6
    %v1665 = vrot.slane %v1652, 2
    %v1667 = vsel %vm196, %v1658, %v1660
    %v1668 = vsel %vm198, %v1667, %v1658
    %v1669 = vsel %vm200, %v1668, %v1660
    %v1670 = vsel %vm196, %v1663, %v1665
    %v1671 = vsel %vm198, %v1670, %v1663
    %v1672 = vsel %vm200, %v1671, %v1665
    %v1673 = vsel %vm205, %v1652, %v1669
    %v1674 = vsel %vm205, %v1655, %v1672
    %v1676 = vsel %vm1092, 0.0, 0
    %1678 = vmatpush.msra.mxu0 0.0
    %1679 = vmatpush.msra.mxu0 0.0
    %1680 = vmatpush.msra.mxu0 0.0
    %1681 = vmatpush.msra.mxu0 0.0
    %1682 = vmatpush.msra.mxu0 0.0
    %1683 = vmatpush.msra.mxu0 0.0
    %1684 = vmatpush.msra.mxu0 0.0
    %1685 = vmatpush.msra.mxu0 0.0
    %1686 = vmatpush.msra.mxu0 0.0
    %1687 = vmatpush.msra.mxu0 0.0
    %1688 = vmatpush.msra.mxu0 0.0
    %1689 = vmatpush.msra.mxu0 0.0
    %1690 = vmatpush.msra.mxu0 %v1627
    %1691 = vmatpush.msra.mxu0 %v1626
    %1692 = vmatpush.msra.mxu0 %v1625
    %1693 = vmatpush.msra.mxu0 %v1624
    %1694 = vmatmul.f32.gmra.mxu0 %v1676
    %v1695 = vpop.f32.mrf.mxu0
    %v1696 = vadd.f32 0.0, %v1695
    %1697 = vdwg.mxu0
    %v1698 = vadd.f32 %v1673, %v1696
    %v1699 = vmul.f32 %v1698, 0.5
    %v1700 = vtanh.pop %v1699
    %v1701 = vadd.f32 %v1700, 1.0
    %v1702 = vmul.f32 %v1701, 0.5
    %v1703 = vtanh.pop %v1698
    %v1704 = vmul.f32 %v1702, 0.0
    %1706 = vrot.lane.b32.xlu0 %v1703, 96
    %v1707 = vpop.permute.xlu0 %1706
    %v1709 = vmul.f32 %v1702, %v1707
    %1711 = vrot.lane.b32.xlu0 %v1709, 16
    %v1712 = vpop.permute.xlu0 %1711
    %v1714 = vadd.f32 %v1704, %v1712
    %v1715 = vtanh.pop %v1714
    %1717 = vrot.lane.b32.xlu0 %v1715, 32
    %v1718 = vpop.permute.xlu0 %1717
    %v1720 = vmul.f32 %v1702, %v1718
    %1722 = vrot.lane.b32.xlu0 %v1720, 80
    %v1723 = vpop.permute.xlu0 %1722
    %1725 = vrot.lane.b32.xlu0 %v1720, 32
    %v1726 = vpop.permute.xlu0 %1725
    %vm1728 = vcmask 130048
    %v1729 = vsel %vm1728, %v1723, %v1726
    %v1731 = vsel %vm1092, %v1729, 0
    %1733 = vmatpush.msra.mxu0 0.0
    %1734 = vmatpush.msra.mxu0 0.0
    %1735 = vmatpush.msra.mxu0 0.0
    %1736 = vmatpush.msra.mxu0 0.0
    %1737 = vmatpush.msra.mxu0 0.0
    %1738 = vmatpush.msra.mxu0 0.0
    %1739 = vmatpush.msra.mxu0 0.0
    %1740 = vmatpush.msra.mxu0 0.0
    %1741 = vmatpush.msra.mxu0 0.0
    %1742 = vmatpush.msra.mxu0 0.0
    %1743 = vmatpush.msra.mxu0 0.0
    %1744 = vmatpush.msra.mxu0 0.0
    %1745 = vmatpush.msra.mxu0 %v1627
    %1746 = vmatpush.msra.mxu0 %v1626
    %1747 = vmatpush.msra.mxu0 %v1625
    %1748 = vmatpush.msra.mxu0 %v1624
    %1749 = vmatmul.f32.gmra.mxu0 %v1731
    %v1750 = vpop.f32.mrf.mxu0
    %v1751 = vadd.f32 0.0, %v1750
    %1752 = vdwg.mxu0
    %v1754 = vrot.slane %v1751, 6
    %v1756 = vadd.f32 %v1673, %v1754
    %v1757 = vmul.f32 %v1756, 0.5
    %v1758 = vtanh.pop %v1757
    %v1759 = vadd.f32 %v1758, 1.0
    %v1760 = vmul.f32 %v1759, 0.5
    %v1761 = vtanh.pop %v1756
    %v1763 = vrot.slane %v1714, 6
    %v1765 = vmul.f32 %v1760, %v1763
    %1767 = vrot.lane.b32.xlu0 %v1761, 96
    %v1768 = vpop.permute.xlu0 %1767
    %v1770 = vmul.f32 %v1760, %v1768
    %1772 = vrot.lane.b32.xlu0 %v1770, 16
    %v1773 = vpop.permute.xlu0 %1772
    %v1775 = vadd.f32 %v1765, %v1773
    %v1776 = vtanh.pop %v1775
    %1778 = vrot.lane.b32.xlu0 %v1776, 32
    %v1779 = vpop.permute.xlu0 %1778
    %v1781 = vmul.f32 %v1760, %v1779
    %1783 = vrot.lane.b32.xlu0 %v1781, 80
    %v1784 = vpop.permute.xlu0 %1783
    %1786 = vrot.lane.b32.xlu0 %v1781, 32
    %v1787 = vpop.permute.xlu0 %1786
    %v1789 = vsel %vm1728, %v1784, %v1787
    %v1791 = vrot.slane %v1789, 2
    %v1792 = vsel %vm1092, %v1791, 0
    %1794 = vmatpush.msra.mxu0 0.0
    %1795 = vmatpush.msra.mxu0 0.0
    %1796 = vmatpush.msra.mxu0 0.0
    %1797 = vmatpush.msra.mxu0 0.0
    %1798 = vmatpush.msra.mxu0 0.0
    %1799 = vmatpush.msra.mxu0 0.0
    %1800 = vmatpush.msra.mxu0 0.0
    %1801 = vmatpush.msra.mxu0 0.0
    %1802 = vmatpush.msra.mxu0 0.0
    %1803 = vmatpush.msra.mxu0 0.0
    %1804 = vmatpush.msra.mxu0 0.0
    %1805 = vmatpush.msra.mxu0 0.0
    %1806 = vmatpush.msra.mxu0 %v1627
    %1807 = vmatpush.msra.mxu0 %v1626
    %1808 = vmatpush.msra.mxu0 %v1625
    %1809 = vmatpush.msra.mxu0 %v1624
    %1810 = vmatmul.f32.gmra.mxu0 %v1792
    %v1811 = vpop.f32.mrf.mxu0
    %v1812 = vadd.f32 0.0, %v1811
    %1813 = vdwg.mxu0
    %v1815 = vrot.slane %v1812, 4
    %v1817 = vadd.f32 %v1673, %v1815
    %v1818 = vmul.f32 %v1817, 0.5
    %v1819 = vtanh.pop %v1818
    %v1820 = vadd.f32 %v1819, 1.0
    %v1821 = vmul.f32 %v1820, 0.5
    %v1822 = vtanh.pop %v1817
    %v1824 = vrot.slane %v1775, 6
    %v1826 = vmul.f32 %v1821, %v1824
    %1828 = vrot.lane.b32.xlu0 %v1822, 96
    %v1829 = vpop.permute.xlu0 %1828
    %v1831 = vmul.f32 %v1821, %v1829
    %1833 = vrot.lane.b32.xlu0 %v1831, 16
    %v1834 = vpop.permute.xlu0 %1833
    %v1836 = vadd.f32 %v1826, %v1834
    %v1837 = vtanh.pop %v1836
    %1839 = vrot.lane.b32.xlu0 %v1837, 32
    %v1840 = vpop.permute.xlu0 %1839
    %v1842 = vmul.f32 %v1821, %v1840
    %1844 = vrot.lane.b32.xlu0 %v1842, 80
    %v1845 = vpop.permute.xlu0 %1844
    %1847 = vrot.lane.b32.xlu0 %v1842, 32
    %v1848 = vpop.permute.xlu0 %1847
    %v1850 = vsel %vm1728, %v1845, %v1848
    %v1852 = vrot.slane %v1850, 4
    %v1853 = vsel %vm1092, %v1852, 0
    %1855 = vmatpush.msra.mxu0 0.0
    %1856 = vmatpush.msra.mxu0 0.0
    %1857 = vmatpush.msra.mxu0 0.0
    %1858 = vmatpush.msra.mxu0 0.0
    %1859 = vmatpush.msra.mxu0 0.0
    %1860 = vmatpush.msra.mxu0 0.0
    %1861 = vmatpush.msra.mxu0 0.0
    %1862 = vmatpush.msra.mxu0 0.0
    %1863 = vmatpush.msra.mxu0 0.0
    %1864 = vmatpush.msra.mxu0 0.0
    %1865 = vmatpush.msra.mxu0 0.0
    %1866 = vmatpush.msra.mxu0 0.0
    %1867 = vmatpush.msra.mxu0 %v1627
    %1868 = vmatpush.msra.mxu0 %v1626
    %1869 = vmatpush.msra.mxu0 %v1625
    %1870 = vmatpush.msra.mxu0 %v1624
    %1871 = vmatmul.f32.gmra.mxu0 %v1853
    %v1872 = vpop.f32.mrf.mxu0
    %v1873 = vadd.f32 0.0, %v1872
    %1874 = vdwg.mxu0
    %v1876 = vrot.slane %v1873, 2
    %v1878 = vadd.f32 %v1673, %v1876
    %v1879 = vmul.f32 %v1878, 0.5
    %v1880 = vtanh.pop %v1879
    %v1881 = vadd.f32 %v1880, 1.0
    %v1882 = vmul.f32 %v1881, 0.5
    %v1883 = vtanh.pop %v1878
    %v1885 = vrot.slane %v1836, 6
    %v1887 = vmul.f32 %v1882, %v1885
    %1889 = vrot.lane.b32.xlu0 %v1883, 96
    %v1890 = vpop.permute.xlu0 %1889
    %v1892 = vmul.f32 %v1882, %v1890
    %1894 = vrot.lane.b32.xlu0 %v1892, 16
    %v1895 = vpop.permute.xlu0 %1894
    %v1897 = vadd.f32 %v1887, %v1895
    %v1898 = vtanh.pop %v1897
    %1900 = vrot.lane.b32.xlu0 %v1898, 32
    %v1901 = vpop.permute.xlu0 %1900
    %v1903 = vmul.f32 %v1882, %v1901
    %1905 = vrot.lane.b32.xlu0 %v1903, 80
    %v1906 = vpop.permute.xlu0 %1905
    %1908 = vrot.lane.b32.xlu0 %v1903, 32
    %v1909 = vpop.permute.xlu0 %1908
    %v1911 = vsel %vm1728, %v1906, %v1909
    %v1913 = vrot.slane %v1911, 6
    %v1914 = vsel %vm1092, %v1913, 0
    %1916 = vmatpush.msra.mxu0 0.0
    %1917 = vmatpush.msra.mxu0 0.0
    %1918 = vmatpush.msra.mxu0 0.0
    %1919 = vmatpush.msra.mxu0 0.0
    %1920 = vmatpush.msra.mxu0 0.0
    %1921 = vmatpush.msra.mxu0 0.0
    %1922 = vmatpush.msra.mxu0 0.0
    %1923 = vmatpush.msra.mxu0 0.0
    %1924 = vmatpush.msra.mxu0 0.0
    %1925 = vmatpush.msra.mxu0 0.0
    %1926 = vmatpush.msra.mxu0 0.0
    %1927 = vmatpush.msra.mxu0 0.0
    %1928 = vmatpush.msra.mxu0 %v1627
    %1929 = vmatpush.msra.mxu0 %v1626
    %1930 = vmatpush.msra.mxu0 %v1625
    %1931 = vmatpush.msra.mxu0 %v1624
    %1932 = vmatmul.f32.gmra.mxu0 %v1914
    %v1933 = vpop.f32.mrf.mxu0
    %v1934 = vadd.f32 0.0, %v1933
    %1935 = vdwg.mxu0
    %v1936 = vadd.f32 %v1674, %v1934
    %v1937 = vmul.f32 %v1936, 0.5
    %v1938 = vtanh.pop %v1937
    %v1939 = vadd.f32 %v1938, 1.0
    %v1940 = vmul.f32 %v1939, 0.5
    %v1941 = vtanh.pop %v1936
    %v1943 = vrot.slane %v1897, 6
    %v1945 = vmul.f32 %v1940, %v1943
    %1947 = vrot.lane.b32.xlu0 %v1941, 96
    %v1948 = vpop.permute.xlu0 %1947
    %v1950 = vmul.f32 %v1940, %v1948
    %1952 = vrot.lane.b32.xlu0 %v1950, 16
    %v1953 = vpop.permute.xlu0 %1952
    %v1955 = vadd.f32 %v1945, %v1953
    %v1956 = vtanh.pop %v1955
    %1958 = vrot.lane.b32.xlu0 %v1956, 32
    %v1959 = vpop.permute.xlu0 %1958
    %v1961 = vmul.f32 %v1940, %v1959
    %1963 = vrot.lane.b32.xlu0 %v1961, 80
    %v1964 = vpop.permute.xlu0 %1963
    %1966 = vrot.lane.b32.xlu0 %v1961, 32
    %v1967 = vpop.permute.xlu0 %1966
    %v1969 = vsel %vm1728, %v1964, %v1967
    %v1971 = vsel %vm1092, %v1969, 0
    %1973 = vmatpush.msra.mxu0 0.0
    %1974 = vmatpush.msra.mxu0 0.0
    %1975 = vmatpush.msra.mxu0 0.0
    %1976 = vmatpush.msra.mxu0 0.0
    %1977 = vmatpush.msra.mxu0 0.0
    %1978 = vmatpush.msra.mxu0 0.0
    %1979 = vmatpush.msra.mxu0 0.0
    %1980 = vmatpush.msra.mxu0 0.0
    %1981 = vmatpush.msra.mxu0 0.0
    %1982 = vmatpush.msra.mxu0 0.0
    %1983 = vmatpush.msra.mxu0 0.0
    %1984 = vmatpush.msra.mxu0 0.0
    %1985 = vmatpush.msra.mxu0 %v1627
    %1986 = vmatpush.msra.mxu0 %v1626
    %1987 = vmatpush.msra.mxu0 %v1625
    %1988 = vmatpush.msra.mxu0 %v1624
    %1989 = vmatmul.f32.gmra.mxu0 %v1971
    %v1990 = vpop.f32.mrf.mxu0
    %v1991 = vadd.f32 0.0, %v1990
    %1992 = vdwg.mxu0
    %v1994 = vrot.slane %v1991, 6
    %v1996 = vadd.f32 %v1674, %v1994
    %v1997 = vmul.f32 %v1996, 0.5
    %v1998 = vtanh.pop %v1997
    %v1999 = vadd.f32 %v1998, 1.0
    %v2000 = vmul.f32 %v1999, 0.5
    %v2001 = vtanh.pop %v1996
    %v2003 = vrot.slane %v1955, 6
    %v2005 = vmul.f32 %v2000, %v2003
    %2007 = vrot.lane.b32.xlu0 %v2001, 96
    %v2008 = vpop.permute.xlu0 %2007
    %v2010 = vmul.f32 %v2000, %v2008
    %2012 = vrot.lane.b32.xlu0 %v2010, 16
    %v2013 = vpop.permute.xlu0 %2012
    %v2015 = vadd.f32 %v2005, %v2013
    %v2016 = vtanh.pop %v2015
    %2018 = vrot.lane.b32.xlu0 %v2016, 32
    %v2019 = vpop.permute.xlu0 %2018
    %v2021 = vmul.f32 %v2000, %v2019
    %2023 = vrot.lane.b32.xlu0 %v2021, 80
    %v2024 = vpop.permute.xlu0 %2023
    %2026 = vrot.lane.b32.xlu0 %v2021, 32
    %v2027 = vpop.permute.xlu0 %2026
    %v2029 = vsel %vm1728, %v2024, %v2027
    %v2031 = vrot.slane %v2029, 2
    %v2032 = vsel %vm1092, %v2031, 0
    %2034 = vmatpush.msra.mxu0 0.0
    %2035 = vmatpush.msra.mxu0 0.0
    %2036 = vmatpush.msra.mxu0 0.0
    %2037 = vmatpush.msra.mxu0 0.0
    %2038 = vmatpush.msra.mxu0 0.0
    %2039 = vmatpush.msra.mxu0 0.0
    %2040 = vmatpush.msra.mxu0 0.0
    %2041 = vmatpush.msra.mxu0 0.0
    %2042 = vmatpush.msra.mxu0 0.0
    %2043 = vmatpush.msra.mxu0 0.0
    %2044 = vmatpush.msra.mxu0 0.0
    %2045 = vmatpush.msra.mxu0 0.0
    %2046 = vmatpush.msra.mxu0 %v1627
    %2047 = vmatpush.msra.mxu0 %v1626
    %2048 = vmatpush.msra.mxu0 %v1625
    %2049 = vmatpush.msra.mxu0 %v1624
    %2050 = vmatmul.f32.gmra.mxu0 %v2032
    %v2051 = vpop.f32.mrf.mxu0
    %v2052 = vadd.f32 0.0, %v2051
    %2053 = vdwg.mxu0
    %v2055 = vrot.slane %v2052, 4
    %v2057 = vadd.f32 %v1674, %v2055
    %v2058 = vmul.f32 %v2057, 0.5
    %v2059 = vtanh.pop %v2058
    %v2060 = vadd.f32 %v2059, 1.0
    %v2061 = vmul.f32 %v2060, 0.5
    %v2062 = vtanh.pop %v2057
    %v2064 = vrot.slane %v2015, 6
    %v2066 = vmul.f32 %v2061, %v2064
    %2068 = vrot.lane.b32.xlu0 %v2062, 96
    %v2069 = vpop.permute.xlu0 %2068
    %v2071 = vmul.f32 %v2061, %v2069
    %2073 = vrot.lane.b32.xlu0 %v2071, 16
    %v2074 = vpop.permute.xlu0 %2073
    %v2076 = vadd.f32 %v2066, %v2074
    %v2077 = vtanh.pop %v2076
    %2079 = vrot.lane.b32.xlu0 %v2077, 32
    %v2080 = vpop.permute.xlu0 %2079
    %v2082 = vmul.f32 %v2061, %v2080
    %2084 = vrot.lane.b32.xlu0 %v2082, 80
    %v2085 = vpop.permute.xlu0 %2084
    %2087 = vrot.lane.b32.xlu0 %v2082, 32
    %v2088 = vpop.permute.xlu0 %2087
    %v2090 = vsel %vm1728, %v2085, %v2088
    %v2092 = vrot.slane %v2090, 4
    %v2093 = vsel %vm1092, %v2092, 0
    %2095 = vmatpush.msra.mxu0 0.0
    %2096 = vmatpush.msra.mxu0 0.0
    %2097 = vmatpush.msra.mxu0 0.0
    %2098 = vmatpush.msra.mxu0 0.0
    %2099 = vmatpush.msra.mxu0 0.0
    %2100 = vmatpush.msra.mxu0 0.0
    %2101 = vmatpush.msra.mxu0 0.0
    %2102 = vmatpush.msra.mxu0 0.0
    %2103 = vmatpush.msra.mxu0 0.0
    %2104 = vmatpush.msra.mxu0 0.0
    %2105 = vmatpush.msra.mxu0 0.0
    %2106 = vmatpush.msra.mxu0 0.0
    %2107 = vmatpush.msra.mxu0 %v1627
    %2108 = vmatpush.msra.mxu0 %v1626
    %2109 = vmatpush.msra.mxu0 %v1625
    %2110 = vmatpush.msra.mxu0 %v1624
    %2111 = vmatmul.f32.gmra.mxu0 %v2093
    %v2112 = vpop.f32.mrf.mxu0
    %v2113 = vadd.f32 0.0, %v2112
    %2114 = vdwg.mxu0
    %v2116 = vrot.slane %v2113, 2
    %v2118 = vadd.f32 %v1674, %v2116
    %v2119 = vmul.f32 %v2118, 0.5
    %v2120 = vtanh.pop %v2119
    %v2121 = vadd.f32 %v2120, 1.0
    %v2122 = vmul.f32 %v2121, 0.5
    %v2123 = vtanh.pop %v2118
    %v2125 = vrot.slane %v2076, 6
    %v2127 = vmul.f32 %v2122, %v2125
    %2129 = vrot.lane.b32.xlu0 %v2123, 96
    %v2130 = vpop.permute.xlu0 %2129
    %v2132 = vmul.f32 %v2122, %v2130
    %2134 = vrot.lane.b32.xlu0 %v2132, 16
    %v2135 = vpop.permute.xlu0 %2134
    %v2137 = vadd.f32 %v2127, %v2135
    %v2138 = vtanh.pop %v2137
    %2140 = vrot.lane.b32.xlu0 %v2138, 32
    %v2141 = vpop.permute.xlu0 %2140
    %v2143 = vmul.f32 %v2122, %v2141
    %2145 = vrot.lane.b32.xlu0 %v2143, 80
    %v2146 = vpop.permute.xlu0 %2145
    %2148 = vrot.lane.b32.xlu0 %v2143, 32
    %v2149 = vpop.permute.xlu0 %2148
    %v2151 = vsel %vm1728, %v2146, %v2149
    %v2153 = vrot.slane %v2151, 6
    %2155 = vrot.lane.b32.xlu0 %v1791, 32
    %v2156 = vpop.permute.xlu0 %2155
    %2158 = vrot.lane.b32.xlu0 %v2092, 32
    %v2159 = vpop.permute.xlu0 %2158
    %2161 = vrot.lane.b32.xlu0 %v1852, 64
    %v2162 = vpop.permute.xlu0 %2161
    %2164 = vrot.lane.b32.xlu0 %v2031, 64
    %v2165 = vpop.permute.xlu0 %2164
    %2167 = vrot.lane.b32.xlu0 %v1913, 96
    %v2168 = vpop.permute.xlu0 %2167
    %2170 = vrot.lane.b32.xlu0 %v1969, 96
    %v2171 = vpop.permute.xlu0 %2170
    %2174 = vrot.lane.b32.xlu0 %v2031, 32
    %v2175 = vpop.permute.xlu0 %2174
    %2177 = vrot.lane.b32.xlu0 %v1852, 32
    %v2178 = vpop.permute.xlu0 %2177
    %2180 = vrot.lane.b32.xlu0 %v2092, 64
    %v2181 = vpop.permute.xlu0 %2180
    %2183 = vrot.lane.b32.xlu0 %v1791, 64
    %v2184 = vpop.permute.xlu0 %2183
    %2186 = vrot.lane.b32.xlu0 %v2153, 96
    %v2187 = vpop.permute.xlu0 %2186
    %2189 = vrot.lane.b32.xlu0 %v1729, 96
    %v2190 = vpop.permute.xlu0 %2189
    %v2192 = vsel %vm1728, %v1729, %v2153
    %v2193 = vsel %vm1092, %v2192, %v2156
    %v2194 = vsel %vm494, %v2193, %v2159
    %v2195 = vsel %vm205, %v2194, %v2162
    %vm2196 = vcmask 654336
    %v2197 = vsel %vm2196, %v2195, %v2165
    %v2198 = vsel %vm498, %v2197, %v2168
    %vm2199 = vcmask 916480
    %v2200 = vsel %vm2199, %v2198, %v2171
    %v2201 = vsel %vm1728, %v1969, %v1913
    %v2202 = vsel %vm1092, %v2201, %v2175
    %v2203 = vsel %vm494, %v2202, %v2178
    %v2204 = vsel %vm205, %v2203, %v2181
    %v2205 = vsel %vm2196, %v2204, %v2184
    %v2206 = vsel %vm498, %v2205, %v2187
    %v2207 = vsel %vm2199, %v2206, %v2190
    %s2208 = smul.u32 8, 32
    %s2209 = smul.u32 %s2208, 8
    %s2210 = sshll.u32 %s2209, 4
    %2211 = dma.done [#allocation4], %s2210
    %v2212 = vld [vmem:[#allocation2] sm:$0xff]
    %v2213 = vld [vmem:[#allocation2 + $0x8] sm:$0xff]
    %v2214 = vld [vmem:[#allocation2 + $0x10] sm:$0xff]
    %v2215 = vld [vmem:[#allocation2 + $0x18] sm:$0xff]
    %v2216 = vld [vmem:[#allocation2 + $0x20] sm:$0xff]
    %v2217 = vld [vmem:[#allocation2 + $0x28] sm:$0xff]
    %v2218 = vld [vmem:[#allocation2 + $0x30] sm:$0xff]
    %v2219 = vld [vmem:[#allocation2 + $0x38] sm:$0xff]
    %v2220 = vld [vmem:[#allocation2 + $0x40] sm:$0xff]
    %v2221 = vld [vmem:[#allocation2 + $0x48] sm:$0xff]
    %v2222 = vld [vmem:[#allocation2 + $0x50] sm:$0xff]
    %v2223 = vld [vmem:[#allocation2 + $0x58] sm:$0xff]
    %v2224 = vld [vmem:[#allocation2 + $0x60] sm:$0xff]
    %v2225 = vld [vmem:[#allocation2 + $0x68] sm:$0xff]
    %v2226 = vld [vmem:[#allocation2 + $0x70] sm:$0xff]
    %v2227 = vld [vmem:[#allocation2 + $0x78] sm:$0xff]
    %v2228 = vld [vmem:[#allocation2 + $0x80] sm:$0xff]
    %v2229 = vld [vmem:[#allocation2 + $0x88] sm:$0xff]
    %v2230 = vld [vmem:[#allocation2 + $0x90] sm:$0xff]
    %v2231 = vld [vmem:[#allocation2 + $0x98] sm:$0xff]
    %v2232 = vld [vmem:[#allocation2 + $0xa0] sm:$0xff]
    %v2233 = vld [vmem:[#allocation2 + $0xa8] sm:$0xff]
    %v2234 = vld [vmem:[#allocation2 + $0xb0] sm:$0xff]
    %v2235 = vld [vmem:[#allocation2 + $0xb8] sm:$0xff]
    %v2236 = vld [vmem:[#allocation2 + $0xc0] sm:$0xff]
    %v2237 = vld [vmem:[#allocation2 + $0xc8] sm:$0xff]
    %v2238 = vld [vmem:[#allocation2 + $0xd0] sm:$0xff]
    %v2239 = vld [vmem:[#allocation2 + $0xd8] sm:$0xff]
    %v2240 = vld [vmem:[#allocation2 + $0xe0] sm:$0xff]
    %v2241 = vld [vmem:[#allocation2 + $0xe8] sm:$0xff]
    %v2242 = vld [vmem:[#allocation2 + $0xf0] sm:$0xff]
    %v2243 = vld [vmem:[#allocation2 + $0xf8] sm:$0xff]
    %v2244 = vld [vmem:[#allocation2 + $0x100] sm:$0xff]
    %v2245 = vld [vmem:[#allocation2 + $0x108] sm:$0xff]
    %v2246 = vld [vmem:[#allocation2 + $0x110] sm:$0xff]
    %v2247 = vld [vmem:[#allocation2 + $0x118] sm:$0xff]
    %v2248 = vld [vmem:[#allocation2 + $0x120] sm:$0xff]
    %v2249 = vld [vmem:[#allocation2 + $0x128] sm:$0xff]
    %v2250 = vld [vmem:[#allocation2 + $0x130] sm:$0xff]
    %v2251 = vld [vmem:[#allocation2 + $0x138] sm:$0xff]
    %v2252 = vld [vmem:[#allocation2 + $0x140] sm:$0xff]
    %v2253 = vld [vmem:[#allocation2 + $0x148] sm:$0xff]
    %v2254 = vld [vmem:[#allocation2 + $0x150] sm:$0xff]
    %v2255 = vld [vmem:[#allocation2 + $0x158] sm:$0xff]
    %v2256 = vld [vmem:[#allocation2 + $0x160] sm:$0xff]
    %v2257 = vld [vmem:[#allocation2 + $0x168] sm:$0xff]
    %v2258 = vld [vmem:[#allocation2 + $0x170] sm:$0xff]
    %v2259 = vld [vmem:[#allocation2 + $0x178] sm:$0xff]
    %v2260 = vld [vmem:[#allocation2 + $0x180] sm:$0xff]
    %v2261 = vld [vmem:[#allocation2 + $0x188] sm:$0xff]
    %v2262 = vld [vmem:[#allocation2 + $0x190] sm:$0xff]
    %v2263 = vld [vmem:[#allocation2 + $0x198] sm:$0xff]
    %v2264 = vld [vmem:[#allocation2 + $0x1a0] sm:$0xff]
    %v2265 = vld [vmem:[#allocation2 + $0x1a8] sm:$0xff]
    %v2266 = vld [vmem:[#allocation2 + $0x1b0] sm:$0xff]
    %v2267 = vld [vmem:[#allocation2 + $0x1b8] sm:$0xff]
    %v2268 = vld [vmem:[#allocation2 + $0x1c0] sm:$0xff]
    %v2269 = vld [vmem:[#allocation2 + $0x1c8] sm:$0xff]
    %v2270 = vld [vmem:[#allocation2 + $0x1d0] sm:$0xff]
    %v2271 = vld [vmem:[#allocation2 + $0x1d8] sm:$0xff]
    %v2272 = vld [vmem:[#allocation2 + $0x1e0] sm:$0xff]
    %v2273 = vld [vmem:[#allocation2 + $0x1e8] sm:$0xff]
    %v2274 = vld [vmem:[#allocation2 + $0x1f0] sm:$0xff]
    %v2275 = vld [vmem:[#allocation2 + $0x1f8] sm:$0xff]
    %v2276 = vld [vmem:[#allocation2 + $0x200] sm:$0xff]
    %v2277 = vld [vmem:[#allocation2 + $0x208] sm:$0xff]
    %v2278 = vld [vmem:[#allocation2 + $0x210] sm:$0xff]
    %v2279 = vld [vmem:[#allocation2 + $0x218] sm:$0xff]
    %v2280 = vld [vmem:[#allocation2 + $0x220] sm:$0xff]
    %v2281 = vld [vmem:[#allocation2 + $0x228] sm:$0xff]
    %v2282 = vld [vmem:[#allocation2 + $0x230] sm:$0xff]
    %v2283 = vld [vmem:[#allocation2 + $0x238] sm:$0xff]
    %v2284 = vld [vmem:[#allocation2 + $0x240] sm:$0xff]
    %v2285 = vld [vmem:[#allocation2 + $0x248] sm:$0xff]
    %v2286 = vld [vmem:[#allocation2 + $0x250] sm:$0xff]
    %v2287 = vld [vmem:[#allocation2 + $0x258] sm:$0xff]
    %v2288 = vld [vmem:[#allocation2 + $0x260] sm:$0xff]
    %v2289 = vld [vmem:[#allocation2 + $0x268] sm:$0xff]
    %v2290 = vld [vmem:[#allocation2 + $0x270] sm:$0xff]
    %v2291 = vld [vmem:[#allocation2 + $0x278] sm:$0xff]
    %v2292 = vld [vmem:[#allocation2 + $0x280] sm:$0xff]
    %v2293 = vld [vmem:[#allocation2 + $0x288] sm:$0xff]
    %v2294 = vld [vmem:[#allocation2 + $0x290] sm:$0xff]
    %v2295 = vld [vmem:[#allocation2 + $0x298] sm:$0xff]
    %v2296 = vld [vmem:[#allocation2 + $0x2a0] sm:$0xff]
    %v2297 = vld [vmem:[#allocation2 + $0x2a8] sm:$0xff]
    %v2298 = vld [vmem:[#allocation2 + $0x2b0] sm:$0xff]
    %v2299 = vld [vmem:[#allocation2 + $0x2b8] sm:$0xff]
    %v2300 = vld [vmem:[#allocation2 + $0x2c0] sm:$0xff]
    %v2301 = vld [vmem:[#allocation2 + $0x2c8] sm:$0xff]
    %v2302 = vld [vmem:[#allocation2 + $0x2d0] sm:$0xff]
    %v2303 = vld [vmem:[#allocation2 + $0x2d8] sm:$0xff]
    %v2304 = vld [vmem:[#allocation2 + $0x2e0] sm:$0xff]
    %v2305 = vld [vmem:[#allocation2 + $0x2e8] sm:$0xff]
    %v2306 = vld [vmem:[#allocation2 + $0x2f0] sm:$0xff]
    %v2307 = vld [vmem:[#allocation2 + $0x2f8] sm:$0xff]
    %v2308 = vld [vmem:[#allocation2 + $0x300] sm:$0xff]
    %v2309 = vld [vmem:[#allocation2 + $0x308] sm:$0xff]
    %v2310 = vld [vmem:[#allocation2 + $0x310] sm:$0xff]
    %v2311 = vld [vmem:[#allocation2 + $0x318] sm:$0xff]
    %v2312 = vld [vmem:[#allocation2 + $0x320] sm:$0xff]
    %v2313 = vld [vmem:[#allocation2 + $0x328] sm:$0xff]
    %v2314 = vld [vmem:[#allocation2 + $0x330] sm:$0xff]
    %v2315 = vld [vmem:[#allocation2 + $0x338] sm:$0xff]
    %v2316 = vld [vmem:[#allocation2 + $0x340] sm:$0xff]
    %v2317 = vld [vmem:[#allocation2 + $0x348] sm:$0xff]
    %v2318 = vld [vmem:[#allocation2 + $0x350] sm:$0xff]
    %v2319 = vld [vmem:[#allocation2 + $0x358] sm:$0xff]
    %v2320 = vld [vmem:[#allocation2 + $0x360] sm:$0xff]
    %v2321 = vld [vmem:[#allocation2 + $0x368] sm:$0xff]
    %v2322 = vld [vmem:[#allocation2 + $0x370] sm:$0xff]
    %v2323 = vld [vmem:[#allocation2 + $0x378] sm:$0xff]
    %v2324 = vld [vmem:[#allocation2 + $0x380] sm:$0xff]
    %v2325 = vld [vmem:[#allocation2 + $0x388] sm:$0xff]
    %v2326 = vld [vmem:[#allocation2 + $0x390] sm:$0xff]
    %v2327 = vld [vmem:[#allocation2 + $0x398] sm:$0xff]
    %v2328 = vld [vmem:[#allocation2 + $0x3a0] sm:$0xff]
    %v2329 = vld [vmem:[#allocation2 + $0x3a8] sm:$0xff]
    %v2330 = vld [vmem:[#allocation2 + $0x3b0] sm:$0xff]
    %v2331 = vld [vmem:[#allocation2 + $0x3b8] sm:$0xff]
    %v2332 = vld [vmem:[#allocation2 + $0x3c0] sm:$0xff]
    %v2333 = vld [vmem:[#allocation2 + $0x3c8] sm:$0xff]
    %v2334 = vld [vmem:[#allocation2 + $0x3d0] sm:$0xff]
    %v2335 = vld [vmem:[#allocation2 + $0x3d8] sm:$0xff]
    %v2336 = vld [vmem:[#allocation2 + $0x3e0] sm:$0xff]
    %v2337 = vld [vmem:[#allocation2 + $0x3e8] sm:$0xff]
    %v2338 = vld [vmem:[#allocation2 + $0x3f0] sm:$0xff]
    %v2339 = vld [vmem:[#allocation2 + $0x3f8] sm:$0xff]
    %v2340 = vld [vmem:[#allocation2 + $0x400] sm:$0xff]
    %v2341 = vld [vmem:[#allocation2 + $0x408] sm:$0xff]
    %v2342 = vld [vmem:[#allocation2 + $0x410] sm:$0xff]
    %v2343 = vld [vmem:[#allocation2 + $0x418] sm:$0xff]
    %v2344 = vld [vmem:[#allocation2 + $0x420] sm:$0xff]
    %v2345 = vld [vmem:[#allocation2 + $0x428] sm:$0xff]
    %v2346 = vld [vmem:[#allocation2 + $0x430] sm:$0xff]
    %v2347 = vld [vmem:[#allocation2 + $0x438] sm:$0xff]
    %v2348 = vld [vmem:[#allocation2 + $0x440] sm:$0xff]
    %v2349 = vld [vmem:[#allocation2 + $0x448] sm:$0xff]
    %v2350 = vld [vmem:[#allocation2 + $0x450] sm:$0xff]
    %v2351 = vld [vmem:[#allocation2 + $0x458] sm:$0xff]
    %v2352 = vld [vmem:[#allocation2 + $0x460] sm:$0xff]
    %v2353 = vld [vmem:[#allocation2 + $0x468] sm:$0xff]
    %v2354 = vld [vmem:[#allocation2 + $0x470] sm:$0xff]
    %v2355 = vld [vmem:[#allocation2 + $0x478] sm:$0xff]
    %v2356 = vld [vmem:[#allocation2 + $0x480] sm:$0xff]
    %v2357 = vld [vmem:[#allocation2 + $0x488] sm:$0xff]
    %v2358 = vld [vmem:[#allocation2 + $0x490] sm:$0xff]
    %v2359 = vld [vmem:[#allocation2 + $0x498] sm:$0xff]
    %v2360 = vld [vmem:[#allocation2 + $0x4a0] sm:$0xff]
    %v2361 = vld [vmem:[#allocation2 + $0x4a8] sm:$0xff]
    %v2362 = vld [vmem:[#allocation2 + $0x4b0] sm:$0xff]
    %v2363 = vld [vmem:[#allocation2 + $0x4b8] sm:$0xff]
    %v2364 = vld [vmem:[#allocation2 + $0x4c0] sm:$0xff]
    %v2365 = vld [vmem:[#allocation2 + $0x4c8] sm:$0xff]
    %v2366 = vld [vmem:[#allocation2 + $0x4d0] sm:$0xff]
    %v2367 = vld [vmem:[#allocation2 + $0x4d8] sm:$0xff]
    %v2368 = vld [vmem:[#allocation2 + $0x4e0] sm:$0xff]
    %v2369 = vld [vmem:[#allocation2 + $0x4e8] sm:$0xff]
    %v2370 = vld [vmem:[#allocation2 + $0x4f0] sm:$0xff]
    %v2371 = vld [vmem:[#allocation2 + $0x4f8] sm:$0xff]
    %v2372 = vld [vmem:[#allocation2 + $0x500] sm:$0xff]
    %v2373 = vld [vmem:[#allocation2 + $0x508] sm:$0xff]
    %v2374 = vld [vmem:[#allocation2 + $0x510] sm:$0xff]
    %v2375 = vld [vmem:[#allocation2 + $0x518] sm:$0xff]
    %v2376 = vld [vmem:[#allocation2 + $0x520] sm:$0xff]
    %v2377 = vld [vmem:[#allocation2 + $0x528] sm:$0xff]
    %v2378 = vld [vmem:[#allocation2 + $0x530] sm:$0xff]
    %v2379 = vld [vmem:[#allocation2 + $0x538] sm:$0xff]
    %v2380 = vld [vmem:[#allocation2 + $0x540] sm:$0xff]
    %v2381 = vld [vmem:[#allocation2 + $0x548] sm:$0xff]
    %v2382 = vld [vmem:[#allocation2 + $0x550] sm:$0xff]
    %v2383 = vld [vmem:[#allocation2 + $0x558] sm:$0xff]
    %v2384 = vld [vmem:[#allocation2 + $0x560] sm:$0xff]
    %v2385 = vld [vmem:[#allocation2 + $0x568] sm:$0xff]
    %v2386 = vld [vmem:[#allocation2 + $0x570] sm:$0xff]
    %v2387 = vld [vmem:[#allocation2 + $0x578] sm:$0xff]
    %v2388 = vld [vmem:[#allocation2 + $0x580] sm:$0xff]
    %v2389 = vld [vmem:[#allocation2 + $0x588] sm:$0xff]
    %v2390 = vld [vmem:[#allocation2 + $0x590] sm:$0xff]
    %v2391 = vld [vmem:[#allocation2 + $0x598] sm:$0xff]
    %v2392 = vld [vmem:[#allocation2 + $0x5a0] sm:$0xff]
    %v2393 = vld [vmem:[#allocation2 + $0x5a8] sm:$0xff]
    %v2394 = vld [vmem:[#allocation2 + $0x5b0] sm:$0xff]
    %v2395 = vld [vmem:[#allocation2 + $0x5b8] sm:$0xff]
    %v2396 = vld [vmem:[#allocation2 + $0x5c0] sm:$0xff]
    %v2397 = vld [vmem:[#allocation2 + $0x5c8] sm:$0xff]
    %v2398 = vld [vmem:[#allocation2 + $0x5d0] sm:$0xff]
    %v2399 = vld [vmem:[#allocation2 + $0x5d8] sm:$0xff]
    %v2400 = vld [vmem:[#allocation2 + $0x5e0] sm:$0xff]
    %v2401 = vld [vmem:[#allocation2 + $0x5e8] sm:$0xff]
    %v2402 = vld [vmem:[#allocation2 + $0x5f0] sm:$0xff]
    %v2403 = vld [vmem:[#allocation2 + $0x5f8] sm:$0xff]
    %v2404 = vld [vmem:[#allocation2 + $0x600] sm:$0xff]
    %v2405 = vld [vmem:[#allocation2 + $0x608] sm:$0xff]
    %v2406 = vld [vmem:[#allocation2 + $0x610] sm:$0xff]
    %v2407 = vld [vmem:[#allocation2 + $0x618] sm:$0xff]
    %v2408 = vld [vmem:[#allocation2 + $0x620] sm:$0xff]
    %v2409 = vld [vmem:[#allocation2 + $0x628] sm:$0xff]
    %v2410 = vld [vmem:[#allocation2 + $0x630] sm:$0xff]
    %v2411 = vld [vmem:[#allocation2 + $0x638] sm:$0xff]
    %v2412 = vld [vmem:[#allocation2 + $0x640] sm:$0xff]
    %v2413 = vld [vmem:[#allocation2 + $0x648] sm:$0xff]
    %v2414 = vld [vmem:[#allocation2 + $0x650] sm:$0xff]
    %v2415 = vld [vmem:[#allocation2 + $0x658] sm:$0xff]
    %v2416 = vld [vmem:[#allocation2 + $0x660] sm:$0xff]
    %v2417 = vld [vmem:[#allocation2 + $0x668] sm:$0xff]
    %v2418 = vld [vmem:[#allocation2 + $0x670] sm:$0xff]
    %v2419 = vld [vmem:[#allocation2 + $0x678] sm:$0xff]
    %v2420 = vld [vmem:[#allocation2 + $0x680] sm:$0xff]
    %v2421 = vld [vmem:[#allocation2 + $0x688] sm:$0xff]
    %v2422 = vld [vmem:[#allocation2 + $0x690] sm:$0xff]
    %v2423 = vld [vmem:[#allocation2 + $0x698] sm:$0xff]
    %v2424 = vld [vmem:[#allocation2 + $0x6a0] sm:$0xff]
    %v2425 = vld [vmem:[#allocation2 + $0x6a8] sm:$0xff]
    %v2426 = vld [vmem:[#allocation2 + $0x6b0] sm:$0xff]
    %v2427 = vld [vmem:[#allocation2 + $0x6b8] sm:$0xff]
    %v2428 = vld [vmem:[#allocation2 + $0x6c0] sm:$0xff]
    %v2429 = vld [vmem:[#allocation2 + $0x6c8] sm:$0xff]
    %v2430 = vld [vmem:[#allocation2 + $0x6d0] sm:$0xff]
    %v2431 = vld [vmem:[#allocation2 + $0x6d8] sm:$0xff]
    %v2432 = vld [vmem:[#allocation2 + $0x6e0] sm:$0xff]
    %v2433 = vld [vmem:[#allocation2 + $0x6e8] sm:$0xff]
    %v2434 = vld [vmem:[#allocation2 + $0x6f0] sm:$0xff]
    %v2435 = vld [vmem:[#allocation2 + $0x6f8] sm:$0xff]
    %v2436 = vld [vmem:[#allocation2 + $0x700] sm:$0xff]
    %v2437 = vld [vmem:[#allocation2 + $0x708] sm:$0xff]
    %v2438 = vld [vmem:[#allocation2 + $0x710] sm:$0xff]
    %v2439 = vld [vmem:[#allocation2 + $0x718] sm:$0xff]
    %v2440 = vld [vmem:[#allocation2 + $0x720] sm:$0xff]
    %v2441 = vld [vmem:[#allocation2 + $0x728] sm:$0xff]
    %v2442 = vld [vmem:[#allocation2 + $0x730] sm:$0xff]
    %v2443 = vld [vmem:[#allocation2 + $0x738] sm:$0xff]
    %v2444 = vld [vmem:[#allocation2 + $0x740] sm:$0xff]
    %v2445 = vld [vmem:[#allocation2 + $0x748] sm:$0xff]
    %v2446 = vld [vmem:[#allocation2 + $0x750] sm:$0xff]
    %v2447 = vld [vmem:[#allocation2 + $0x758] sm:$0xff]
    %v2448 = vld [vmem:[#allocation2 + $0x760] sm:$0xff]
    %v2449 = vld [vmem:[#allocation2 + $0x768] sm:$0xff]
    %v2450 = vld [vmem:[#allocation2 + $0x770] sm:$0xff]
    %v2451 = vld [vmem:[#allocation2 + $0x778] sm:$0xff]
    %v2452 = vld [vmem:[#allocation2 + $0x780] sm:$0xff]
    %v2453 = vld [vmem:[#allocation2 + $0x788] sm:$0xff]
    %v2454 = vld [vmem:[#allocation2 + $0x790] sm:$0xff]
    %v2455 = vld [vmem:[#allocation2 + $0x798] sm:$0xff]
    %v2456 = vld [vmem:[#allocation2 + $0x7a0] sm:$0xff]
    %v2457 = vld [vmem:[#allocation2 + $0x7a8] sm:$0xff]
    %v2458 = vld [vmem:[#allocation2 + $0x7b0] sm:$0xff]
    %v2459 = vld [vmem:[#allocation2 + $0x7b8] sm:$0xff]
    %v2460 = vld [vmem:[#allocation2 + $0x7c0] sm:$0xff]
    %v2461 = vld [vmem:[#allocation2 + $0x7c8] sm:$0xff]
    %v2462 = vld [vmem:[#allocation2 + $0x7d0] sm:$0xff]
    %v2463 = vld [vmem:[#allocation2 + $0x7d8] sm:$0xff]
    %v2464 = vld [vmem:[#allocation2 + $0x7e0] sm:$0xff]
    %v2465 = vld [vmem:[#allocation2 + $0x7e8] sm:$0xff]
    %v2466 = vld [vmem:[#allocation2 + $0x7f0] sm:$0xff]
    %v2467 = vld [vmem:[#allocation2 + $0x7f8] sm:$0xff]
    %v2468 = vld [vmem:[%s14] sm:$0xff]
    %v2470 = vperm.slane %v2468, 0
    %v2471 = vperm.slane %v2468, 1
    %v2472 = vperm.slane %v2468, 2
    %v2473 = vperm.slane %v2468, 3
    %v2474 = vperm.slane %v2468, 4
    %v2475 = vperm.slane %v2468, 5
    %v2476 = vperm.slane %v2468, 6
    %v2477 = vperm.slane %v2468, 7
    %2486 = vmatpush.msra.mxu0 %v2332
    %2487 = vmatpush.msra.mxu0 %v2324
    %2488 = vmatpush.msra.mxu0 %v2316
    %2489 = vmatpush.msra.mxu0 %v2308
    %2490 = vmatpush.msra.mxu0 %v2300
    %2491 = vmatpush.msra.mxu0 %v2292
    %2492 = vmatpush.msra.mxu0 %v2284
    %2493 = vmatpush.msra.mxu0 %v2276
    %2494 = vmatpush.msra.mxu0 %v2268
    %2495 = vmatpush.msra.mxu0 %v2260
    %2496 = vmatpush.msra.mxu0 %v2252
    %2497 = vmatpush.msra.mxu0 %v2244
    %2498 = vmatpush.msra.mxu0 %v2236
    %2499 = vmatpush.msra.mxu0 %v2228
    %2500 = vmatpush.msra.mxu0 %v2220
    %2501 = vmatpush.msra.mxu0 %v2212
    %2502 = vmatmul.f32.gmra.mxu0 %v2200
    %v2503 = vpop.f32.mrf.mxu0
    %v2504 = vadd.f32 %v2470, %v2503
    %2505 = vdwg.mxu0
    %2506 = vmatpush.msra.mxu0 %v2460
    %2507 = vmatpush.msra.mxu0 %v2452
    %2508 = vmatpush.msra.mxu0 %v2444
    %2509 = vmatpush.msra.mxu0 %v2436
    %2510 = vmatpush.msra.mxu0 %v2428
    %2511 = vmatpush.msra.mxu0 %v2420
    %2512 = vmatpush.msra.mxu0 %v2412
    %2513 = vmatpush.msra.mxu0 %v2404
    %2514 = vmatpush.msra.mxu0 %v2396
    %2515 = vmatpush.msra.mxu0 %v2388
    %2516 = vmatpush.msra.mxu0 %v2380
    %2517 = vmatpush.msra.mxu0 %v2372
    %2518 = vmatpush.msra.mxu0 %v2364
    %2519 = vmatpush.msra.mxu0 %v2356
    %2520 = vmatpush.msra.mxu0 %v2348
    %2521 = vmatpush.msra.mxu0 %v2340
    %2522 = vmatmul.f32.gmra.mxu0 %v2207
    %v2523 = vpop.f32.mrf.mxu0
    %v2524 = vadd.f32 %v2504, %v2523
    %2525 = vdwg.mxu0
    %2526 = vmatpush.msra.mxu0 %v2333
    %2527 = vmatpush.msra.mxu0 %v2325
    %2528 = vmatpush.msra.mxu0 %v2317
    %2529 = vmatpush.msra.mxu0 %v2309
    %2530 = vmatpush.msra.mxu0 %v2301
    %2531 = vmatpush.msra.mxu0 %v2293
    %2532 = vmatpush.msra.mxu0 %v2285
    %2533 = vmatpush.msra.mxu0 %v2277
    %2534 = vmatpush.msra.mxu0 %v2269
    %2535 = vmatpush.msra.mxu0 %v2261
    %2536 = vmatpush.msra.mxu0 %v2253
    %2537 = vmatpush.msra.mxu0 %v2245
    %2538 = vmatpush.msra.mxu0 %v2237
    %2539 = vmatpush.msra.mxu0 %v2229
    %2540 = vmatpush.msra.mxu0 %v2221
    %2541 = vmatpush.msra.mxu0 %v2213
    %2542 = vmatmul.f32.gmra.mxu0 %v2200
    %v2543 = vpop.f32.mrf.mxu0
    %v2544 = vadd.f32 %v2471, %v2543
    %2545 = vdwg.mxu0
    %2546 = vmatpush.msra.mxu0 %v2461
    %2547 = vmatpush.msra.mxu0 %v2453
    %2548 = vmatpush.msra.mxu0 %v2445
    %2549 = vmatpush.msra.mxu0 %v2437
    %2550 = vmatpush.msra.mxu0 %v2429
    %2551 = vmatpush.msra.mxu0 %v2421
    %2552 = vmatpush.msra.mxu0 %v2413
    %2553 = vmatpush.msra.mxu0 %v2405
    %2554 = vmatpush.msra.mxu0 %v2397
    %2555 = vmatpush.msra.mxu0 %v2389
    %2556 = vmatpush.msra.mxu0 %v2381
    %2557 = vmatpush.msra.mxu0 %v2373
    %2558 = vmatpush.msra.mxu0 %v2365
    %2559 = vmatpush.msra.mxu0 %v2357
    %2560 = vmatpush.msra.mxu0 %v2349
    %2561 = vmatpush.msra.mxu0 %v2341
    %2562 = vmatmul.f32.gmra.mxu0 %v2207
    %v2563 = vpop.f32.mrf.mxu0
    %v2564 = vadd.f32 %v2544, %v2563
    %2565 = vdwg.mxu0
    %2566 = vmatpush.msra.mxu0 %v2334
    %2567 = vmatpush.msra.mxu0 %v2326
    %2568 = vmatpush.msra.mxu0 %v2318
    %2569 = vmatpush.msra.mxu0 %v2310
    %2570 = vmatpush.msra.mxu0 %v2302
    %2571 = vmatpush.msra.mxu0 %v2294
    %2572 = vmatpush.msra.mxu0 %v2286
    %2573 = vmatpush.msra.mxu0 %v2278
    %2574 = vmatpush.msra.mxu0 %v2270
    %2575 = vmatpush.msra.mxu0 %v2262
    %2576 = vmatpush.msra.mxu0 %v2254
    %2577 = vmatpush.msra.mxu0 %v2246
    %2578 = vmatpush.msra.mxu0 %v2238
    %2579 = vmatpush.msra.mxu0 %v2230
    %2580 = vmatpush.msra.mxu0 %v2222
    %2581 = vmatpush.msra.mxu0 %v2214
    %2582 = vmatmul.f32.gmra.mxu0 %v2200
    %v2583 = vpop.f32.mrf.mxu0
    %v2584 = vadd.f32 %v2472, %v2583
    %2585 = vdwg.mxu0
    %2586 = vmatpush.msra.mxu0 %v2462
    %2587 = vmatpush.msra.mxu0 %v2454
    %2588 = vmatpush.msra.mxu0 %v2446
    %2589 = vmatpush.msra.mxu0 %v2438
    %2590 = vmatpush.msra.mxu0 %v2430
    %2591 = vmatpush.msra.mxu0 %v2422
    %2592 = vmatpush.msra.mxu0 %v2414
    %2593 = vmatpush.msra.mxu0 %v2406
    %2594 = vmatpush.msra.mxu0 %v2398
    %2595 = vmatpush.msra.mxu0 %v2390
    %2596 = vmatpush.msra.mxu0 %v2382
    %2597 = vmatpush.msra.mxu0 %v2374
    %2598 = vmatpush.msra.mxu0 %v2366
    %2599 = vmatpush.msra.mxu0 %v2358
    %2600 = vmatpush.msra.mxu0 %v2350
    %2601 = vmatpush.msra.mxu0 %v2342
    %2602 = vmatmul.f32.gmra.mxu0 %v2207
    %v2603 = vpop.f32.mrf.mxu0
    %v2604 = vadd.f32 %v2584, %v2603
    %2605 = vdwg.mxu0
    %2606 = vmatpush.msra.mxu0 %v2335
    %2607 = vmatpush.msra.mxu0 %v2327
    %2608 = vmatpush.msra.mxu0 %v2319
    %2609 = vmatpush.msra.mxu0 %v2311
    %2610 = vmatpush.msra.mxu0 %v2303
    %2611 = vmatpush.msra.mxu0 %v2295
    %2612 = vmatpush.msra.mxu0 %v2287
    %2613 = vmatpush.msra.mxu0 %v2279
    %2614 = vmatpush.msra.mxu0 %v2271
    %2615 = vmatpush.msra.mxu0 %v2263
    %2616 = vmatpush.msra.mxu0 %v2255
    %2617 = vmatpush.msra.mxu0 %v2247
    %2618 = vmatpush.msra.mxu0 %v2239
    %2619 = vmatpush.msra.mxu0 %v2231
    %2620 = vmatpush.msra.mxu0 %v2223
    %2621 = vmatpush.msra.mxu0 %v2215
    %2622 = vmatmul.f32.gmra.mxu0 %v2200
    %v2623 = vpop.f32.mrf.mxu0
    %v2624 = vadd.f32 %v2473, %v2623
    %2625 = vdwg.mxu0
    %2626 = vmatpush.msra.mxu0 %v2463
    %2627 = vmatpush.msra.mxu0 %v2455
    %2628 = vmatpush.msra.mxu0 %v2447
    %2629 = vmatpush.msra.mxu0 %v2439
    %2630 = vmatpush.msra.mxu0 %v2431
    %2631 = vmatpush.msra.mxu0 %v2423
    %2632 = vmatpush.msra.mxu0 %v2415
    %2633 = vmatpush.msra.mxu0 %v2407
    %2634 = vmatpush.msra.mxu0 %v2399
    %2635 = vmatpush.msra.mxu0 %v2391
    %2636 = vmatpush.msra.mxu0 %v2383
    %2637 = vmatpush.msra.mxu0 %v2375
    %2638 = vmatpush.msra.mxu0 %v2367
    %2639 = vmatpush.msra.mxu0 %v2359
    %2640 = vmatpush.msra.mxu0 %v2351
    %2641 = vmatpush.msra.mxu0 %v2343
    %2642 = vmatmul.f32.gmra.mxu0 %v2207
    %v2643 = vpop.f32.mrf.mxu0
    %v2644 = vadd.f32 %v2624, %v2643
    %2645 = vdwg.mxu0
    %2646 = vmatpush.msra.mxu0 %v2336
    %2647 = vmatpush.msra.mxu0 %v2328
    %2648 = vmatpush.msra.mxu0 %v2320
    %2649 = vmatpush.msra.mxu0 %v2312
    %2650 = vmatpush.msra.mxu0 %v2304
    %2651 = vmatpush.msra.mxu0 %v2296
    %2652 = vmatpush.msra.mxu0 %v2288
    %2653 = vmatpush.msra.mxu0 %v2280
    %2654 = vmatpush.msra.mxu0 %v2272
    %2655 = vmatpush.msra.mxu0 %v2264
    %2656 = vmatpush.msra.mxu0 %v2256
    %2657 = vmatpush.msra.mxu0 %v2248
    %2658 = vmatpush.msra.mxu0 %v2240
    %2659 = vmatpush.msra.mxu0 %v2232
    %2660 = vmatpush.msra.mxu0 %v2224
    %2661 = vmatpush.msra.mxu0 %v2216
    %2662 = vmatmul.f32.gmra.mxu0 %v2200
    %v2663 = vpop.f32.mrf.mxu0
    %v2664 = vadd.f32 %v2474, %v2663
    %2665 = vdwg.mxu0
    %2666 = vmatpush.msra.mxu0 %v2464
    %2667 = vmatpush.msra.mxu0 %v2456
    %2668 = vmatpush.msra.mxu0 %v2448
    %2669 = vmatpush.msra.mxu0 %v2440
    %2670 = vmatpush.msra.mxu0 %v2432
    %2671 = vmatpush.msra.mxu0 %v2424
    %2672 = vmatpush.msra.mxu0 %v2416
    %2673 = vmatpush.msra.mxu0 %v2408
    %2674 = vmatpush.msra.mxu0 %v2400
    %2675 = vmatpush.msra.mxu0 %v2392
    %2676 = vmatpush.msra.mxu0 %v2384
    %2677 = vmatpush.msra.mxu0 %v2376
    %2678 = vmatpush.msra.mxu0 %v2368
    %2679 = vmatpush.msra.mxu0 %v2360
    %2680 = vmatpush.msra.mxu0 %v2352
    %2681 = vmatpush.msra.mxu0 %v2344
    %2682 = vmatmul.f32.gmra.mxu0 %v2207
    %v2683 = vpop.f32.mrf.mxu0
    %v2684 = vadd.f32 %v2664, %v2683
    %2685 = vdwg.mxu0
    %2686 = vmatpush.msra.mxu0 %v2337
    %2687 = vmatpush.msra.mxu0 %v2329
    %2688 = vmatpush.msra.mxu0 %v2321
    %2689 = vmatpush.msra.mxu0 %v2313
    %2690 = vmatpush.msra.mxu0 %v2305
    %2691 = vmatpush.msra.mxu0 %v2297
    %2692 = vmatpush.msra.mxu0 %v2289
    %2693 = vmatpush.msra.mxu0 %v2281
    %2694 = vmatpush.msra.mxu0 %v2273
    %2695 = vmatpush.msra.mxu0 %v2265
    %2696 = vmatpush.msra.mxu0 %v2257
    %2697 = vmatpush.msra.mxu0 %v2249
    %2698 = vmatpush.msra.mxu0 %v2241
    %2699 = vmatpush.msra.mxu0 %v2233
    %2700 = vmatpush.msra.mxu0 %v2225
    %2701 = vmatpush.msra.mxu0 %v2217
    %2702 = vmatmul.f32.gmra.mxu0 %v2200
    %v2703 = vpop.f32.mrf.mxu0
    %v2704 = vadd.f32 %v2475, %v2703
    %2705 = vdwg.mxu0
    %2706 = vmatpush.msra.mxu0 %v2465
    %2707 = vmatpush.msra.mxu0 %v2457
    %2708 = vmatpush.msra.mxu0 %v2449
    %2709 = vmatpush.msra.mxu0 %v2441
    %2710 = vmatpush.msra.mxu0 %v2433
    %2711 = vmatpush.msra.mxu0 %v2425
    %2712 = vmatpush.msra.mxu0 %v2417
    %2713 = vmatpush.msra.mxu0 %v2409
    %2714 = vmatpush.msra.mxu0 %v2401
    %2715 = vmatpush.msra.mxu0 %v2393
    %2716 = vmatpush.msra.mxu0 %v2385
    %2717 = vmatpush.msra.mxu0 %v2377
    %2718 = vmatpush.msra.mxu0 %v2369
    %2719 = vmatpush.msra.mxu0 %v2361
    %2720 = vmatpush.msra.mxu0 %v2353
    %2721 = vmatpush.msra.mxu0 %v2345
    %2722 = vmatmul.f32.gmra.mxu0 %v2207
    %v2723 = vpop.f32.mrf.mxu0
    %v2724 = vadd.f32 %v2704, %v2723
    %2725 = vdwg.mxu0
    %2726 = vmatpush.msra.mxu0 %v2338
    %2727 = vmatpush.msra.mxu0 %v2330
    %2728 = vmatpush.msra.mxu0 %v2322
    %2729 = vmatpush.msra.mxu0 %v2314
    %2730 = vmatpush.msra.mxu0 %v2306
    %2731 = vmatpush.msra.mxu0 %v2298
    %2732 = vmatpush.msra.mxu0 %v2290
    %2733 = vmatpush.msra.mxu0 %v2282
    %2734 = vmatpush.msra.mxu0 %v2274
    %2735 = vmatpush.msra.mxu0 %v2266
    %2736 = vmatpush.msra.mxu0 %v2258
    %2737 = vmatpush.msra.mxu0 %v2250
    %2738 = vmatpush.msra.mxu0 %v2242
    %2739 = vmatpush.msra.mxu0 %v2234
    %2740 = vmatpush.msra.mxu0 %v2226
    %2741 = vmatpush.msra.mxu0 %v2218
    %2742 = vmatmul.f32.gmra.mxu0 %v2200
    %v2743 = vpop.f32.mrf.mxu0
    %v2744 = vadd.f32 %v2476, %v2743
    %2745 = vdwg.mxu0
    %2746 = vmatpush.msra.mxu0 %v2466
    %2747 = vmatpush.msra.mxu0 %v2458
    %2748 = vmatpush.msra.mxu0 %v2450
    %2749 = vmatpush.msra.mxu0 %v2442
    %2750 = vmatpush.msra.mxu0 %v2434
    %2751 = vmatpush.msra.mxu0 %v2426
    %2752 = vmatpush.msra.mxu0 %v2418
    %2753 = vmatpush.msra.mxu0 %v2410
    %2754 = vmatpush.msra.mxu0 %v2402
    %2755 = vmatpush.msra.mxu0 %v2394
    %2756 = vmatpush.msra.mxu0 %v2386
    %2757 = vmatpush.msra.mxu0 %v2378
    %2758 = vmatpush.msra.mxu0 %v2370
    %2759 = vmatpush.msra.mxu0 %v2362
    %2760 = vmatpush.msra.mxu0 %v2354
    %2761 = vmatpush.msra.mxu0 %v2346
    %2762 = vmatmul.f32.gmra.mxu0 %v2207
    %v2763 = vpop.f32.mrf.mxu0
    %v2764 = vadd.f32 %v2744, %v2763
    %2765 = vdwg.mxu0
    %2766 = vmatpush.msra.mxu0 %v2339
    %2767 = vmatpush.msra.mxu0 %v2331
    %2768 = vmatpush.msra.mxu0 %v2323
    %2769 = vmatpush.msra.mxu0 %v2315
    %2770 = vmatpush.msra.mxu0 %v2307
    %2771 = vmatpush.msra.mxu0 %v2299
    %2772 = vmatpush.msra.mxu0 %v2291
    %2773 = vmatpush.msra.mxu0 %v2283
    %2774 = vmatpush.msra.mxu0 %v2275
    %2775 = vmatpush.msra.mxu0 %v2267
    %2776 = vmatpush.msra.mxu0 %v2259
    %2777 = vmatpush.msra.mxu0 %v2251
    %2778 = vmatpush.msra.mxu0 %v2243
    %2779 = vmatpush.msra.mxu0 %v2235
    %2780 = vmatpush.msra.mxu0 %v2227
    %2781 = vmatpush.msra.mxu0 %v2219
    %2782 = vmatmul.f32.gmra.mxu0 %v2200
    %v2783 = vpop.f32.mrf.mxu0
    %v2784 = vadd.f32 %v2477, %v2783
    %2785 = vdwg.mxu0
    %2786 = vmatpush.msra.mxu0 %v2467
    %2787 = vmatpush.msra.mxu0 %v2459
    %2788 = vmatpush.msra.mxu0 %v2451
    %2789 = vmatpush.msra.mxu0 %v2443
    %2790 = vmatpush.msra.mxu0 %v2435
    %2791 = vmatpush.msra.mxu0 %v2427
    %2792 = vmatpush.msra.mxu0 %v2419
    %2793 = vmatpush.msra.mxu0 %v2411
    %2794 = vmatpush.msra.mxu0 %v2403
    %2795 = vmatpush.msra.mxu0 %v2395
    %2796 = vmatpush.msra.mxu0 %v2387
    %2797 = vmatpush.msra.mxu0 %v2379
    %2798 = vmatpush.msra.mxu0 %v2371
    %2799 = vmatpush.msra.mxu0 %v2363
    %2800 = vmatpush.msra.mxu0 %v2355
    %2801 = vmatpush.msra.mxu0 %v2347
    %2802 = vmatmul.f32.gmra.mxu0 %v2207
    %v2803 = vpop.f32.mrf.mxu0
    %v2804 = vadd.f32 %v2784, %v2803
    %2805 = vdwg.mxu0
    %s2806 = smul.u32 8, 128
    %s2807 = smul.u32 %s2806, 2
    %s2808 = sshll.u32 %s2807, 4
    %2809 = dma.done %s119, %s2808
    %v2810 = vld [vmem:[#allocation3] sm:$0xff]
    %v2811 = vld [vmem:[#allocation3 + $0x8] sm:$0xff]
    %v2812 = vld [vmem:[#allocation3 + $0x10] sm:$0xff]
    %v2813 = vld [vmem:[#allocation3 + $0x18] sm:$0xff]
    %v2814 = vld [vmem:[#allocation3 + $0x20] sm:$0xff]
    %v2815 = vld [vmem:[#allocation3 + $0x28] sm:$0xff]
    %v2816 = vld [vmem:[#allocation3 + $0x30] sm:$0xff]
    %v2817 = vld [vmem:[#allocation3 + $0x38] sm:$0xff]
    %v2818 = vld [vmem:[#allocation3 + $0x40] sm:$0xff]
    %v2819 = vld [vmem:[#allocation3 + $0x48] sm:$0xff]
    %v2820 = vld [vmem:[#allocation3 + $0x50] sm:$0xff]
    %v2821 = vld [vmem:[#allocation3 + $0x58] sm:$0xff]
    %v2822 = vld [vmem:[#allocation3 + $0x60] sm:$0xff]
    %v2823 = vld [vmem:[#allocation3 + $0x68] sm:$0xff]
    %v2824 = vld [vmem:[#allocation3 + $0x70] sm:$0xff]
    %v2825 = vld [vmem:[#allocation3 + $0x78] sm:$0xff]
    %v2826 = vld [vmem:[#allocation3 + $0x80] sm:$0xff]
    %v2827 = vld [vmem:[#allocation3 + $0x88] sm:$0xff]
    %v2828 = vld [vmem:[#allocation3 + $0x90] sm:$0xff]
    %v2829 = vld [vmem:[#allocation3 + $0x98] sm:$0xff]
    %v2830 = vld [vmem:[#allocation3 + $0xa0] sm:$0xff]
    %v2831 = vld [vmem:[#allocation3 + $0xa8] sm:$0xff]
    %v2832 = vld [vmem:[#allocation3 + $0xb0] sm:$0xff]
    %v2833 = vld [vmem:[#allocation3 + $0xb8] sm:$0xff]
    %v2834 = vld [vmem:[#allocation3 + $0xc0] sm:$0xff]
    %v2835 = vld [vmem:[#allocation3 + $0xc8] sm:$0xff]
    %v2836 = vld [vmem:[#allocation3 + $0xd0] sm:$0xff]
    %v2837 = vld [vmem:[#allocation3 + $0xd8] sm:$0xff]
    %v2838 = vld [vmem:[#allocation3 + $0xe0] sm:$0xff]
    %v2839 = vld [vmem:[#allocation3 + $0xe8] sm:$0xff]
    %v2840 = vld [vmem:[#allocation3 + $0xf0] sm:$0xff]
    %v2841 = vld [vmem:[#allocation3 + $0xf8] sm:$0xff]
    %v2842 = vld [vmem:[#allocation3 + $0x100] sm:$0xff]
    %v2843 = vld [vmem:[#allocation3 + $0x108] sm:$0xff]
    %v2844 = vld [vmem:[#allocation3 + $0x110] sm:$0xff]
    %v2845 = vld [vmem:[#allocation3 + $0x118] sm:$0xff]
    %v2846 = vld [vmem:[#allocation3 + $0x120] sm:$0xff]
    %v2847 = vld [vmem:[#allocation3 + $0x128] sm:$0xff]
    %v2848 = vld [vmem:[#allocation3 + $0x130] sm:$0xff]
    %v2849 = vld [vmem:[#allocation3 + $0x138] sm:$0xff]
    %v2850 = vld [vmem:[#allocation3 + $0x140] sm:$0xff]
    %v2851 = vld [vmem:[#allocation3 + $0x148] sm:$0xff]
    %v2852 = vld [vmem:[#allocation3 + $0x150] sm:$0xff]
    %v2853 = vld [vmem:[#allocation3 + $0x158] sm:$0xff]
    %v2854 = vld [vmem:[#allocation3 + $0x160] sm:$0xff]
    %v2855 = vld [vmem:[#allocation3 + $0x168] sm:$0xff]
    %v2856 = vld [vmem:[#allocation3 + $0x170] sm:$0xff]
    %v2857 = vld [vmem:[#allocation3 + $0x178] sm:$0xff]
    %v2858 = vld [vmem:[#allocation3 + $0x180] sm:$0xff]
    %v2859 = vld [vmem:[#allocation3 + $0x188] sm:$0xff]
    %v2860 = vld [vmem:[#allocation3 + $0x190] sm:$0xff]
    %v2861 = vld [vmem:[#allocation3 + $0x198] sm:$0xff]
    %v2862 = vld [vmem:[#allocation3 + $0x1a0] sm:$0xff]
    %v2863 = vld [vmem:[#allocation3 + $0x1a8] sm:$0xff]
    %v2864 = vld [vmem:[#allocation3 + $0x1b0] sm:$0xff]
    %v2865 = vld [vmem:[#allocation3 + $0x1b8] sm:$0xff]
    %v2866 = vld [vmem:[#allocation3 + $0x1c0] sm:$0xff]
    %v2867 = vld [vmem:[#allocation3 + $0x1c8] sm:$0xff]
    %v2868 = vld [vmem:[#allocation3 + $0x1d0] sm:$0xff]
    %v2869 = vld [vmem:[#allocation3 + $0x1d8] sm:$0xff]
    %v2870 = vld [vmem:[#allocation3 + $0x1e0] sm:$0xff]
    %v2871 = vld [vmem:[#allocation3 + $0x1e8] sm:$0xff]
    %v2872 = vld [vmem:[#allocation3 + $0x1f0] sm:$0xff]
    %v2873 = vld [vmem:[#allocation3 + $0x1f8] sm:$0xff]
    %v2874 = vld [vmem:[#allocation3 + $0x200] sm:$0xff]
    %v2875 = vld [vmem:[#allocation3 + $0x208] sm:$0xff]
    %v2876 = vld [vmem:[#allocation3 + $0x210] sm:$0xff]
    %v2877 = vld [vmem:[#allocation3 + $0x218] sm:$0xff]
    %v2878 = vld [vmem:[#allocation3 + $0x220] sm:$0xff]
    %v2879 = vld [vmem:[#allocation3 + $0x228] sm:$0xff]
    %v2880 = vld [vmem:[#allocation3 + $0x230] sm:$0xff]
    %v2881 = vld [vmem:[#allocation3 + $0x238] sm:$0xff]
    %v2882 = vld [vmem:[#allocation3 + $0x240] sm:$0xff]
    %v2883 = vld [vmem:[#allocation3 + $0x248] sm:$0xff]
    %v2884 = vld [vmem:[#allocation3 + $0x250] sm:$0xff]
    %v2885 = vld [vmem:[#allocation3 + $0x258] sm:$0xff]
    %v2886 = vld [vmem:[#allocation3 + $0x260] sm:$0xff]
    %v2887 = vld [vmem:[#allocation3 + $0x268] sm:$0xff]
    %v2888 = vld [vmem:[#allocation3 + $0x270] sm:$0xff]
    %v2889 = vld [vmem:[#allocation3 + $0x278] sm:$0xff]
    %v2890 = vld [vmem:[#allocation3 + $0x280] sm:$0xff]
    %v2891 = vld [vmem:[#allocation3 + $0x288] sm:$0xff]
    %v2892 = vld [vmem:[#allocation3 + $0x290] sm:$0xff]
    %v2893 = vld [vmem:[#allocation3 + $0x298] sm:$0xff]
    %v2894 = vld [vmem:[#allocation3 + $0x2a0] sm:$0xff]
    %v2895 = vld [vmem:[#allocation3 + $0x2a8] sm:$0xff]
    %v2896 = vld [vmem:[#allocation3 + $0x2b0] sm:$0xff]
    %v2897 = vld [vmem:[#allocation3 + $0x2b8] sm:$0xff]
    %v2898 = vld [vmem:[#allocation3 + $0x2c0] sm:$0xff]
    %v2899 = vld [vmem:[#allocation3 + $0x2c8] sm:$0xff]
    %v2900 = vld [vmem:[#allocation3 + $0x2d0] sm:$0xff]
    %v2901 = vld [vmem:[#allocation3 + $0x2d8] sm:$0xff]
    %v2902 = vld [vmem:[#allocation3 + $0x2e0] sm:$0xff]
    %v2903 = vld [vmem:[#allocation3 + $0x2e8] sm:$0xff]
    %v2904 = vld [vmem:[#allocation3 + $0x2f0] sm:$0xff]
    %v2905 = vld [vmem:[#allocation3 + $0x2f8] sm:$0xff]
    %v2906 = vld [vmem:[#allocation3 + $0x300] sm:$0xff]
    %v2907 = vld [vmem:[#allocation3 + $0x308] sm:$0xff]
    %v2908 = vld [vmem:[#allocation3 + $0x310] sm:$0xff]
    %v2909 = vld [vmem:[#allocation3 + $0x318] sm:$0xff]
    %v2910 = vld [vmem:[#allocation3 + $0x320] sm:$0xff]
    %v2911 = vld [vmem:[#allocation3 + $0x328] sm:$0xff]
    %v2912 = vld [vmem:[#allocation3 + $0x330] sm:$0xff]
    %v2913 = vld [vmem:[#allocation3 + $0x338] sm:$0xff]
    %v2914 = vld [vmem:[#allocation3 + $0x340] sm:$0xff]
    %v2915 = vld [vmem:[#allocation3 + $0x348] sm:$0xff]
    %v2916 = vld [vmem:[#allocation3 + $0x350] sm:$0xff]
    %v2917 = vld [vmem:[#allocation3 + $0x358] sm:$0xff]
    %v2918 = vld [vmem:[#allocation3 + $0x360] sm:$0xff]
    %v2919 = vld [vmem:[#allocation3 + $0x368] sm:$0xff]
    %v2920 = vld [vmem:[#allocation3 + $0x370] sm:$0xff]
    %v2921 = vld [vmem:[#allocation3 + $0x378] sm:$0xff]
    %v2922 = vld [vmem:[#allocation3 + $0x380] sm:$0xff]
    %v2923 = vld [vmem:[#allocation3 + $0x388] sm:$0xff]
    %v2924 = vld [vmem:[#allocation3 + $0x390] sm:$0xff]
    %v2925 = vld [vmem:[#allocation3 + $0x398] sm:$0xff]
    %v2926 = vld [vmem:[#allocation3 + $0x3a0] sm:$0xff]
    %v2927 = vld [vmem:[#allocation3 + $0x3a8] sm:$0xff]
    %v2928 = vld [vmem:[#allocation3 + $0x3b0] sm:$0xff]
    %v2929 = vld [vmem:[#allocation3 + $0x3b8] sm:$0xff]
    %v2930 = vld [vmem:[#allocation3 + $0x3c0] sm:$0xff]
    %v2931 = vld [vmem:[#allocation3 + $0x3c8] sm:$0xff]
    %v2932 = vld [vmem:[#allocation3 + $0x3d0] sm:$0xff]
    %v2933 = vld [vmem:[#allocation3 + $0x3d8] sm:$0xff]
    %v2934 = vld [vmem:[#allocation3 + $0x3e0] sm:$0xff]
    %v2935 = vld [vmem:[#allocation3 + $0x3e8] sm:$0xff]
    %v2936 = vld [vmem:[#allocation3 + $0x3f0] sm:$0xff]
    %v2937 = vld [vmem:[#allocation3 + $0x3f8] sm:$0xff]
    %v2938 = vld [vmem:[#allocation3 + $0x400] sm:$0xff]
    %v2939 = vld [vmem:[#allocation3 + $0x408] sm:$0xff]
    %v2940 = vld [vmem:[#allocation3 + $0x410] sm:$0xff]
    %v2941 = vld [vmem:[#allocation3 + $0x418] sm:$0xff]
    %v2942 = vld [vmem:[#allocation3 + $0x420] sm:$0xff]
    %v2943 = vld [vmem:[#allocation3 + $0x428] sm:$0xff]
    %v2944 = vld [vmem:[#allocation3 + $0x430] sm:$0xff]
    %v2945 = vld [vmem:[#allocation3 + $0x438] sm:$0xff]
    %v2946 = vld [vmem:[#allocation3 + $0x440] sm:$0xff]
    %v2947 = vld [vmem:[#allocation3 + $0x448] sm:$0xff]
    %v2948 = vld [vmem:[#allocation3 + $0x450] sm:$0xff]
    %v2949 = vld [vmem:[#allocation3 + $0x458] sm:$0xff]
    %v2950 = vld [vmem:[#allocation3 + $0x460] sm:$0xff]
    %v2951 = vld [vmem:[#allocation3 + $0x468] sm:$0xff]
    %v2952 = vld [vmem:[#allocation3 + $0x470] sm:$0xff]
    %v2953 = vld [vmem:[#allocation3 + $0x478] sm:$0xff]
    %v2954 = vld [vmem:[#allocation3 + $0x480] sm:$0xff]
    %v2955 = vld [vmem:[#allocation3 + $0x488] sm:$0xff]
    %v2956 = vld [vmem:[#allocation3 + $0x490] sm:$0xff]
    %v2957 = vld [vmem:[#allocation3 + $0x498] sm:$0xff]
    %v2958 = vld [vmem:[#allocation3 + $0x4a0] sm:$0xff]
    %v2959 = vld [vmem:[#allocation3 + $0x4a8] sm:$0xff]
    %v2960 = vld [vmem:[#allocation3 + $0x4b0] sm:$0xff]
    %v2961 = vld [vmem:[#allocation3 + $0x4b8] sm:$0xff]
    %v2962 = vld [vmem:[#allocation3 + $0x4c0] sm:$0xff]
    %v2963 = vld [vmem:[#allocation3 + $0x4c8] sm:$0xff]
    %v2964 = vld [vmem:[#allocation3 + $0x4d0] sm:$0xff]
    %v2965 = vld [vmem:[#allocation3 + $0x4d8] sm:$0xff]
    %v2966 = vld [vmem:[#allocation3 + $0x4e0] sm:$0xff]
    %v2967 = vld [vmem:[#allocation3 + $0x4e8] sm:$0xff]
    %v2968 = vld [vmem:[#allocation3 + $0x4f0] sm:$0xff]
    %v2969 = vld [vmem:[#allocation3 + $0x4f8] sm:$0xff]
    %v2970 = vld [vmem:[#allocation3 + $0x500] sm:$0xff]
    %v2971 = vld [vmem:[#allocation3 + $0x508] sm:$0xff]
    %v2972 = vld [vmem:[#allocation3 + $0x510] sm:$0xff]
    %v2973 = vld [vmem:[#allocation3 + $0x518] sm:$0xff]
    %v2974 = vld [vmem:[#allocation3 + $0x520] sm:$0xff]
    %v2975 = vld [vmem:[#allocation3 + $0x528] sm:$0xff]
    %v2976 = vld [vmem:[#allocation3 + $0x530] sm:$0xff]
    %v2977 = vld [vmem:[#allocation3 + $0x538] sm:$0xff]
    %v2978 = vld [vmem:[#allocation3 + $0x540] sm:$0xff]
    %v2979 = vld [vmem:[#allocation3 + $0x548] sm:$0xff]
    %v2980 = vld [vmem:[#allocation3 + $0x550] sm:$0xff]
    %v2981 = vld [vmem:[#allocation3 + $0x558] sm:$0xff]
    %v2982 = vld [vmem:[#allocation3 + $0x560] sm:$0xff]
    %v2983 = vld [vmem:[#allocation3 + $0x568] sm:$0xff]
    %v2984 = vld [vmem:[#allocation3 + $0x570] sm:$0xff]
    %v2985 = vld [vmem:[#allocation3 + $0x578] sm:$0xff]
    %v2986 = vld [vmem:[#allocation3 + $0x580] sm:$0xff]
    %v2987 = vld [vmem:[#allocation3 + $0x588] sm:$0xff]
    %v2988 = vld [vmem:[#allocation3 + $0x590] sm:$0xff]
    %v2989 = vld [vmem:[#allocation3 + $0x598] sm:$0xff]
    %v2990 = vld [vmem:[#allocation3 + $0x5a0] sm:$0xff]
    %v2991 = vld [vmem:[#allocation3 + $0x5a8] sm:$0xff]
    %v2992 = vld [vmem:[#allocation3 + $0x5b0] sm:$0xff]
    %v2993 = vld [vmem:[#allocation3 + $0x5b8] sm:$0xff]
    %v2994 = vld [vmem:[#allocation3 + $0x5c0] sm:$0xff]
    %v2995 = vld [vmem:[#allocation3 + $0x5c8] sm:$0xff]
    %v2996 = vld [vmem:[#allocation3 + $0x5d0] sm:$0xff]
    %v2997 = vld [vmem:[#allocation3 + $0x5d8] sm:$0xff]
    %v2998 = vld [vmem:[#allocation3 + $0x5e0] sm:$0xff]
    %v2999 = vld [vmem:[#allocation3 + $0x5e8] sm:$0xff]
    %v3000 = vld [vmem:[#allocation3 + $0x5f0] sm:$0xff]
    %v3001 = vld [vmem:[#allocation3 + $0x5f8] sm:$0xff]
    %v3002 = vld [vmem:[#allocation3 + $0x600] sm:$0xff]
    %v3003 = vld [vmem:[#allocation3 + $0x608] sm:$0xff]
    %v3004 = vld [vmem:[#allocation3 + $0x610] sm:$0xff]
    %v3005 = vld [vmem:[#allocation3 + $0x618] sm:$0xff]
    %v3006 = vld [vmem:[#allocation3 + $0x620] sm:$0xff]
    %v3007 = vld [vmem:[#allocation3 + $0x628] sm:$0xff]
    %v3008 = vld [vmem:[#allocation3 + $0x630] sm:$0xff]
    %v3009 = vld [vmem:[#allocation3 + $0x638] sm:$0xff]
    %v3010 = vld [vmem:[#allocation3 + $0x640] sm:$0xff]
    %v3011 = vld [vmem:[#allocation3 + $0x648] sm:$0xff]
    %v3012 = vld [vmem:[#allocation3 + $0x650] sm:$0xff]
    %v3013 = vld [vmem:[#allocation3 + $0x658] sm:$0xff]
    %v3014 = vld [vmem:[#allocation3 + $0x660] sm:$0xff]
    %v3015 = vld [vmem:[#allocation3 + $0x668] sm:$0xff]
    %v3016 = vld [vmem:[#allocation3 + $0x670] sm:$0xff]
    %v3017 = vld [vmem:[#allocation3 + $0x678] sm:$0xff]
    %v3018 = vld [vmem:[#allocation3 + $0x680] sm:$0xff]
    %v3019 = vld [vmem:[#allocation3 + $0x688] sm:$0xff]
    %v3020 = vld [vmem:[#allocation3 + $0x690] sm:$0xff]
    %v3021 = vld [vmem:[#allocation3 + $0x698] sm:$0xff]
    %v3022 = vld [vmem:[#allocation3 + $0x6a0] sm:$0xff]
    %v3023 = vld [vmem:[#allocation3 + $0x6a8] sm:$0xff]
    %v3024 = vld [vmem:[#allocation3 + $0x6b0] sm:$0xff]
    %v3025 = vld [vmem:[#allocation3 + $0x6b8] sm:$0xff]
    %v3026 = vld [vmem:[#allocation3 + $0x6c0] sm:$0xff]
    %v3027 = vld [vmem:[#allocation3 + $0x6c8] sm:$0xff]
    %v3028 = vld [vmem:[#allocation3 + $0x6d0] sm:$0xff]
    %v3029 = vld [vmem:[#allocation3 + $0x6d8] sm:$0xff]
    %v3030 = vld [vmem:[#allocation3 + $0x6e0] sm:$0xff]
    %v3031 = vld [vmem:[#allocation3 + $0x6e8] sm:$0xff]
    %v3032 = vld [vmem:[#allocation3 + $0x6f0] sm:$0xff]
    %v3033 = vld [vmem:[#allocation3 + $0x6f8] sm:$0xff]
    %v3034 = vld [vmem:[#allocation3 + $0x700] sm:$0xff]
    %v3035 = vld [vmem:[#allocation3 + $0x708] sm:$0xff]
    %v3036 = vld [vmem:[#allocation3 + $0x710] sm:$0xff]
    %v3037 = vld [vmem:[#allocation3 + $0x718] sm:$0xff]
    %v3038 = vld [vmem:[#allocation3 + $0x720] sm:$0xff]
    %v3039 = vld [vmem:[#allocation3 + $0x728] sm:$0xff]
    %v3040 = vld [vmem:[#allocation3 + $0x730] sm:$0xff]
    %v3041 = vld [vmem:[#allocation3 + $0x738] sm:$0xff]
    %v3042 = vld [vmem:[#allocation3 + $0x740] sm:$0xff]
    %v3043 = vld [vmem:[#allocation3 + $0x748] sm:$0xff]
    %v3044 = vld [vmem:[#allocation3 + $0x750] sm:$0xff]
    %v3045 = vld [vmem:[#allocation3 + $0x758] sm:$0xff]
    %v3046 = vld [vmem:[#allocation3 + $0x760] sm:$0xff]
    %v3047 = vld [vmem:[#allocation3 + $0x768] sm:$0xff]
    %v3048 = vld [vmem:[#allocation3 + $0x770] sm:$0xff]
    %v3049 = vld [vmem:[#allocation3 + $0x778] sm:$0xff]
    %v3050 = vld [vmem:[#allocation3 + $0x780] sm:$0xff]
    %v3051 = vld [vmem:[#allocation3 + $0x788] sm:$0xff]
    %v3052 = vld [vmem:[#allocation3 + $0x790] sm:$0xff]
    %v3053 = vld [vmem:[#allocation3 + $0x798] sm:$0xff]
    %v3054 = vld [vmem:[#allocation3 + $0x7a0] sm:$0xff]
    %v3055 = vld [vmem:[#allocation3 + $0x7a8] sm:$0xff]
    %v3056 = vld [vmem:[#allocation3 + $0x7b0] sm:$0xff]
    %v3057 = vld [vmem:[#allocation3 + $0x7b8] sm:$0xff]
    %v3058 = vld [vmem:[#allocation3 + $0x7c0] sm:$0xff]
    %v3059 = vld [vmem:[#allocation3 + $0x7c8] sm:$0xff]
    %v3060 = vld [vmem:[#allocation3 + $0x7d0] sm:$0xff]
    %v3061 = vld [vmem:[#allocation3 + $0x7d8] sm:$0xff]
    %v3062 = vld [vmem:[#allocation3 + $0x7e0] sm:$0xff]
    %v3063 = vld [vmem:[#allocation3 + $0x7e8] sm:$0xff]
    %v3064 = vld [vmem:[#allocation3 + $0x7f0] sm:$0xff]
    %v3065 = vld [vmem:[#allocation3 + $0x7f8] sm:$0xff]
    %v3066 = vld [vmem:[%s16] sm:$0x3]
    %v3068 = vperm.slane %v3066, 0
    %v3069 = vperm.slane %v3066, 1
    %3072 = vmatpush.msra.mxu0 %v2840
    %3073 = vmatpush.msra.mxu0 %v2838
    %3074 = vmatpush.msra.mxu0 %v2836
    %3075 = vmatpush.msra.mxu0 %v2834
    %3076 = vmatpush.msra.mxu0 %v2832
    %3077 = vmatpush.msra.mxu0 %v2830
    %3078 = vmatpush.msra.mxu0 %v2828
    %3079 = vmatpush.msra.mxu0 %v2826
    %3080 = vmatpush.msra.mxu0 %v2824
    %3081 = vmatpush.msra.mxu0 %v2822
    %3082 = vmatpush.msra.mxu0 %v2820
    %3083 = vmatpush.msra.mxu0 %v2818
    %3084 = vmatpush.msra.mxu0 %v2816
    %3085 = vmatpush.msra.mxu0 %v2814
    %3086 = vmatpush.msra.mxu0 %v2812
    %3087 = vmatpush.msra.mxu0 %v2810
    %3088 = vmatmul.f32.gmra.mxu0 %v2524
    %v3089 = vpop.f32.mrf.mxu0
    %v3090 = vadd.f32 %v3068, %v3089
    %3091 = vdwg.mxu0
    %3092 = vmatpush.msra.mxu0 %v2872
    %3093 = vmatpush.msra.mxu0 %v2870
    %3094 = vmatpush.msra.mxu0 %v2868
    %3095 = vmatpush.msra.mxu0 %v2866
    %3096 = vmatpush.msra.mxu0 %v2864
    %3097 = vmatpush.msra.mxu0 %v2862
    %3098 = vmatpush.msra.mxu0 %v2860
    %3099 = vmatpush.msra.mxu0 %v2858
    %3100 = vmatpush.msra.mxu0 %v2856
    %3101 = vmatpush.msra.mxu0 %v2854
    %3102 = vmatpush.msra.mxu0 %v2852
    %3103 = vmatpush.msra.mxu0 %v2850
    %3104 = vmatpush.msra.mxu0 %v2848
    %3105 = vmatpush.msra.mxu0 %v2846
    %3106 = vmatpush.msra.mxu0 %v2844
    %3107 = vmatpush.msra.mxu0 %v2842
    %3108 = vmatmul.f32.gmra.mxu0 %v2564
    %v3109 = vpop.f32.mrf.mxu0
    %v3110 = vadd.f32 %v3090, %v3109
    %3111 = vdwg.mxu0
    %3112 = vmatpush.msra.mxu0 %v2904
    %3113 = vmatpush.msra.mxu0 %v2902
    %3114 = vmatpush.msra.mxu0 %v2900
    %3115 = vmatpush.msra.mxu0 %v2898
    %3116 = vmatpush.msra.mxu0 %v2896
    %3117 = vmatpush.msra.mxu0 %v2894
    %3118 = vmatpush.msra.mxu0 %v2892
    %3119 = vmatpush.msra.mxu0 %v2890
    %3120 = vmatpush.msra.mxu0 %v2888
    %3121 = vmatpush.msra.mxu0 %v2886
    %3122 = vmatpush.msra.mxu0 %v2884
    %3123 = vmatpush.msra.mxu0 %v2882
    %3124 = vmatpush.msra.mxu0 %v2880
    %3125 = vmatpush.msra.mxu0 %v2878
    %3126 = vmatpush.msra.mxu0 %v2876
    %3127 = vmatpush.msra.mxu0 %v2874
    %3128 = vmatmul.f32.gmra.mxu0 %v2604
    %v3129 = vpop.f32.mrf.mxu0
    %v3130 = vadd.f32 %v3110, %v3129
    %3131 = vdwg.mxu0
    %3132 = vmatpush.msra.mxu0 %v2936
    %3133 = vmatpush.msra.mxu0 %v2934
    %3134 = vmatpush.msra.mxu0 %v2932
    %3135 = vmatpush.msra.mxu0 %v2930
    %3136 = vmatpush.msra.mxu0 %v2928
    %3137 = vmatpush.msra.mxu0 %v2926
    %3138 = vmatpush.msra.mxu0 %v2924
    %3139 = vmatpush.msra.mxu0 %v2922
    %3140 = vmatpush.msra.mxu0 %v2920
    %3141 = vmatpush.msra.mxu0 %v2918
    %3142 = vmatpush.msra.mxu0 %v2916
    %3143 = vmatpush.msra.mxu0 %v2914
    %3144 = vmatpush.msra.mxu0 %v2912
    %3145 = vmatpush.msra.mxu0 %v2910
    %3146 = vmatpush.msra.mxu0 %v2908
    %3147 = vmatpush.msra.mxu0 %v2906
    %3148 = vmatmul.f32.gmra.mxu0 %v2644
    %v3149 = vpop.f32.mrf.mxu0
    %v3150 = vadd.f32 %v3130, %v3149
    %3151 = vdwg.mxu0
    %3152 = vmatpush.msra.mxu0 %v2968
    %3153 = vmatpush.msra.mxu0 %v2966
    %3154 = vmatpush.msra.mxu0 %v2964
    %3155 = vmatpush.msra.mxu0 %v2962
    %3156 = vmatpush.msra.mxu0 %v2960
    %3157 = vmatpush.msra.mxu0 %v2958
    %3158 = vmatpush.msra.mxu0 %v2956
    %3159 = vmatpush.msra.mxu0 %v2954
    %3160 = vmatpush.msra.mxu0 %v2952
    %3161 = vmatpush.msra.mxu0 %v2950
    %3162 = vmatpush.msra.mxu0 %v2948
    %3163 = vmatpush.msra.mxu0 %v2946
    %3164 = vmatpush.msra.mxu0 %v2944
    %3165 = vmatpush.msra.mxu0 %v2942
    %3166 = vmatpush.msra.mxu0 %v2940
    %3167 = vmatpush.msra.mxu0 %v2938
    %3168 = vmatmul.f32.gmra.mxu0 %v2684
    %v3169 = vpop.f32.mrf.mxu0
    %v3170 = vadd.f32 %v3150, %v3169
    %3171 = vdwg.mxu0
    %3172 = vmatpush.msra.mxu0 %v3000
    %3173 = vmatpush.msra.mxu0 %v2998
    %3174 = vmatpush.msra.mxu0 %v2996
    %3175 = vmatpush.msra.mxu0 %v2994
    %3176 = vmatpush.msra.mxu0 %v2992
    %3177 = vmatpush.msra.mxu0 %v2990
    %3178 = vmatpush.msra.mxu0 %v2988
    %3179 = vmatpush.msra.mxu0 %v2986
    %3180 = vmatpush.msra.mxu0 %v2984
    %3181 = vmatpush.msra.mxu0 %v2982
    %3182 = vmatpush.msra.mxu0 %v2980
    %3183 = vmatpush.msra.mxu0 %v2978
    %3184 = vmatpush.msra.mxu0 %v2976
    %3185 = vmatpush.msra.mxu0 %v2974
    %3186 = vmatpush.msra.mxu0 %v2972
    %3187 = vmatpush.msra.mxu0 %v2970
    %3188 = vmatmul.f32.gmra.mxu0 %v2724
    %v3189 = vpop.f32.mrf.mxu0
    %v3190 = vadd.f32 %v3170, %v3189
    %3191 = vdwg.mxu0
    %3192 = vmatpush.msra.mxu0 %v3032
    %3193 = vmatpush.msra.mxu0 %v3030
    %3194 = vmatpush.msra.mxu0 %v3028
    %3195 = vmatpush.msra.mxu0 %v3026
    %3196 = vmatpush.msra.mxu0 %v3024
    %3197 = vmatpush.msra.mxu0 %v3022
    %3198 = vmatpush.msra.mxu0 %v3020
    %3199 = vmatpush.msra.mxu0 %v3018
    %3200 = vmatpush.msra.mxu0 %v3016
    %3201 = vmatpush.msra.mxu0 %v3014
    %3202 = vmatpush.msra.mxu0 %v3012
    %3203 = vmatpush.msra.mxu0 %v3010
    %3204 = vmatpush.msra.mxu0 %v3008
    %3205 = vmatpush.msra.mxu0 %v3006
    %3206 = vmatpush.msra.mxu0 %v3004
    %3207 = vmatpush.msra.mxu0 %v3002
    %3208 = vmatmul.f32.gmra.mxu0 %v2764
    %v3209 = vpop.f32.mrf.mxu0
    %v3210 = vadd.f32 %v3190, %v3209
    %3211 = vdwg.mxu0
    %3212 = vmatpush.msra.mxu0 %v3064
    %3213 = vmatpush.msra.mxu0 %v3062
    %3214 = vmatpush.msra.mxu0 %v3060
    %3215 = vmatpush.msra.mxu0 %v3058
    %3216 = vmatpush.msra.mxu0 %v3056
    %3217 = vmatpush.msra.mxu0 %v3054
    %3218 = vmatpush.msra.mxu0 %v3052
    %3219 = vmatpush.msra.mxu0 %v3050
    %3220 = vmatpush.msra.mxu0 %v3048
    %3221 = vmatpush.msra.mxu0 %v3046
    %3222 = vmatpush.msra.mxu0 %v3044
    %3223 = vmatpush.msra.mxu0 %v3042
    %3224 = vmatpush.msra.mxu0 %v3040
    %3225 = vmatpush.msra.mxu0 %v3038
    %3226 = vmatpush.msra.mxu0 %v3036
    %3227 = vmatpush.msra.mxu0 %v3034
    %3228 = vmatmul.f32.gmra.mxu0 %v2804
    %v3229 = vpop.f32.mrf.mxu0
    %v3230 = vadd.f32 %v3210, %v3229
    %3231 = vdwg.mxu0
    %3232 = vmatpush.msra.mxu0 %v2841
    %3233 = vmatpush.msra.mxu0 %v2839
    %3234 = vmatpush.msra.mxu0 %v2837
    %3235 = vmatpush.msra.mxu0 %v2835
    %3236 = vmatpush.msra.mxu0 %v2833
    %3237 = vmatpush.msra.mxu0 %v2831
    %3238 = vmatpush.msra.mxu0 %v2829
    %3239 = vmatpush.msra.mxu0 %v2827
    %3240 = vmatpush.msra.mxu0 %v2825
    %3241 = vmatpush.msra.mxu0 %v2823
    %3242 = vmatpush.msra.mxu0 %v2821
    %3243 = vmatpush.msra.mxu0 %v2819
    %3244 = vmatpush.msra.mxu0 %v2817
    %3245 = vmatpush.msra.mxu0 %v2815
    %3246 = vmatpush.msra.mxu0 %v2813
    %3247 = vmatpush.msra.mxu0 %v2811
    %3248 = vmatmul.f32.gmra.mxu0 %v2524
    %v3249 = vpop.f32.mrf.mxu0
    %v3250 = vadd.f32 %v3069, %v3249
    %3251 = vdwg.mxu0
    %3252 = vmatpush.msra.mxu0 %v2873
    %3253 = vmatpush.msra.mxu0 %v2871
    %3254 = vmatpush.msra.mxu0 %v2869
    %3255 = vmatpush.msra.mxu0 %v2867
    %3256 = vmatpush.msra.mxu0 %v2865
    %3257 = vmatpush.msra.mxu0 %v2863
    %3258 = vmatpush.msra.mxu0 %v2861
    %3259 = vmatpush.msra.mxu0 %v2859
    %3260 = vmatpush.msra.mxu0 %v2857
    %3261 = vmatpush.msra.mxu0 %v2855
    %3262 = vmatpush.msra.mxu0 %v2853
    %3263 = vmatpush.msra.mxu0 %v2851
    %3264 = vmatpush.msra.mxu0 %v2849
    %3265 = vmatpush.msra.mxu0 %v2847
    %3266 = vmatpush.msra.mxu0 %v2845
    %3267 = vmatpush.msra.mxu0 %v2843
    %3268 = vmatmul.f32.gmra.mxu0 %v2564
    %v3269 = vpop.f32.mrf.mxu0
    %v3270 = vadd.f32 %v3250, %v3269
    %3271 = vdwg.mxu0
    %3272 = vmatpush.msra.mxu0 %v2905
    %3273 = vmatpush.msra.mxu0 %v2903
    %3274 = vmatpush.msra.mxu0 %v2901
    %3275 = vmatpush.msra.mxu0 %v2899
    %3276 = vmatpush.msra.mxu0 %v2897
    %3277 = vmatpush.msra.mxu0 %v2895
    %3278 = vmatpush.msra.mxu0 %v2893
    %3279 = vmatpush.msra.mxu0 %v2891
    %3280 = vmatpush.msra.mxu0 %v2889
    %3281 = vmatpush.msra.mxu0 %v2887
    %3282 = vmatpush.msra.mxu0 %v2885
    %3283 = vmatpush.msra.mxu0 %v2883
    %3284 = vmatpush.msra.mxu0 %v2881
    %3285 = vmatpush.msra.mxu0 %v2879
    %3286 = vmatpush.msra.mxu0 %v2877
    %3287 = vmatpush.msra.mxu0 %v2875
    %3288 = vmatmul.f32.gmra.mxu0 %v2604
    %v3289 = vpop.f32.mrf.mxu0
    %v3290 = vadd.f32 %v3270, %v3289
    %3291 = vdwg.mxu0
    %3292 = vmatpush.msra.mxu0 %v2937
    %3293 = vmatpush.msra.mxu0 %v2935
    %3294 = vmatpush.msra.mxu0 %v2933
    %3295 = vmatpush.msra.mxu0 %v2931
    %3296 = vmatpush.msra.mxu0 %v2929
    %3297 = vmatpush.msra.mxu0 %v2927
    %3298 = vmatpush.msra.mxu0 %v2925
    %3299 = vmatpush.msra.mxu0 %v2923
    %3300 = vmatpush.msra.mxu0 %v2921
    %3301 = vmatpush.msra.mxu0 %v2919
    %3302 = vmatpush.msra.mxu0 %v2917
    %3303 = vmatpush.msra.mxu0 %v2915
    %3304 = vmatpush.msra.mxu0 %v2913
    %3305 = vmatpush.msra.mxu0 %v2911
    %3306 = vmatpush.msra.mxu0 %v2909
    %3307 = vmatpush.msra.mxu0 %v2907
    %3308 = vmatmul.f32.gmra.mxu0 %v2644
    %v3309 = vpop.f32.mrf.mxu0
    %v3310 = vadd.f32 %v3290, %v3309
    %3311 = vdwg.mxu0
    %3312 = vmatpush.msra.mxu0 %v2969
    %3313 = vmatpush.msra.mxu0 %v2967
    %3314 = vmatpush.msra.mxu0 %v2965
    %3315 = vmatpush.msra.mxu0 %v2963
    %3316 = vmatpush.msra.mxu0 %v2961
    %3317 = vmatpush.msra.mxu0 %v2959
    %3318 = vmatpush.msra.mxu0 %v2957
    %3319 = vmatpush.msra.mxu0 %v2955
    %3320 = vmatpush.msra.mxu0 %v2953
    %3321 = vmatpush.msra.mxu0 %v2951
    %3322 = vmatpush.msra.mxu0 %v2949
    %3323 = vmatpush.msra.mxu0 %v2947
    %3324 = vmatpush.msra.mxu0 %v2945
    %3325 = vmatpush.msra.mxu0 %v2943
    %3326 = vmatpush.msra.mxu0 %v2941
    %3327 = vmatpush.msra.mxu0 %v2939
    %3328 = vmatmul.f32.gmra.mxu0 %v2684
    %v3329 = vpop.f32.mrf.mxu0
    %v3330 = vadd.f32 %v3310, %v3329
    %3331 = vdwg.mxu0
    %3332 = vmatpush.msra.mxu0 %v3001
    %3333 = vmatpush.msra.mxu0 %v2999
    %3334 = vmatpush.msra.mxu0 %v2997
    %3335 = vmatpush.msra.mxu0 %v2995
    %3336 = vmatpush.msra.mxu0 %v2993
    %3337 = vmatpush.msra.mxu0 %v2991
    %3338 = vmatpush.msra.mxu0 %v2989
    %3339 = vmatpush.msra.mxu0 %v2987
    %3340 = vmatpush.msra.mxu0 %v2985
    %3341 = vmatpush.msra.mxu0 %v2983
    %3342 = vmatpush.msra.mxu0 %v2981
    %3343 = vmatpush.msra.mxu0 %v2979
    %3344 = vmatpush.msra.mxu0 %v2977
    %3345 = vmatpush.msra.mxu0 %v2975
    %3346 = vmatpush.msra.mxu0 %v2973
    %3347 = vmatpush.msra.mxu0 %v2971
    %3348 = vmatmul.f32.gmra.mxu0 %v2724
    %v3349 = vpop.f32.mrf.mxu0
    %v3350 = vadd.f32 %v3330, %v3349
    %3351 = vdwg.mxu0
    %3352 = vmatpush.msra.mxu0 %v3033
    %3353 = vmatpush.msra.mxu0 %v3031
    %3354 = vmatpush.msra.mxu0 %v3029
    %3355 = vmatpush.msra.mxu0 %v3027
    %3356 = vmatpush.msra.mxu0 %v3025
    %3357 = vmatpush.msra.mxu0 %v3023
    %3358 = vmatpush.msra.mxu0 %v3021
    %3359 = vmatpush.msra.mxu0 %v3019
    %3360 = vmatpush.msra.mxu0 %v3017
    %3361 = vmatpush.msra.mxu0 %v3015
    %3362 = vmatpush.msra.mxu0 %v3013
    %3363 = vmatpush.msra.mxu0 %v3011
    %3364 = vmatpush.msra.mxu0 %v3009
    %3365 = vmatpush.msra.mxu0 %v3007
    %3366 = vmatpush.msra.mxu0 %v3005
    %3367 = vmatpush.msra.mxu0 %v3003
    %3368 = vmatmul.f32.gmra.mxu0 %v2764
    %v3369 = vpop.f32.mrf.mxu0
    %v3370 = vadd.f32 %v3350, %v3369
    %3371 = vdwg.mxu0
    %3372 = vmatpush.msra.mxu0 %v3065
    %3373 = vmatpush.msra.mxu0 %v3063
    %3374 = vmatpush.msra.mxu0 %v3061
    %3375 = vmatpush.msra.mxu0 %v3059
    %3376 = vmatpush.msra.mxu0 %v3057
    %3377 = vmatpush.msra.mxu0 %v3055
    %3378 = vmatpush.msra.mxu0 %v3053
    %3379 = vmatpush.msra.mxu0 %v3051
    %3380 = vmatpush.msra.mxu0 %v3049
    %3381 = vmatpush.msra.mxu0 %v3047
    %3382 = vmatpush.msra.mxu0 %v3045
    %3383 = vmatpush.msra.mxu0 %v3043
    %3384 = vmatpush.msra.mxu0 %v3041
    %3385 = vmatpush.msra.mxu0 %v3039
    %3386 = vmatpush.msra.mxu0 %v3037
    %3387 = vmatpush.msra.mxu0 %v3035
    %3388 = vmatmul.f32.gmra.mxu0 %v2804
    %v3389 = vpop.f32.mrf.mxu0
    %v3390 = vadd.f32 %v3370, %v3389
    %3391 = vdwg.mxu0
    %v3392 = vld [vmem:[%s17] sm:$0xff]
    %v3393 = vld [vmem:[%s17 + $0x8] sm:$0xff]
    %v3394 = vld [vmem:[%s17 + $0x10] sm:$0xff]
    %v3395 = vld [vmem:[%s17 + $0x18] sm:$0xff]
    %v3396 = vld [vmem:[%s17 + $0x20] sm:$0xff]
    %v3397 = vld [vmem:[%s17 + $0x28] sm:$0xff]
    %v3398 = vld [vmem:[%s17 + $0x30] sm:$0xff]
    %v3399 = vld [vmem:[%s17 + $0x38] sm:$0xff]
    %v3400 = vld [vmem:[%s17 + $0x40] sm:$0xff]
    %v3401 = vld [vmem:[%s17 + $0x48] sm:$0xff]
    %v3402 = vld [vmem:[%s17 + $0x50] sm:$0xff]
    %v3403 = vld [vmem:[%s17 + $0x58] sm:$0xff]
    %v3404 = vld [vmem:[%s17 + $0x60] sm:$0xff]
    %v3405 = vld [vmem:[%s17 + $0x68] sm:$0xff]
    %v3406 = vld [vmem:[%s17 + $0x70] sm:$0xff]
    %v3407 = vld [vmem:[%s17 + $0x78] sm:$0xff]
    %v3408 = vld [vmem:[%s17 + $0x80] sm:$0xff]
    %v3409 = vld [vmem:[%s17 + $0x88] sm:$0xff]
    %v3410 = vld [vmem:[%s17 + $0x90] sm:$0xff]
    %v3411 = vld [vmem:[%s17 + $0x98] sm:$0xff]
    %v3412 = vld [vmem:[%s17 + $0xa0] sm:$0xff]
    %v3413 = vld [vmem:[%s17 + $0xa8] sm:$0xff]
    %v3414 = vld [vmem:[%s17 + $0xb0] sm:$0xff]
    %v3415 = vld [vmem:[%s17 + $0xb8] sm:$0xff]
    %v3416 = vld [vmem:[%s17 + $0xc0] sm:$0xff]
    %v3417 = vld [vmem:[%s17 + $0xc8] sm:$0xff]
    %v3418 = vld [vmem:[%s17 + $0xd0] sm:$0xff]
    %v3419 = vld [vmem:[%s17 + $0xd8] sm:$0xff]
    %v3420 = vld [vmem:[%s17 + $0xe0] sm:$0xff]
    %v3421 = vld [vmem:[%s17 + $0xe8] sm:$0xff]
    %v3422 = vld [vmem:[%s17 + $0xf0] sm:$0xff]
    %v3423 = vld [vmem:[%s17 + $0xf8] sm:$0xff]
    %v3424 = vld [vmem:[%s18] sm:$0x1]
    %v3426 = vperm.slane %v3424, 0
    %3428 = vmatpush.msra.mxu0 %v3407
    %3429 = vmatpush.msra.mxu0 %v3406
    %3430 = vmatpush.msra.mxu0 %v3405
    %3431 = vmatpush.msra.mxu0 %v3404
    %3432 = vmatpush.msra.mxu0 %v3403
    %3433 = vmatpush.msra.mxu0 %v3402
    %3434 = vmatpush.msra.mxu0 %v3401
    %3435 = vmatpush.msra.mxu0 %v3400
    %3436 = vmatpush.msra.mxu0 %v3399
    %3437 = vmatpush.msra.mxu0 %v3398
    %3438 = vmatpush.msra.mxu0 %v3397
    %3439 = vmatpush.msra.mxu0 %v3396
    %3440 = vmatpush.msra.mxu0 %v3395
    %3441 = vmatpush.msra.mxu0 %v3394
    %3442 = vmatpush.msra.mxu0 %v3393
    %3443 = vmatpush.msra.mxu0 %v3392
    %3444 = vmatmul.f32.gmra.mxu0 %v3230
    %v3445 = vpop.f32.mrf.mxu0
    %v3446 = vadd.f32 %v3426, %v3445
    %3447 = vdwg.mxu0
    %3448 = vmatpush.msra.mxu0 %v3423
    %3449 = vmatpush.msra.mxu0 %v3422
    %3450 = vmatpush.msra.mxu0 %v3421
    %3451 = vmatpush.msra.mxu0 %v3420
    %3452 = vmatpush.msra.mxu0 %v3419
    %3453 = vmatpush.msra.mxu0 %v3418
    %3454 = vmatpush.msra.mxu0 %v3417
    %3455 = vmatpush.msra.mxu0 %v3416
    %3456 = vmatpush.msra.mxu0 %v3415
    %3457 = vmatpush.msra.mxu0 %v3414
    %3458 = vmatpush.msra.mxu0 %v3413
    %3459 = vmatpush.msra.mxu0 %v3412
    %3460 = vmatpush.msra.mxu0 %v3411
    %3461 = vmatpush.msra.mxu0 %v3410
    %3462 = vmatpush.msra.mxu0 %v3409
    %3463 = vmatpush.msra.mxu0 %v3408
    %3464 = vmatmul.f32.gmra.mxu0 %v3390
    %v3465 = vpop.f32.mrf.mxu0
    %v3466 = vadd.f32 %v3446, %v3465
    %3467 = vdwg.mxu0
    %vm3468 = vcmask 41984
    %3469 = vst.msk [vmem:[#allocation11] sm:$0x3] %vm3468, %v3466
    // Predicated region
    $region90: #{phrnn_forward.1} parent=1 // pred_check
      _
    $region91: #{phrnn_forward.1} parent=1 // pred_check_branch
      %3471 = sbr.rel (0) target = $region93
    $region92: #{phrnn_forward.1} parent=1 // pred_region
      %3473 = vsyncadd [#allocation7], 0
      %s3475 = sshll.u32 [#allocation11], 4
      %s3476 = int_to_ptr.vmem [resolvable:$true] %s3475
      %s3477 = sshll.u32 %s19, 4
      %s3478 = int_to_ptr.hbm [resolvable:$true] %s3477
      %3480 = dma.vmem_to_hbm [thread:$0]  %s3476, 32, %s3478, [#allocation7]
    $region93: #{phrnn_forward.1} parent=1 // pred_fallthru
      _
    // Predicated region
    $region94: #{phrnn_forward.1} parent=1 // pred_check
      _
    $region95: #{phrnn_forward.1} parent=1 // pred_check_branch
      %3482 = sbr.rel (0) target = $region97
    $region96: #{phrnn_forward.1} parent=1 // pred_region
      %3484 = dma.done [#allocation7], 32
    $region97: #{phrnn_forward.1} parent=1 // pred_fallthru
      _
    %3485 = vsyncpa [#allocation6], 1
    %3486 = vsyncpa [#allocation9], 1
    %3487 = vsyncpa [#allocation7], 1
  %3488 = vsyncmov [#allocation4]
  %s3489 = vpop.sfrf %3488
  %p3490 = scmp.eq.s32.totalorder %s3489, 0
  %p3491 = pneg %p3490
  %3493 = shalt.err (%p3491)
  %s3494 = scalar_lea.sflag [#allocation4], 1
  %3495 = vsyncmov %s3494
  %s3496 = vpop.sfrf %3495
  %p3497 = scmp.eq.s32.totalorder %s3496, 0
  %p3498 = pneg %p3497
  %3500 = shalt.err (%p3498)

</llo_original>
